<compile_context>
chip_gen: v5e
topology: v5e:2x2
jax: 0.10.0
libtpu: 0.0.40
codegen_flags: <defaults>
</compile_context>

<pallas_src>
import jax
import jax.numpy as jnp
from jax.experimental import pallas as pl
from jax.experimental.pallas import tpu as pltpu


# ----------------------------- kernel body ---------------------------------

def _linear_block_kernel(x_ref, w1_ref, b1_ref, w2_ref, b2_ref, o_ref):
    # ---- l1 (+ folded bn1) + relu: bf16 MXU operands, f32 accumulation ----
    y = jnp.dot(x_ref[...].astype(jnp.bfloat16), w1_ref[...],
                preferred_element_type=jnp.float32)
    y = jnp.maximum(y + b1_ref[...], 0.0)
    # TODO(synk): Dropout is identity in eval mode; training-mode stochastic
    # masking is intentionally not implemented.

    # ---- l2 (+ folded bn2) + relu ----
    y = jnp.dot(y.astype(jnp.bfloat16), w2_ref[...],
                preferred_element_type=jnp.float32)
    y = jnp.maximum(y + b2_ref[...], 0.0)

    # ---- residual: re-read x fresh (short live range), add in f32 ----
    o_ref[...] = (x_ref[...].astype(jnp.float32) + y).astype(o_ref.dtype)


# ----------------------- hardware-aware sizing helpers ----------------------

def _tpu_vmem_capacity_bytes(default=64 << 20):
    """Physical VMEM per core; 64 MiB default is safe for v5e/v6e/v7x."""
    try:
        info = pltpu.get_tpu_info()
        return int(getattr(info, "vmem_capacity_bytes", default))
    except Exception:
        return default


def _tensorcores_per_chip():
    """2 TCs on v7x (and megacore v4/v5p); 1 on v5e/v6e."""
    try:
        kind = jax.devices()[0].device_kind.lower()
    except Exception:
        return 1
    if ("v7" in kind) or ("v4" in kind) or ("v5p" in kind):
        return 2
    return 1


def _vmem_need_bytes(tile_m, D, act_bytes):
    """Conservative per-kernel VMEM footprint (assumes double-buffered weights)."""
    x_buf = 2 * tile_m * D * act_bytes       # input tile, double-buffered
    o_buf = 2 * tile_m * D * act_bytes       # output tile, double-buffered
    w_buf = 2 * 2 * D * D * 2                # two bf16 weights (worst case 2 bufs)
    v_buf = 2 * 2 * D * 4                    # two f32 bias rows
    act = 2 * tile_m * D * 4                 # intermediate f32 activations / slack
    return x_buf + o_buf + w_buf + v_buf + act


def _vmem_limit_bytes(tile_m, D, act_bytes, vmem_cap):
    need = _vmem_need_bytes(tile_m, D, act_bytes) + (2 << 20)
    cap = max(vmem_cap - (4 << 20), 16 << 20)       # leave headroom for XLA
    return int(min(cap, max(need, 16 << 20)))


def _pick_tile_m(N, D, num_tc, act_bytes, vmem_cap):
    """Largest tile_m that divides N, is 8-aligned, keeps >= num_tc grid steps,
    and fits the VMEM budget. Falls back to a full-extent block."""
    if N % 8 != 0:
        return N                                    # full-extent block is legal
    budget = max(vmem_cap - (8 << 20), 16 << 20)
    best = 8
    t, t_max = 8, min(N, 4096)
    while t <= t_max:
        if (N % t == 0 and (N // t) >= max(num_tc, 1)
                and _vmem_need_bytes(t, D, act_bytes) <= budget):
            best = t
        t += 8
    return best


# ------------------------------- wrapper ------------------------------------

def _build_linear_block(N, D, tile_m, out_dtype, single_buffer_weights,
                        vmem_limit, cost):
    row_spec = pl.BlockSpec((tile_m, D), lambda i: (i, 0))
    if single_buffer_weights:
        # Constant index_map -> block fetched once; single buffer halves resident
        # weight VMEM (matters for large D, free at D=256).
        mat_spec = pl.BlockSpec((D, D), lambda i: (0, 0),
                                pipeline_mode=pl.Buffered(1))
        vec_spec = pl.BlockSpec((1, D), lambda i: (0, 0),
                                pipeline_mode=pl.Buffered(1))
    else:
        mat_spec = pl.BlockSpec((D, D), lambda i: (0, 0))
        vec_spec = pl.BlockSpec((1, D), lambda i: (0, 0))

    return pl.pallas_call(
        _linear_block_kernel,
        out_shape=jax.ShapeDtypeStruct((N, D), out_dtype),
        grid_spec=pltpu.PrefetchScalarGridSpec(
            num_scalar_prefetch=0,
            grid=(N // tile_m,),
            in_specs=[row_spec, mat_spec, vec_spec, mat_spec, vec_spec],
            out_specs=row_spec,
        ),
        compiler_params=pltpu.CompilerParams(
            dimension_semantics=("parallel",),     # batch axis shards across TCs
            vmem_limit_bytes=vmem_limit,
        ),
        cost_estimate=cost,
    )


def linear_block(x, w1_bf16, b1, w2_bf16, b2, *, tile_m=None):
    """x: [N, D] f32 or bf16; w*_bf16: [D, D] bf16 (already (in, out), BN folded);
    b*: [1, D] f32 (bias with BN folded). Output dtype matches x."""
    N, D = x.shape
    assert D % 128 == 0, "feature dim must be lane-aligned (multiple of 128)"

    act_bytes = jnp.dtype(x.dtype).itemsize
    vmem_cap = _tpu_vmem_capacity_bytes()
    num_tc = _tensorcores_per_chip()
    if tile_m is None:
        tile_m = _pick_tile_m(N, D, num_tc, act_bytes, vmem_cap)
    tile_m = min(tile_m, N)
    assert N % tile_m == 0, "batch must be a multiple of tile_m"
    assert tile_m == N or tile_m % 8 == 0, "tile must be 8-aligned"

    vmem_limit = _vmem_limit_bytes(tile_m, D, act_bytes, vmem_cap)
    cost = pl.CostEstimate(
        flops=4 * N * D * D,                           # two [N,D]x[D,D] matmuls
        transcendentals=0,
        bytes_accessed=2 * N * D * act_bytes + 2 * D * D * 2 + 2 * D * 4,
    )

    args = (x, w1_bf16, b1, w2_bf16, b2)
    try:
        call = _build_linear_block(N, D, tile_m, x.dtype, True, vmem_limit, cost)
        return jax.block_until_ready(call(*args))
    except Exception:
        # pl.Buffered(1) single-buffering not supported by this jax/mosaic
        # version; default double-buffering is correct, just uses more VMEM.
        call = _build_linear_block(N, D, tile_m, x.dtype, False, vmem_limit, cost)
        return jax.block_until_ready(call(*args))


# --------------------------- params / reference -----------------------------

def _fold_bn(w, b, gamma, beta, mean, var, eps=1e-5):
    """Fold eval-mode BatchNorm1d into an nn.Linear layer.
    w: (out, in) PyTorch convention. Returns (W_folded (in,out), b_folded (out,))."""
    scale = gamma / jnp.sqrt(var + eps)
    shift = beta - mean * scale
    w_folded = w.T * scale[None, :]          # column (= output-feature) scale
    b_folded = b * scale + shift
    return w_folded, b_folded


def init_params(key, linear_size):
    """Deterministic params mirroring nn.Linear / nn.BatchNorm1d (non-default BN
    stats so the folding is actually exercised)."""
    D = linear_size
    ks = jax.random.split(key, 12)
    bound = 1.0 / jnp.sqrt(D)
    # nn.Linear weight is (out, in).
    w1 = jax.random.uniform(ks[0], (D, D), jnp.float32, -bound, bound)
    b1 = jax.random.uniform(ks[1], (D,), jnp.float32, -bound, bound)
    w2 = jax.random.uniform(ks[2], (D, D), jnp.float32, -bound, bound)
    b2 = jax.random.uniform(ks[3], (D,), jnp.float32, -bound, bound)
    # BatchNorm1d parameters / running stats.
    gamma1 = jax.random.uniform(ks[4], (D,), jnp.float32, 0.5, 1.5)
    beta1 = 0.1 * jax.random.normal(ks[5], (D,), jnp.float32)
    mean1 = 0.1 * jax.random.normal(ks[6], (D,), jnp.float32)
    var1 = jax.random.uniform(ks[7], (D,), jnp.float32, 0.5, 1.5)
    gamma2 = jax.random.uniform(ks[8], (D,), jnp.float32, 0.5, 1.5)
    beta2 = 0.1 * jax.random.normal(ks[9], (D,), jnp.float32)
    mean2 = 0.1 * jax.random.normal(ks[10], (D,), jnp.float32)
    var2 = jax.random.uniform(ks[11], (D,), jnp.float32, 0.5, 1.5)

    raw = dict(w1=w1, b1=b1, gamma1=gamma1, beta1=beta1, mean1=mean1, var1=var1,
               w2=w2, b2=b2, gamma2=gamma2, beta2=beta2, mean2=mean2, var2=var2)

    w1f, b1f = _fold_bn(w1, b1, gamma1, beta1, mean1, var1)
    w2f, b2f = _fold_bn(w2, b2, gamma2, beta2, mean2, var2)
    kernel_params = dict(
        w1=w1f.astype(jnp.bfloat16), b1=b1f[None, :],
        w2=w2f.astype(jnp.bfloat16), b2=b2f[None, :],
    )
    return raw, kernel_params


def reference(x, p, eps=1e-5):
    """Plain-JAX reference of the eval-mode PyTorch forward (unfolded params)."""
    y = x @ p["w1"].T + p["b1"]
    y = (y - p["mean1"]) / jnp.sqrt(p["var1"] + eps) * p["gamma1"] + p["beta1"]
    y = jnp.maximum(y, 0.0)
    y = y @ p["w2"].T + p["b2"]
    y = (y - p["mean2"]) / jnp.sqrt(p["var2"] + eps) * p["gamma2"] + p["beta2"]
    y = jnp.maximum(y, 0.0)
    return x + y


# --------------------------------- main --------------------------------------

if __name__ == "__main__":
    key = jax.random.PRNGKey(0)
    kx, kp = jax.random.split(key)

    linear_size = 256   # module default; lane-aligned (multiple of 128)
    batch = 256         # 1 grid step on v5e/v6e, 2 parallel steps on v7x

    x = jax.random.normal(kx, (batch, linear_size), dtype=jnp.float32)
    raw, kp_ = init_params(kp, linear_size)

    # ---- f32 activation path (matches the PyTorch module's default dtype) ----
    out = linear_block(x, kp_["w1"], kp_["b1"], kp_["w2"], kp_["b2"])
    out = jax.block_until_ready(out)
    ref = reference(x, raw)
    assert out.shape == (batch, linear_size)
    # bf16 MXU operands (f32 accumulation) -> looser tolerance than pure f32.
    assert jnp.allclose(out, ref, atol=3e-2, rtol=3e-2), \
        float(jnp.max(jnp.abs(out - ref)))

    # ---- bf16 activation path (for models that already run bf16 activations;
    #      halves the dominant HBM activation traffic) ----
    x_bf = x.astype(jnp.bfloat16)
    out_bf = linear_block(x_bf, kp_["w1"], kp_["b1"], kp_["w2"], kp_["b2"])
    out_bf = jax.block_until_ready(out_bf)
    ref_bf = reference(x_bf.astype(jnp.float32), raw)
    assert out_bf.dtype == jnp.bfloat16 and out_bf.shape == (batch, linear_size)
    assert jnp.allclose(out_bf.astype(jnp.float32), ref_bf, atol=1e-1, rtol=5e-2), \
        float(jnp.max(jnp.abs(out_bf.astype(jnp.float32) - ref_bf)))

    print("KERNEL_OK")
</pallas_src>

<mosaic_0001>
module attributes {stable_mosaic.version = 11 : i64} {
  func.func @_linear_block_kernel(%arg0: i32, %arg1: memref<256x256xf32, #tpu.memory_space<vmem>>, %arg2: memref<256x256xbf16, #tpu.memory_space<vmem>>, %arg3: memref<1x256xf32, #tpu.memory_space<vmem>>, %arg4: memref<256x256xbf16, #tpu.memory_space<vmem>>, %arg5: memref<1x256xf32, #tpu.memory_space<vmem>>, %arg6: memref<256x256xf32, #tpu.memory_space<vmem>>) attributes {dimension_semantics = [#tpu.dimension_semantics<parallel>], iteration_bounds = array<i64: 1>, scalar_prefetch = 0 : i64, scratch_operands = 0 : i64, tpu.core_type = #tpu.core_type<tc>, window_params = [{transform_indices = @transform_0, window_bounds = array<i64: 256, 256>}, {pipeline_mode = #tpu.pipeline_mode<synchronous>, transform_indices = @transform_1, window_bounds = array<i64: 256, 256>}, {pipeline_mode = #tpu.pipeline_mode<synchronous>, transform_indices = @transform_2, window_bounds = array<i64: 1, 256>}, {pipeline_mode = #tpu.pipeline_mode<synchronous>, transform_indices = @transform_3, window_bounds = array<i64: 256, 256>}, {pipeline_mode = #tpu.pipeline_mode<synchronous>, transform_indices = @transform_4, window_bounds = array<i64: 1, 256>}, {transform_indices = @transform_5, window_bounds = array<i64: 256, 256>}]} {
    %c0 = arith.constant 0 : index
    %c0_0 = arith.constant 0 : index
    %0 = vector.load %arg1[%c0, %c0_0] : memref<256x256xf32, #tpu.memory_space<vmem>>, vector<256x256xf32>
    %1 = arith.truncf %0 : vector<256x256xf32> to vector<256x256xbf16>
    %c0_1 = arith.constant 0 : index
    %c0_2 = arith.constant 0 : index
    %2 = vector.load %arg2[%c0_1, %c0_2] : memref<256x256xbf16, #tpu.memory_space<vmem>>, vector<256x256xbf16>
    %cst = arith.constant dense<0.000000e+00> : vector<256x256xf32>
    %3 = tpu.matmul %1, %2, %cst {dimension_numbers = #tpu.dot_dimension_numbers<[1], [0], [0], [1], [0, 0, 1, 1], [], []>} : vector<256x256xbf16>, vector<256x256xbf16>, vector<256x256xf32> -> vector<256x256xf32>
    %c0_3 = arith.constant 0 : index
    %c0_4 = arith.constant 0 : index
    %4 = vector.load %arg3[%c0_3, %c0_4] : memref<1x256xf32, #tpu.memory_space<vmem>>, vector<1x256xf32>
    %5 = vector.broadcast %4 : vector<1x256xf32> to vector<256x256xf32>
    %6 = arith.addf %3, %5 : vector<256x256xf32>
    %cst_5 = arith.constant 0.000000e+00 : f32
    %7 = vector.broadcast %cst_5 : f32 to vector<256x256xf32>
    %8 = arith.maximumf %6, %7 : vector<256x256xf32>
    %9 = arith.truncf %8 : vector<256x256xf32> to vector<256x256xbf16>
    %c0_6 = arith.constant 0 : index
    %c0_7 = arith.constant 0 : index
    %10 = vector.load %arg4[%c0_6, %c0_7] : memref<256x256xbf16, #tpu.memory_space<vmem>>, vector<256x256xbf16>
    %cst_8 = arith.constant dense<0.000000e+00> : vector<256x256xf32>
    %11 = tpu.matmul %9, %10, %cst_8 {dimension_numbers = #tpu.dot_dimension_numbers<[1], [0], [0], [1], [0, 0, 1, 1], [], []>} : vector<256x256xbf16>, vector<256x256xbf16>, vector<256x256xf32> -> vector<256x256xf32>
    %c0_9 = arith.constant 0 : index
    %c0_10 = arith.constant 0 : index
    %12 = vector.load %arg5[%c0_9, %c0_10] : memref<1x256xf32, #tpu.memory_space<vmem>>, vector<1x256xf32>
    %13 = vector.broadcast %12 : vector<1x256xf32> to vector<256x256xf32>
    %14 = arith.addf %11, %13 : vector<256x256xf32>
    %cst_11 = arith.constant 0.000000e+00 : f32
    %15 = vector.broadcast %cst_11 : f32 to vector<256x256xf32>
    %16 = arith.maximumf %14, %15 : vector<256x256xf32>
    %c0_12 = arith.constant 0 : index
    %c0_13 = arith.constant 0 : index
    %17 = vector.load %arg1[%c0_12, %c0_13] : memref<256x256xf32, #tpu.memory_space<vmem>>, vector<256x256xf32>
    %18 = arith.addf %17, %16 : vector<256x256xf32>
    %c0_14 = arith.constant 0 : index
    %c0_15 = arith.constant 0 : index
    %19 = vector.load %arg6[%c0_14, %c0_15] : memref<256x256xf32, #tpu.memory_space<vmem>>, vector<256x256xf32>
    tpu.vector_store %arg6[%c0_14, %c0_15], %18 {strides = array<i32>} : memref<256x256xf32, #tpu.memory_space<vmem>>, vector<256x256xf32>,
    return
  }
  func.func @transform_0(%arg0: i32) -> (i32, i32) {
    %c0_i32 = arith.constant 0 : i32
    %c0_i32_0 = arith.constant 0 : i32
    return %arg0, %c0_i32 : i32, i32
  }
  func.func @transform_1(%arg0: i32) -> (i32, i32) {
    %c0_i32 = arith.constant 0 : i32
    %c0_i32_0 = arith.constant 0 : i32
    %c0_i32_1 = arith.constant 0 : i32
    return %c0_i32, %c0_i32_0 : i32, i32
  }
  func.func @transform_2(%arg0: i32) -> (i32, i32) {
    %c0_i32 = arith.constant 0 : i32
    %c0_i32_0 = arith.constant 0 : i32
    %c0_i32_1 = arith.constant 0 : i32
    return %c0_i32, %c0_i32_0 : i32, i32
  }
  func.func @transform_3(%arg0: i32) -> (i32, i32) {
    %c0_i32 = arith.constant 0 : i32
    %c0_i32_0 = arith.constant 0 : i32
    %c0_i32_1 = arith.constant 0 : i32
    return %c0_i32, %c0_i32_0 : i32, i32
  }
  func.func @transform_4(%arg0: i32) -> (i32, i32) {
    %c0_i32 = arith.constant 0 : i32
    %c0_i32_0 = arith.constant 0 : i32
    %c0_i32_1 = arith.constant 0 : i32
    return %c0_i32, %c0_i32_0 : i32, i32
  }
  func.func @transform_5(%arg0: i32) -> (i32, i32) {
    %c0_i32 = arith.constant 0 : i32
    %c0_i32_0 = arith.constant 0 : i32
    return %arg0, %c0_i32 : i32, i32
  }
}

module attributes {stable_mosaic.version = 11 : i64} {
  func.func @_linear_block_kernel(%arg0: i32, %arg1: memref<256x256xf32, #tpu.memory_space<vmem>>, %arg2: memref<256x256xbf16, #tpu.memory_space<vmem>>, %arg3: memref<1x256xf32, #tpu.memory_space<vmem>>, %arg4: memref<256x256xbf16, #tpu.memory_space<vmem>>, %arg5: memref<1x256xf32, #tpu.memory_space<vmem>>, %arg6: memref<256x256xf32, #tpu.memory_space<vmem>>) attributes {dimension_semantics = [#tpu.dimension_semantics<parallel>], iteration_bounds = array<i64: 1>, scalar_prefetch = 0 : i64, scratch_operands = 0 : i64, tpu.core_type = #tpu.core_type<tc>, window_params = [{transform_indices = @transform_0, window_bounds = array<i64: 256, 256>}, {pipeline_mode = #tpu.pipeline_mode<synchronous>, transform_indices = @transform_1, window_bounds = array<i64: 256, 256>}, {pipeline_mode = #tpu.pipeline_mode<synchronous>, transform_indices = @transform_2, window_bounds = array<i64: 1, 256>}, {pipeline_mode = #tpu.pipeline_mode<synchronous>, transform_indices = @transform_3, window_bounds = array<i64: 256, 256>}, {pipeline_mode = #tpu.pipeline_mode<synchronous>, transform_indices = @transform_4, window_bounds = array<i64: 1, 256>}, {transform_indices = @transform_5, window_bounds = array<i64: 256, 256>}]} {
    %c0 = arith.constant 0 : index
    %c0_0 = arith.constant 0 : index
    %0 = vector.load %arg1[%c0, %c0_0] : memref<256x256xf32, #tpu.memory_space<vmem>>, vector<256x256xf32>
    %1 = arith.truncf %0 : vector<256x256xf32> to vector<256x256xbf16>
    %c0_1 = arith.constant 0 : index
    %c0_2 = arith.constant 0 : index
    %2 = vector.load %arg2[%c0_1, %c0_2] : memref<256x256xbf16, #tpu.memory_space<vmem>>, vector<256x256xbf16>
    %cst = arith.constant dense<0.000000e+00> : vector<256x256xf32>
    %3 = tpu.matmul %1, %2, %cst {dimension_numbers = #tpu.dot_dimension_numbers<[1], [0], [0], [1], [0, 0, 1, 1], [], []>} : vector<256x256xbf16>, vector<256x256xbf16>, vector<256x256xf32> -> vector<256x256xf32>
    %c0_3 = arith.constant 0 : index
    %c0_4 = arith.constant 0 : index
    %4 = vector.load %arg3[%c0_3, %c0_4] : memref<1x256xf32, #tpu.memory_space<vmem>>, vector<1x256xf32>
    %5 = vector.broadcast %4 : vector<1x256xf32> to vector<256x256xf32>
    %6 = arith.addf %3, %5 : vector<256x256xf32>
    %cst_5 = arith.constant 0.000000e+00 : f32
    %7 = vector.broadcast %cst_5 : f32 to vector<256x256xf32>
    %8 = arith.maximumf %6, %7 : vector<256x256xf32>
    %9 = arith.truncf %8 : vector<256x256xf32> to vector<256x256xbf16>
    %c0_6 = arith.constant 0 : index
    %c0_7 = arith.constant 0 : index
    %10 = vector.load %arg4[%c0_6, %c0_7] : memref<256x256xbf16, #tpu.memory_space<vmem>>, vector<256x256xbf16>
    %cst_8 = arith.constant dense<0.000000e+00> : vector<256x256xf32>
    %11 = tpu.matmul %9, %10, %cst_8 {dimension_numbers = #tpu.dot_dimension_numbers<[1], [0], [0], [1], [0, 0, 1, 1], [], []>} : vector<256x256xbf16>, vector<256x256xbf16>, vector<256x256xf32> -> vector<256x256xf32>
    %c0_9 = arith.constant 0 : index
    %c0_10 = arith.constant 0 : index
    %12 = vector.load %arg5[%c0_9, %c0_10] : memref<1x256xf32, #tpu.memory_space<vmem>>, vector<1x256xf32>
    %13 = vector.broadcast %12 : vector<1x256xf32> to vector<256x256xf32>
    %14 = arith.addf %11, %13 : vector<256x256xf32>
    %cst_11 = arith.constant 0.000000e+00 : f32
    %15 = vector.broadcast %cst_11 : f32 to vector<256x256xf32>
    %16 = arith.maximumf %14, %15 : vector<256x256xf32>
    %c0_12 = arith.constant 0 : index
    %c0_13 = arith.constant 0 : index
    %17 = vector.load %arg1[%c0_12, %c0_13] : memref<256x256xf32, #tpu.memory_space<vmem>>, vector<256x256xf32>
    %18 = arith.addf %17, %16 : vector<256x256xf32>
    %c0_14 = arith.constant 0 : index
    %c0_15 = arith.constant 0 : index
    %19 = vector.load %arg6[%c0_14, %c0_15] : memref<256x256xf32, #tpu.memory_space<vmem>>, vector<256x256xf32>
    tpu.vector_store %arg6[%c0_14, %c0_15], %18 {strides = array<i32>} : memref<256x256xf32, #tpu.memory_space<vmem>>, vector<256x256xf32>,
    return
  }
  func.func @transform_0(%arg0: i32) -> (i32, i32) {
    %c0_i32 = arith.constant 0 : i32
    %c0_i32_0 = arith.constant 0 : i32
    return %arg0, %c0_i32 : i32, i32
  }
  func.func @transform_1(%arg0: i32) -> (i32, i32) {
    %c0_i32 = arith.constant 0 : i32
    %c0_i32_0 = arith.constant 0 : i32
    %c0_i32_1 = arith.constant 0 : i32
    return %c0_i32, %c0_i32_0 : i32, i32
  }
  func.func @transform_2(%arg0: i32) -> (i32, i32) {
    %c0_i32 = arith.constant 0 : i32
    %c0_i32_0 = arith.constant 0 : i32
    %c0_i32_1 = arith.constant 0 : i32
    return %c0_i32, %c0_i32_0 : i32, i32
  }
  func.func @transform_3(%arg0: i32) -> (i32, i32) {
    %c0_i32 = arith.constant 0 : i32
    %c0_i32_0 = arith.constant 0 : i32
    %c0_i32_1 = arith.constant 0 : i32
    return %c0_i32, %c0_i32_0 : i32, i32
  }
  func.func @transform_4(%arg0: i32) -> (i32, i32) {
    %c0_i32 = arith.constant 0 : i32
    %c0_i32_0 = arith.constant 0 : i32
    %c0_i32_1 = arith.constant 0 : i32
    return %c0_i32, %c0_i32_0 : i32, i32
  }
  func.func @transform_5(%arg0: i32) -> (i32, i32) {
    %c0_i32 = arith.constant 0 : i32
    %c0_i32_0 = arith.constant 0 : i32
    return %arg0, %c0_i32 : i32, i32
  }
}

</mosaic_0001>

<llo_original>
// kernel: tpu_custom_call.1
$region0: #{tpu_custom_call.1}
  #allocation0 [shape = 'u32[]', space=smem, size = 0x4, offset = 0x4, fixed_abs, tag = 'smem constant byte address 0x4 - core index']
  #allocation1 [shape = 'u32[72,128]{1,0:T(1,128)}', space=vmem, size = 0x9000, scoped, tag = 'internal scratch']
  %s0 = inlined_call_operand.hbm [shape: f32[256,256], index: 0, kind: input, shape index: {}]
  %s1 = inlined_call_operand.hbm [shape: bf16[256,256], index: 1, kind: input, shape index: {}]
  %s2 = inlined_call_operand.hbm [shape: f32[1,256], index: 2, kind: input, shape index: {}]
  %s3 = inlined_call_operand.hbm [shape: bf16[256,256], index: 3, kind: input, shape index: {}]
  %s4 = inlined_call_operand.vmem [shape: f32[1,256], index: 4, kind: input, shape index: {}]
  %s5 = inlined_call_operand.hbm [shape: f32[256,256], index: 5, kind: output, shape index: {}]
  %s6 = sld [smem:[#allocation0]]
  $region46: #{tpu_custom_call.1} parent=0
    _
  %s8 = ssub.s32 1, %s6
  %s9 = scalar_select 0, %s8, %s6
  $region1: #{tpu_custom_call.1} parent=0
    #allocation2 [shape = 'u8[262144]{0}', space=vmem, size = 0x40000, scoped, tag = 'input window, operand 0, single buffered']
    #allocation3 [shape = 's32[1]{0}', space=sflag, size = 0x4, scoped, tag = 'scoped memory for tpu_custom_call.1']
    #allocation4 [shape = 's32[1]{0}', space=sflag, size = 0x4, scoped, tag = 'scoped memory for tpu_custom_call.1']
    #allocation5 [shape = 'u8[131072]{0}', space=vmem, size = 0x20000, scoped, tag = 'input window, operand 1, single buffered']
    #allocation6 [shape = 's32[1]{0}', space=sflag, size = 0x4, scoped, tag = 'scoped memory for tpu_custom_call.1']
    #allocation7 [shape = 'u8[1024]{0}', space=vmem, size = 0x400, scoped, tag = 'input window, operand 2, single buffered']
    #allocation8 [shape = 'u8[131072]{0}', space=vmem, size = 0x20000, scoped, tag = 'input window, operand 3, single buffered']
    #allocation9 [shape = 's32[1]{0}', space=sflag, size = 0x4, scoped, tag = 'scoped memory for tpu_custom_call.1']
    #allocation10 [shape = 'u8[262144]{0}', space=vmem, size = 0x40000, scoped, tag = 'output window, operand 0, single buffered']
    %10 = vsyncpa [#allocation3], 0
    %11 = vsyncpa [#allocation6], 0
    %12 = vsyncpa [#allocation9], 0
    %13 = vsyncpa [#allocation4], 0
    // Predicated region
    $region2: #{tpu_custom_call.1} parent=1 // pred_check
      _
    $region3: #{tpu_custom_call.1} parent=1 // pred_check_branch
      %15 = sbr.rel (0) target = $region5
    $region4: #{tpu_custom_call.1} parent=1 // pred_region
      %17 = vsyncadd [#allocation3], 0
      %s18 = sshll.u32 %s0, 4
      %s19 = int_to_ptr.hbm [resolvable:$true] %s18
      %s20 = sshll.u32 [#allocation2], 4
      %s21 = int_to_ptr.vmem [resolvable:$true] %s20
      %26 = dma.hbm_to_vmem [thread:$0]  %s19, 8192, %s21, [#allocation3], 256, 256, 16
    $region5: #{tpu_custom_call.1} parent=1 // pred_fallthru
      _
    // Predicated region
    $region6: #{tpu_custom_call.1} parent=1 // pred_check
      _
    $region7: #{tpu_custom_call.1} parent=1 // pred_check_branch
      %28 = sbr.rel (0) target = $region9
    $region8: #{tpu_custom_call.1} parent=1 // pred_region
      %30 = vsyncadd [#allocation6], 0
      %s31 = sshll.u32 %s1, 4
      %s32 = int_to_ptr.hbm [resolvable:$true] %s31
      %s33 = sshll.u32 [#allocation5], 4
      %s34 = int_to_ptr.vmem [resolvable:$true] %s33
      %39 = dma.hbm_to_vmem [thread:$0]  %s32, 4096, %s34, [#allocation6], 128, 128, 8
    $region9: #{tpu_custom_call.1} parent=1 // pred_fallthru
      _
    // Predicated region
    $region10: #{tpu_custom_call.1} parent=1 // pred_check
      _
    $region11: #{tpu_custom_call.1} parent=1 // pred_check_branch
      %41 = sbr.rel (0) target = $region13
    $region12: #{tpu_custom_call.1} parent=1 // pred_region
      %43 = vsyncadd [#allocation6], 0
      %s45 = sshll.u32 %s2, 4
      %s46 = int_to_ptr.hbm [resolvable:$true] %s45
      %s47 = sshll.u32 [#allocation7], 4
      %s48 = int_to_ptr.vmem [resolvable:$true] %s47
      %50 = dma.hbm_to_vmem [thread:$0]  %s46, 32, %s48, [#allocation6]
    $region13: #{tpu_custom_call.1} parent=1 // pred_fallthru
      _
    // Predicated region
    $region14: #{tpu_custom_call.1} parent=1 // pred_check
      _
    $region15: #{tpu_custom_call.1} parent=1 // pred_check_branch
      %52 = sbr.rel (0) target = $region17
    $region16: #{tpu_custom_call.1} parent=1 // pred_region
      %54 = vsyncadd [#allocation9], 0
      %s55 = sshll.u32 %s3, 4
      %s56 = int_to_ptr.hbm [resolvable:$true] %s55
      %s57 = sshll.u32 [#allocation8], 4
      %s58 = int_to_ptr.vmem [resolvable:$true] %s57
      %63 = dma.hbm_to_vmem [thread:$0]  %s56, 4096, %s58, [#allocation9], 128, 128, 8
    $region17: #{tpu_custom_call.1} parent=1 // pred_fallthru
      _
    // Predicated region
    $region18: #{tpu_custom_call.1} parent=1 // pred_check
      _
    $region19: #{tpu_custom_call.1} parent=1 // pred_check_branch
      %65 = sbr.rel (0) target = $region21
    $region20: #{tpu_custom_call.1} parent=1 // pred_region
      _
    $region21: #{tpu_custom_call.1} parent=1 // pred_fallthru
      _
    // Predicated region
    $region22: #{tpu_custom_call.1} parent=1 // pred_check
      _
    $region23: #{tpu_custom_call.1} parent=1 // pred_check_branch
      %67 = sbr.rel (0) target = $region25
    $region24: #{tpu_custom_call.1} parent=1 // pred_region
      %69 = dma.done [#allocation3], 8192
    $region25: #{tpu_custom_call.1} parent=1 // pred_fallthru
      _
    // Predicated region
    $region26: #{tpu_custom_call.1} parent=1 // pred_check
      _
    $region27: #{tpu_custom_call.1} parent=1 // pred_check_branch
      %71 = sbr.rel (0) target = $region29
    $region28: #{tpu_custom_call.1} parent=1 // pred_region
      %73 = dma.done [#allocation6], 4096
    $region29: #{tpu_custom_call.1} parent=1 // pred_fallthru
      _
    // Predicated region
    $region30: #{tpu_custom_call.1} parent=1 // pred_check
      _
    $region31: #{tpu_custom_call.1} parent=1 // pred_check_branch
      %75 = sbr.rel (0) target = $region33
    $region32: #{tpu_custom_call.1} parent=1 // pred_region
      %77 = dma.done [#allocation6], 32
    $region33: #{tpu_custom_call.1} parent=1 // pred_fallthru
      _
    // Predicated region
    $region34: #{tpu_custom_call.1} parent=1 // pred_check
      _
    $region35: #{tpu_custom_call.1} parent=1 // pred_check_branch
      %79 = sbr.rel (0) target = $region37
    $region36: #{tpu_custom_call.1} parent=1 // pred_region
      %81 = dma.done [#allocation9], 4096
    $region37: #{tpu_custom_call.1} parent=1 // pred_fallthru
      _
    %v82 = vld [vmem:[#allocation2] sm:$0xff]
    %v83 = vld [vmem:[#allocation2 + $0x8] sm:$0xff]
    %v84 = vld [vmem:[#allocation2 + $0x10] sm:$0xff]
    %v85 = vld [vmem:[#allocation2 + $0x18] sm:$0xff]
    %v86 = vld [vmem:[#allocation2 + $0x20] sm:$0xff]
    %v87 = vld [vmem:[#allocation2 + $0x28] sm:$0xff]
    %v88 = vld [vmem:[#allocation2 + $0x30] sm:$0xff]
    %v89 = vld [vmem:[#allocation2 + $0x38] sm:$0xff]
    %v90 = vld [vmem:[#allocation2 + $0x40] sm:$0xff]
    %v91 = vld [vmem:[#allocation2 + $0x48] sm:$0xff]
    %v92 = vld [vmem:[#allocation2 + $0x50] sm:$0xff]
    %v93 = vld [vmem:[#allocation2 + $0x58] sm:$0xff]
    %v94 = vld [vmem:[#allocation2 + $0x60] sm:$0xff]
    %v95 = vld [vmem:[#allocation2 + $0x68] sm:$0xff]
    %v96 = vld [vmem:[#allocation2 + $0x70] sm:$0xff]
    %v97 = vld [vmem:[#allocation2 + $0x78] sm:$0xff]
    %v98 = vld [vmem:[#allocation2 + $0x80] sm:$0xff]
    %v99 = vld [vmem:[#allocation2 + $0x88] sm:$0xff]
    %v100 = vld [vmem:[#allocation2 + $0x90] sm:$0xff]
    %v101 = vld [vmem:[#allocation2 + $0x98] sm:$0xff]
    %v102 = vld [vmem:[#allocation2 + $0xa0] sm:$0xff]
    %v103 = vld [vmem:[#allocation2 + $0xa8] sm:$0xff]
    %v104 = vld [vmem:[#allocation2 + $0xb0] sm:$0xff]
    %v105 = vld [vmem:[#allocation2 + $0xb8] sm:$0xff]
    %v106 = vld [vmem:[#allocation2 + $0xc0] sm:$0xff]
    %v107 = vld [vmem:[#allocation2 + $0xc8] sm:$0xff]
    %v108 = vld [vmem:[#allocation2 + $0xd0] sm:$0xff]
    %v109 = vld [vmem:[#allocation2 + $0xd8] sm:$0xff]
    %v110 = vld [vmem:[#allocation2 + $0xe0] sm:$0xff]
    %v111 = vld [vmem:[#allocation2 + $0xe8] sm:$0xff]
    %v112 = vld [vmem:[#allocation2 + $0xf0] sm:$0xff]
    %v113 = vld [vmem:[#allocation2 + $0xf8] sm:$0xff]
    %v114 = vld [vmem:[#allocation2 + $0x100] sm:$0xff]
    %v115 = vld [vmem:[#allocation2 + $0x108] sm:$0xff]
    %v116 = vld [vmem:[#allocation2 + $0x110] sm:$0xff]
    %v117 = vld [vmem:[#allocation2 + $0x118] sm:$0xff]
    %v118 = vld [vmem:[#allocation2 + $0x120] sm:$0xff]
    %v119 = vld [vmem:[#allocation2 + $0x128] sm:$0xff]
    %v120 = vld [vmem:[#allocation2 + $0x130] sm:$0xff]
    %v121 = vld [vmem:[#allocation2 + $0x138] sm:$0xff]
    %v122 = vld [vmem:[#allocation2 + $0x140] sm:$0xff]
    %v123 = vld [vmem:[#allocation2 + $0x148] sm:$0xff]
    %v124 = vld [vmem:[#allocation2 + $0x150] sm:$0xff]
    %v125 = vld [vmem:[#allocation2 + $0x158] sm:$0xff]
    %v126 = vld [vmem:[#allocation2 + $0x160] sm:$0xff]
    %v127 = vld [vmem:[#allocation2 + $0x168] sm:$0xff]
    %v128 = vld [vmem:[#allocation2 + $0x170] sm:$0xff]
    %v129 = vld [vmem:[#allocation2 + $0x178] sm:$0xff]
    %v130 = vld [vmem:[#allocation2 + $0x180] sm:$0xff]
    %v131 = vld [vmem:[#allocation2 + $0x188] sm:$0xff]
    %v132 = vld [vmem:[#allocation2 + $0x190] sm:$0xff]
    %v133 = vld [vmem:[#allocation2 + $0x198] sm:$0xff]
    %v134 = vld [vmem:[#allocation2 + $0x1a0] sm:$0xff]
    %v135 = vld [vmem:[#allocation2 + $0x1a8] sm:$0xff]
    %v136 = vld [vmem:[#allocation2 + $0x1b0] sm:$0xff]
    %v137 = vld [vmem:[#allocation2 + $0x1b8] sm:$0xff]
    %v138 = vld [vmem:[#allocation2 + $0x1c0] sm:$0xff]
    %v139 = vld [vmem:[#allocation2 + $0x1c8] sm:$0xff]
    %v140 = vld [vmem:[#allocation2 + $0x1d0] sm:$0xff]
    %v141 = vld [vmem:[#allocation2 + $0x1d8] sm:$0xff]
    %v142 = vld [vmem:[#allocation2 + $0x1e0] sm:$0xff]
    %v143 = vld [vmem:[#allocation2 + $0x1e8] sm:$0xff]
    %v144 = vld [vmem:[#allocation2 + $0x1f0] sm:$0xff]
    %v145 = vld [vmem:[#allocation2 + $0x1f8] sm:$0xff]
    %v146 = vpack.c.bf16 %v84, %v82
    %v147 = vpack.c.bf16 %v85, %v83
    %v148 = vpack.c.bf16 %v88, %v86
    %v149 = vpack.c.bf16 %v89, %v87
    %v150 = vpack.c.bf16 %v92, %v90
    %v151 = vpack.c.bf16 %v93, %v91
    %v152 = vpack.c.bf16 %v96, %v94
    %v153 = vpack.c.bf16 %v97, %v95
    %v154 = vpack.c.bf16 %v100, %v98
    %v155 = vpack.c.bf16 %v101, %v99
    %v156 = vpack.c.bf16 %v104, %v102
    %v157 = vpack.c.bf16 %v105, %v103
    %v158 = vpack.c.bf16 %v108, %v106
    %v159 = vpack.c.bf16 %v109, %v107
    %v160 = vpack.c.bf16 %v112, %v110
    %v161 = vpack.c.bf16 %v113, %v111
    %v162 = vpack.c.bf16 %v116, %v114
    %v163 = vpack.c.bf16 %v117, %v115
    %v164 = vpack.c.bf16 %v120, %v118
    %v165 = vpack.c.bf16 %v121, %v119
    %v166 = vpack.c.bf16 %v124, %v122
    %v167 = vpack.c.bf16 %v125, %v123
    %v168 = vpack.c.bf16 %v128, %v126
    %v169 = vpack.c.bf16 %v129, %v127
    %v170 = vpack.c.bf16 %v132, %v130
    %v171 = vpack.c.bf16 %v133, %v131
    %v172 = vpack.c.bf16 %v136, %v134
    %v173 = vpack.c.bf16 %v137, %v135
    %v174 = vpack.c.bf16 %v140, %v138
    %v175 = vpack.c.bf16 %v141, %v139
    %v176 = vpack.c.bf16 %v144, %v142
    %v177 = vpack.c.bf16 %v145, %v143
    %v178 = vld [vmem:[#allocation5] sm:$0xff]
    %v179 = vld [vmem:[#allocation5 + $0x8] sm:$0xff]
    %v180 = vld [vmem:[#allocation5 + $0x10] sm:$0xff]
    %v181 = vld [vmem:[#allocation5 + $0x18] sm:$0xff]
    %v182 = vld [vmem:[#allocation5 + $0x20] sm:$0xff]
    %v183 = vld [vmem:[#allocation5 + $0x28] sm:$0xff]
    %v184 = vld [vmem:[#allocation5 + $0x30] sm:$0xff]
    %v185 = vld [vmem:[#allocation5 + $0x38] sm:$0xff]
    %v186 = vld [vmem:[#allocation5 + $0x40] sm:$0xff]
    %v187 = vld [vmem:[#allocation5 + $0x48] sm:$0xff]
    %v188 = vld [vmem:[#allocation5 + $0x50] sm:$0xff]
    %v189 = vld [vmem:[#allocation5 + $0x58] sm:$0xff]
    %v190 = vld [vmem:[#allocation5 + $0x60] sm:$0xff]
    %v191 = vld [vmem:[#allocation5 + $0x68] sm:$0xff]
    %v192 = vld [vmem:[#allocation5 + $0x70] sm:$0xff]
    %v193 = vld [vmem:[#allocation5 + $0x78] sm:$0xff]
    %v194 = vld [vmem:[#allocation5 + $0x80] sm:$0xff]
    %v195 = vld [vmem:[#allocation5 + $0x88] sm:$0xff]
    %v196 = vld [vmem:[#allocation5 + $0x90] sm:$0xff]
    %v197 = vld [vmem:[#allocation5 + $0x98] sm:$0xff]
    %v198 = vld [vmem:[#allocation5 + $0xa0] sm:$0xff]
    %v199 = vld [vmem:[#allocation5 + $0xa8] sm:$0xff]
    %v200 = vld [vmem:[#allocation5 + $0xb0] sm:$0xff]
    %v201 = vld [vmem:[#allocation5 + $0xb8] sm:$0xff]
    %v202 = vld [vmem:[#allocation5 + $0xc0] sm:$0xff]
    %v203 = vld [vmem:[#allocation5 + $0xc8] sm:$0xff]
    %v204 = vld [vmem:[#allocation5 + $0xd0] sm:$0xff]
    %v205 = vld [vmem:[#allocation5 + $0xd8] sm:$0xff]
    %v206 = vld [vmem:[#allocation5 + $0xe0] sm:$0xff]
    %v207 = vld [vmem:[#allocation5 + $0xe8] sm:$0xff]
    %v208 = vld [vmem:[#allocation5 + $0xf0] sm:$0xff]
    %v209 = vld [vmem:[#allocation5 + $0xf8] sm:$0xff]
    %v210 = vld [vmem:[#allocation7] sm:$0x3]
    %v212 = vperm.slane %v210, 0
    %v213 = vperm.slane %v210, 1
    %v248 = vunpack.c.l.b16 %v178
    %v249 = vunpack.c.h.b16 %v178
    %v250 = vunpack.c.l.b16 %v179
    %v251 = vunpack.c.h.b16 %v179
    %v252 = vunpack.c.l.b16 %v180
    %v253 = vunpack.c.h.b16 %v180
    %v254 = vunpack.c.l.b16 %v181
    %v255 = vunpack.c.h.b16 %v181
    %v256 = vunpack.c.l.b16 %v182
    %v257 = vunpack.c.h.b16 %v182
    %v258 = vunpack.c.l.b16 %v183
    %v259 = vunpack.c.h.b16 %v183
    %v260 = vunpack.c.l.b16 %v184
    %v261 = vunpack.c.h.b16 %v184
    %v262 = vunpack.c.l.b16 %v185
    %v263 = vunpack.c.h.b16 %v185
    %v264 = vunpack.c.l.b16 %v186
    %v265 = vunpack.c.h.b16 %v186
    %v266 = vunpack.c.l.b16 %v187
    %v267 = vunpack.c.h.b16 %v187
    %v268 = vunpack.c.l.b16 %v188
    %v269 = vunpack.c.h.b16 %v188
    %v270 = vunpack.c.l.b16 %v189
    %v271 = vunpack.c.h.b16 %v189
    %v272 = vunpack.c.l.b16 %v190
    %v273 = vunpack.c.h.b16 %v190
    %v274 = vunpack.c.l.b16 %v191
    %v275 = vunpack.c.h.b16 %v191
    %v276 = vunpack.c.l.b16 %v192
    %v277 = vunpack.c.h.b16 %v192
    %v278 = vunpack.c.l.b16 %v193
    %v279 = vunpack.c.h.b16 %v193
    %v280 = vunpack.c.l.b16 %v194
    %v281 = vunpack.c.h.b16 %v194
    %v282 = vunpack.c.l.b16 %v195
    %v283 = vunpack.c.h.b16 %v195
    %v284 = vunpack.c.l.b16 %v196
    %v285 = vunpack.c.h.b16 %v196
    %v286 = vunpack.c.l.b16 %v197
    %v287 = vunpack.c.h.b16 %v197
    %v288 = vunpack.c.l.b16 %v198
    %v289 = vunpack.c.h.b16 %v198
    %v290 = vunpack.c.l.b16 %v199
    %v291 = vunpack.c.h.b16 %v199
    %v292 = vunpack.c.l.b16 %v200
    %v293 = vunpack.c.h.b16 %v200
    %v294 = vunpack.c.l.b16 %v201
    %v295 = vunpack.c.h.b16 %v201
    %v296 = vunpack.c.l.b16 %v202
    %v297 = vunpack.c.h.b16 %v202
    %v298 = vunpack.c.l.b16 %v203
    %v299 = vunpack.c.h.b16 %v203
    %v300 = vunpack.c.l.b16 %v204
    %v301 = vunpack.c.h.b16 %v204
    %v302 = vunpack.c.l.b16 %v205
    %v303 = vunpack.c.h.b16 %v205
    %v304 = vunpack.c.l.b16 %v206
    %v305 = vunpack.c.h.b16 %v206
    %v306 = vunpack.c.l.b16 %v207
    %v307 = vunpack.c.h.b16 %v207
    %v308 = vunpack.c.l.b16 %v208
    %v309 = vunpack.c.h.b16 %v208
    %v310 = vunpack.c.l.b16 %v209
    %v311 = vunpack.c.h.b16 %v209
    %v312 = vpack.c.b16 %v250, %v248
    %v313 = vpack.c.b16 %v251, %v249
    %v314 = vpack.c.b16 %v254, %v252
    %v315 = vpack.c.b16 %v255, %v253
    %v316 = vpack.c.b16 %v258, %v256
    %v317 = vpack.c.b16 %v259, %v257
    %v318 = vpack.c.b16 %v262, %v260
    %v319 = vpack.c.b16 %v263, %v261
    %v320 = vpack.c.b16 %v266, %v264
    %v321 = vpack.c.b16 %v267, %v265
    %v322 = vpack.c.b16 %v270, %v268
    %v323 = vpack.c.b16 %v271, %v269
    %v324 = vpack.c.b16 %v274, %v272
    %v325 = vpack.c.b16 %v275, %v273
    %v326 = vpack.c.b16 %v278, %v276
    %v327 = vpack.c.b16 %v279, %v277
    %v328 = vpack.c.b16 %v282, %v280
    %v329 = vpack.c.b16 %v283, %v281
    %v330 = vpack.c.b16 %v286, %v284
    %v331 = vpack.c.b16 %v287, %v285
    %v332 = vpack.c.b16 %v290, %v288
    %v333 = vpack.c.b16 %v291, %v289
    %v334 = vpack.c.b16 %v294, %v292
    %v335 = vpack.c.b16 %v295, %v293
    %v336 = vpack.c.b16 %v298, %v296
    %v337 = vpack.c.b16 %v299, %v297
    %v338 = vpack.c.b16 %v302, %v300
    %v339 = vpack.c.b16 %v303, %v301
    %v340 = vpack.c.b16 %v306, %v304
    %v341 = vpack.c.b16 %v307, %v305
    %v342 = vpack.c.b16 %v310, %v308
    %v343 = vpack.c.b16 %v311, %v309
    %376 = vmatpush.bf16.msra.mxu0 %v326
    %377 = vmatpush.bf16.msra.mxu0 %v324
    %378 = vmatpush.bf16.msra.mxu0 %v322
    %379 = vmatpush.bf16.msra.mxu0 %v320
    %380 = vmatpush.bf16.msra.mxu0 %v318
    %381 = vmatpush.bf16.msra.mxu0 %v316
    %382 = vmatpush.bf16.msra.mxu0 %v314
    %383 = vmatpush.bf16.msra.mxu0 %v312
    %384 = vmatmul.bf16.gmra.mxu0 %v146
    %v385 = vpop.f32.mrf.mxu0
    %v386 = vadd.f32 %v212, %v385
    %v387 = vpop.f32.mrf.mxu0
    %v388 = vadd.f32 %v212, %v387
    %389 = vmatmul.bf16.gmra.mxu0 %v148
    %v390 = vpop.f32.mrf.mxu0
    %v391 = vadd.f32 %v212, %v390
    %v392 = vpop.f32.mrf.mxu0
    %v393 = vadd.f32 %v212, %v392
    %394 = vmatmul.bf16.gmra.mxu0 %v150
    %v395 = vpop.f32.mrf.mxu0
    %v396 = vadd.f32 %v212, %v395
    %v397 = vpop.f32.mrf.mxu0
    %v398 = vadd.f32 %v212, %v397
    %399 = vmatmul.bf16.gmra.mxu0 %v152
    %v400 = vpop.f32.mrf.mxu0
    %v401 = vadd.f32 %v212, %v400
    %v402 = vpop.f32.mrf.mxu0
    %v403 = vadd.f32 %v212, %v402
    %404 = vmatmul.bf16.gmra.mxu0 %v154
    %v405 = vpop.f32.mrf.mxu0
    %v406 = vadd.f32 %v212, %v405
    %v407 = vpop.f32.mrf.mxu0
    %v408 = vadd.f32 %v212, %v407
    %409 = vmatmul.bf16.gmra.mxu0 %v156
    %v410 = vpop.f32.mrf.mxu0
    %v411 = vadd.f32 %v212, %v410
    %v412 = vpop.f32.mrf.mxu0
    %v413 = vadd.f32 %v212, %v412
    %414 = vmatmul.bf16.gmra.mxu0 %v158
    %v415 = vpop.f32.mrf.mxu0
    %v416 = vadd.f32 %v212, %v415
    %v417 = vpop.f32.mrf.mxu0
    %v418 = vadd.f32 %v212, %v417
    %419 = vmatmul.bf16.gmra.mxu0 %v160
    %v420 = vpop.f32.mrf.mxu0
    %v421 = vadd.f32 %v212, %v420
    %v422 = vpop.f32.mrf.mxu0
    %v423 = vadd.f32 %v212, %v422
    %424 = vmatmul.bf16.gmra.mxu0 %v162
    %v425 = vpop.f32.mrf.mxu0
    %v426 = vadd.f32 %v212, %v425
    %v427 = vpop.f32.mrf.mxu0
    %v428 = vadd.f32 %v212, %v427
    %429 = vmatmul.bf16.gmra.mxu0 %v164
    %v430 = vpop.f32.mrf.mxu0
    %v431 = vadd.f32 %v212, %v430
    %v432 = vpop.f32.mrf.mxu0
    %v433 = vadd.f32 %v212, %v432
    %434 = vmatmul.bf16.gmra.mxu0 %v166
    %v435 = vpop.f32.mrf.mxu0
    %v436 = vadd.f32 %v212, %v435
    %v437 = vpop.f32.mrf.mxu0
    %v438 = vadd.f32 %v212, %v437
    %439 = vmatmul.bf16.gmra.mxu0 %v168
    %v440 = vpop.f32.mrf.mxu0
    %v441 = vadd.f32 %v212, %v440
    %v442 = vpop.f32.mrf.mxu0
    %v443 = vadd.f32 %v212, %v442
    %444 = vmatmul.bf16.gmra.mxu0 %v170
    %v445 = vpop.f32.mrf.mxu0
    %v446 = vadd.f32 %v212, %v445
    %v447 = vpop.f32.mrf.mxu0
    %v448 = vadd.f32 %v212, %v447
    %449 = vmatmul.bf16.gmra.mxu0 %v172
    %v450 = vpop.f32.mrf.mxu0
    %v451 = vadd.f32 %v212, %v450
    %v452 = vpop.f32.mrf.mxu0
    %v453 = vadd.f32 %v212, %v452
    %454 = vmatmul.bf16.gmra.mxu0 %v174
    %v455 = vpop.f32.mrf.mxu0
    %v456 = vadd.f32 %v212, %v455
    %v457 = vpop.f32.mrf.mxu0
    %v458 = vadd.f32 %v212, %v457
    %459 = vmatmul.bf16.gmra.mxu0 %v176
    %v460 = vpop.f32.mrf.mxu0
    %v461 = vadd.f32 %v212, %v460
    %v462 = vpop.f32.mrf.mxu0
    %v463 = vadd.f32 %v212, %v462
    %464 = vdwg.mxu0
    %465 = vmatpush.bf16.msra.mxu0 %v342
    %466 = vmatpush.bf16.msra.mxu0 %v340
    %467 = vmatpush.bf16.msra.mxu0 %v338
    %468 = vmatpush.bf16.msra.mxu0 %v336
    %469 = vmatpush.bf16.msra.mxu0 %v334
    %470 = vmatpush.bf16.msra.mxu0 %v332
    %471 = vmatpush.bf16.msra.mxu0 %v330
    %472 = vmatpush.bf16.msra.mxu0 %v328
    %473 = vmatmul.bf16.gmra.mxu0 %v147
    %v474 = vpop.f32.mrf.mxu0
    %v475 = vadd.f32 %v386, %v474
    %v476 = vpop.f32.mrf.mxu0
    %v477 = vadd.f32 %v388, %v476
    %478 = vmatmul.bf16.gmra.mxu0 %v149
    %v479 = vpop.f32.mrf.mxu0
    %v480 = vadd.f32 %v391, %v479
    %v481 = vpop.f32.mrf.mxu0
    %v482 = vadd.f32 %v393, %v481
    %483 = vmatmul.bf16.gmra.mxu0 %v151
    %v484 = vpop.f32.mrf.mxu0
    %v485 = vadd.f32 %v396, %v484
    %v486 = vpop.f32.mrf.mxu0
    %v487 = vadd.f32 %v398, %v486
    %488 = vmatmul.bf16.gmra.mxu0 %v153
    %v489 = vpop.f32.mrf.mxu0
    %v490 = vadd.f32 %v401, %v489
    %v491 = vpop.f32.mrf.mxu0
    %v492 = vadd.f32 %v403, %v491
    %493 = vmatmul.bf16.gmra.mxu0 %v155
    %v494 = vpop.f32.mrf.mxu0
    %v495 = vadd.f32 %v406, %v494
    %v496 = vpop.f32.mrf.mxu0
    %v497 = vadd.f32 %v408, %v496
    %498 = vmatmul.bf16.gmra.mxu0 %v157
    %v499 = vpop.f32.mrf.mxu0
    %v500 = vadd.f32 %v411, %v499
    %v501 = vpop.f32.mrf.mxu0
    %v502 = vadd.f32 %v413, %v501
    %503 = vmatmul.bf16.gmra.mxu0 %v159
    %v504 = vpop.f32.mrf.mxu0
    %v505 = vadd.f32 %v416, %v504
    %v506 = vpop.f32.mrf.mxu0
    %v507 = vadd.f32 %v418, %v506
    %508 = vmatmul.bf16.gmra.mxu0 %v161
    %v509 = vpop.f32.mrf.mxu0
    %v510 = vadd.f32 %v421, %v509
    %v511 = vpop.f32.mrf.mxu0
    %v512 = vadd.f32 %v423, %v511
    %513 = vmatmul.bf16.gmra.mxu0 %v163
    %v514 = vpop.f32.mrf.mxu0
    %v515 = vadd.f32 %v426, %v514
    %v516 = vpop.f32.mrf.mxu0
    %v517 = vadd.f32 %v428, %v516
    %518 = vmatmul.bf16.gmra.mxu0 %v165
    %v519 = vpop.f32.mrf.mxu0
    %v520 = vadd.f32 %v431, %v519
    %v521 = vpop.f32.mrf.mxu0
    %v522 = vadd.f32 %v433, %v521
    %523 = vmatmul.bf16.gmra.mxu0 %v167
    %v524 = vpop.f32.mrf.mxu0
    %v525 = vadd.f32 %v436, %v524
    %v526 = vpop.f32.mrf.mxu0
    %v527 = vadd.f32 %v438, %v526
    %528 = vmatmul.bf16.gmra.mxu0 %v169
    %v529 = vpop.f32.mrf.mxu0
    %v530 = vadd.f32 %v441, %v529
    %v531 = vpop.f32.mrf.mxu0
    %v532 = vadd.f32 %v443, %v531
    %533 = vmatmul.bf16.gmra.mxu0 %v171
    %v534 = vpop.f32.mrf.mxu0
    %v535 = vadd.f32 %v446, %v534
    %v536 = vpop.f32.mrf.mxu0
    %v537 = vadd.f32 %v448, %v536
    %538 = vmatmul.bf16.gmra.mxu0 %v173
    %v539 = vpop.f32.mrf.mxu0
    %v540 = vadd.f32 %v451, %v539
    %v541 = vpop.f32.mrf.mxu0
    %v542 = vadd.f32 %v453, %v541
    %543 = vmatmul.bf16.gmra.mxu0 %v175
    %v544 = vpop.f32.mrf.mxu0
    %v545 = vadd.f32 %v456, %v544
    %v546 = vpop.f32.mrf.mxu0
    %v547 = vadd.f32 %v458, %v546
    %548 = vmatmul.bf16.gmra.mxu0 %v177
    %v549 = vpop.f32.mrf.mxu0
    %v550 = vadd.f32 %v461, %v549
    %v551 = vpop.f32.mrf.mxu0
    %v552 = vadd.f32 %v463, %v551
    %553 = vdwg.mxu0
    %554 = vmatpush.bf16.msra.mxu0 %v327
    %555 = vmatpush.bf16.msra.mxu0 %v325
    %556 = vmatpush.bf16.msra.mxu0 %v323
    %557 = vmatpush.bf16.msra.mxu0 %v321
    %558 = vmatpush.bf16.msra.mxu0 %v319
    %559 = vmatpush.bf16.msra.mxu0 %v317
    %560 = vmatpush.bf16.msra.mxu0 %v315
    %561 = vmatpush.bf16.msra.mxu0 %v313
    %562 = vmatmul.bf16.gmra.mxu0 %v146
    %v563 = vpop.f32.mrf.mxu0
    %v564 = vadd.f32 %v213, %v563
    %v565 = vpop.f32.mrf.mxu0
    %v566 = vadd.f32 %v213, %v565
    %567 = vmatmul.bf16.gmra.mxu0 %v148
    %v568 = vpop.f32.mrf.mxu0
    %v569 = vadd.f32 %v213, %v568
    %v570 = vpop.f32.mrf.mxu0
    %v571 = vadd.f32 %v213, %v570
    %572 = vmatmul.bf16.gmra.mxu0 %v150
    %v573 = vpop.f32.mrf.mxu0
    %v574 = vadd.f32 %v213, %v573
    %v575 = vpop.f32.mrf.mxu0
    %v576 = vadd.f32 %v213, %v575
    %577 = vmatmul.bf16.gmra.mxu0 %v152
    %v578 = vpop.f32.mrf.mxu0
    %v579 = vadd.f32 %v213, %v578
    %v580 = vpop.f32.mrf.mxu0
    %v581 = vadd.f32 %v213, %v580
    %582 = vmatmul.bf16.gmra.mxu0 %v154
    %v583 = vpop.f32.mrf.mxu0
    %v584 = vadd.f32 %v213, %v583
    %v585 = vpop.f32.mrf.mxu0
    %v586 = vadd.f32 %v213, %v585
    %587 = vmatmul.bf16.gmra.mxu0 %v156
    %v588 = vpop.f32.mrf.mxu0
    %v589 = vadd.f32 %v213, %v588
    %v590 = vpop.f32.mrf.mxu0
    %v591 = vadd.f32 %v213, %v590
    %592 = vmatmul.bf16.gmra.mxu0 %v158
    %v593 = vpop.f32.mrf.mxu0
    %v594 = vadd.f32 %v213, %v593
    %v595 = vpop.f32.mrf.mxu0
    %v596 = vadd.f32 %v213, %v595
    %597 = vmatmul.bf16.gmra.mxu0 %v160
    %v598 = vpop.f32.mrf.mxu0
    %v599 = vadd.f32 %v213, %v598
    %v600 = vpop.f32.mrf.mxu0
    %v601 = vadd.f32 %v213, %v600
    %602 = vmatmul.bf16.gmra.mxu0 %v162
    %v603 = vpop.f32.mrf.mxu0
    %v604 = vadd.f32 %v213, %v603
    %v605 = vpop.f32.mrf.mxu0
    %v606 = vadd.f32 %v213, %v605
    %607 = vmatmul.bf16.gmra.mxu0 %v164
    %v608 = vpop.f32.mrf.mxu0
    %v609 = vadd.f32 %v213, %v608
    %v610 = vpop.f32.mrf.mxu0
    %v611 = vadd.f32 %v213, %v610
    %612 = vmatmul.bf16.gmra.mxu0 %v166
    %v613 = vpop.f32.mrf.mxu0
    %v614 = vadd.f32 %v213, %v613
    %v615 = vpop.f32.mrf.mxu0
    %v616 = vadd.f32 %v213, %v615
    %617 = vmatmul.bf16.gmra.mxu0 %v168
    %v618 = vpop.f32.mrf.mxu0
    %v619 = vadd.f32 %v213, %v618
    %v620 = vpop.f32.mrf.mxu0
    %v621 = vadd.f32 %v213, %v620
    %622 = vmatmul.bf16.gmra.mxu0 %v170
    %v623 = vpop.f32.mrf.mxu0
    %v624 = vadd.f32 %v213, %v623
    %v625 = vpop.f32.mrf.mxu0
    %v626 = vadd.f32 %v213, %v625
    %627 = vmatmul.bf16.gmra.mxu0 %v172
    %v628 = vpop.f32.mrf.mxu0
    %v629 = vadd.f32 %v213, %v628
    %v630 = vpop.f32.mrf.mxu0
    %v631 = vadd.f32 %v213, %v630
    %632 = vmatmul.bf16.gmra.mxu0 %v174
    %v633 = vpop.f32.mrf.mxu0
    %v634 = vadd.f32 %v213, %v633
    %v635 = vpop.f32.mrf.mxu0
    %v636 = vadd.f32 %v213, %v635
    %637 = vmatmul.bf16.gmra.mxu0 %v176
    %v638 = vpop.f32.mrf.mxu0
    %v639 = vadd.f32 %v213, %v638
    %v640 = vpop.f32.mrf.mxu0
    %v641 = vadd.f32 %v213, %v640
    %642 = vdwg.mxu0
    %643 = vmatpush.bf16.msra.mxu0 %v343
    %644 = vmatpush.bf16.msra.mxu0 %v341
    %645 = vmatpush.bf16.msra.mxu0 %v339
    %646 = vmatpush.bf16.msra.mxu0 %v337
    %647 = vmatpush.bf16.msra.mxu0 %v335
    %648 = vmatpush.bf16.msra.mxu0 %v333
    %649 = vmatpush.bf16.msra.mxu0 %v331
    %650 = vmatpush.bf16.msra.mxu0 %v329
    %651 = vmatmul.bf16.gmra.mxu0 %v147
    %v652 = vpop.f32.mrf.mxu0
    %v653 = vadd.f32 %v564, %v652
    %v654 = vpop.f32.mrf.mxu0
    %v655 = vadd.f32 %v566, %v654
    %656 = vmatmul.bf16.gmra.mxu0 %v149
    %v657 = vpop.f32.mrf.mxu0
    %v658 = vadd.f32 %v569, %v657
    %v659 = vpop.f32.mrf.mxu0
    %v660 = vadd.f32 %v571, %v659
    %661 = vmatmul.bf16.gmra.mxu0 %v151
    %v662 = vpop.f32.mrf.mxu0
    %v663 = vadd.f32 %v574, %v662
    %v664 = vpop.f32.mrf.mxu0
    %v665 = vadd.f32 %v576, %v664
    %666 = vmatmul.bf16.gmra.mxu0 %v153
    %v667 = vpop.f32.mrf.mxu0
    %v668 = vadd.f32 %v579, %v667
    %v669 = vpop.f32.mrf.mxu0
    %v670 = vadd.f32 %v581, %v669
    %671 = vmatmul.bf16.gmra.mxu0 %v155
    %v672 = vpop.f32.mrf.mxu0
    %v673 = vadd.f32 %v584, %v672
    %v674 = vpop.f32.mrf.mxu0
    %v675 = vadd.f32 %v586, %v674
    %676 = vmatmul.bf16.gmra.mxu0 %v157
    %v677 = vpop.f32.mrf.mxu0
    %v678 = vadd.f32 %v589, %v677
    %v679 = vpop.f32.mrf.mxu0
    %v680 = vadd.f32 %v591, %v679
    %681 = vmatmul.bf16.gmra.mxu0 %v159
    %v682 = vpop.f32.mrf.mxu0
    %v683 = vadd.f32 %v594, %v682
    %v684 = vpop.f32.mrf.mxu0
    %v685 = vadd.f32 %v596, %v684
    %686 = vmatmul.bf16.gmra.mxu0 %v161
    %v687 = vpop.f32.mrf.mxu0
    %v688 = vadd.f32 %v599, %v687
    %v689 = vpop.f32.mrf.mxu0
    %v690 = vadd.f32 %v601, %v689
    %691 = vmatmul.bf16.gmra.mxu0 %v163
    %v692 = vpop.f32.mrf.mxu0
    %v693 = vadd.f32 %v604, %v692
    %v694 = vpop.f32.mrf.mxu0
    %v695 = vadd.f32 %v606, %v694
    %696 = vmatmul.bf16.gmra.mxu0 %v165
    %v697 = vpop.f32.mrf.mxu0
    %v698 = vadd.f32 %v609, %v697
    %v699 = vpop.f32.mrf.mxu0
    %v700 = vadd.f32 %v611, %v699
    %701 = vmatmul.bf16.gmra.mxu0 %v167
    %v702 = vpop.f32.mrf.mxu0
    %v703 = vadd.f32 %v614, %v702
    %v704 = vpop.f32.mrf.mxu0
    %v705 = vadd.f32 %v616, %v704
    %706 = vmatmul.bf16.gmra.mxu0 %v169
    %v707 = vpop.f32.mrf.mxu0
    %v708 = vadd.f32 %v619, %v707
    %v709 = vpop.f32.mrf.mxu0
    %v710 = vadd.f32 %v621, %v709
    %711 = vmatmul.bf16.gmra.mxu0 %v171
    %v712 = vpop.f32.mrf.mxu0
    %v713 = vadd.f32 %v624, %v712
    %v714 = vpop.f32.mrf.mxu0
    %v715 = vadd.f32 %v626, %v714
    %716 = vmatmul.bf16.gmra.mxu0 %v173
    %v717 = vpop.f32.mrf.mxu0
    %v718 = vadd.f32 %v629, %v717
    %v719 = vpop.f32.mrf.mxu0
    %v720 = vadd.f32 %v631, %v719
    %721 = vmatmul.bf16.gmra.mxu0 %v175
    %v722 = vpop.f32.mrf.mxu0
    %v723 = vadd.f32 %v634, %v722
    %v724 = vpop.f32.mrf.mxu0
    %v725 = vadd.f32 %v636, %v724
    %726 = vmatmul.bf16.gmra.mxu0 %v177
    %v727 = vpop.f32.mrf.mxu0
    %v728 = vadd.f32 %v639, %v727
    %v729 = vpop.f32.mrf.mxu0
    %v730 = vadd.f32 %v641, %v729
    %731 = vdwg.mxu0
    %v732 = vmax.f32 %v475, 0.0
    %v733 = vmax.f32 %v653, 0.0
    %v734 = vmax.f32 %v477, 0.0
    %v735 = vmax.f32 %v655, 0.0
    %v736 = vmax.f32 %v480, 0.0
    %v737 = vmax.f32 %v658, 0.0
    %v738 = vmax.f32 %v482, 0.0
    %v739 = vmax.f32 %v660, 0.0
    %v740 = vmax.f32 %v485, 0.0
    %v741 = vmax.f32 %v663, 0.0
    %v742 = vmax.f32 %v487, 0.0
    %v743 = vmax.f32 %v665, 0.0
    %v744 = vmax.f32 %v490, 0.0
    %v745 = vmax.f32 %v668, 0.0
    %v746 = vmax.f32 %v492, 0.0
    %v747 = vmax.f32 %v670, 0.0
    %v748 = vmax.f32 %v495, 0.0
    %v749 = vmax.f32 %v673, 0.0
    %v750 = vmax.f32 %v497, 0.0
    %v751 = vmax.f32 %v675, 0.0
    %v752 = vmax.f32 %v500, 0.0
    %v753 = vmax.f32 %v678, 0.0
    %v754 = vmax.f32 %v502, 0.0
    %v755 = vmax.f32 %v680, 0.0
    %v756 = vmax.f32 %v505, 0.0
    %v757 = vmax.f32 %v683, 0.0
    %v758 = vmax.f32 %v507, 0.0
    %v759 = vmax.f32 %v685, 0.0
    %v760 = vmax.f32 %v510, 0.0
    %v761 = vmax.f32 %v688, 0.0
    %v762 = vmax.f32 %v512, 0.0
    %v763 = vmax.f32 %v690, 0.0
    %v764 = vmax.f32 %v515, 0.0
    %v765 = vmax.f32 %v693, 0.0
    %v766 = vmax.f32 %v517, 0.0
    %v767 = vmax.f32 %v695, 0.0
    %v768 = vmax.f32 %v520, 0.0
    %v769 = vmax.f32 %v698, 0.0
    %v770 = vmax.f32 %v522, 0.0
    %v771 = vmax.f32 %v700, 0.0
    %v772 = vmax.f32 %v525, 0.0
    %v773 = vmax.f32 %v703, 0.0
    %v774 = vmax.f32 %v527, 0.0
    %v775 = vmax.f32 %v705, 0.0
    %v776 = vmax.f32 %v530, 0.0
    %v777 = vmax.f32 %v708, 0.0
    %v778 = vmax.f32 %v532, 0.0
    %v779 = vmax.f32 %v710, 0.0
    %v780 = vmax.f32 %v535, 0.0
    %v781 = vmax.f32 %v713, 0.0
    %v782 = vmax.f32 %v537, 0.0
    %v783 = vmax.f32 %v715, 0.0
    %v784 = vmax.f32 %v540, 0.0
    %v785 = vmax.f32 %v718, 0.0
    %v786 = vmax.f32 %v542, 0.0
    %v787 = vmax.f32 %v720, 0.0
    %v788 = vmax.f32 %v545, 0.0
    %v789 = vmax.f32 %v723, 0.0
    %v790 = vmax.f32 %v547, 0.0
    %v791 = vmax.f32 %v725, 0.0
    %v792 = vmax.f32 %v550, 0.0
    %v793 = vmax.f32 %v728, 0.0
    %v794 = vmax.f32 %v552, 0.0
    %v795 = vmax.f32 %v730, 0.0
    %v796 = vpack.c.bf16 %v734, %v732
    %v797 = vpack.c.bf16 %v735, %v733
    %v798 = vpack.c.bf16 %v738, %v736
    %v799 = vpack.c.bf16 %v739, %v737
    %v800 = vpack.c.bf16 %v742, %v740
    %v801 = vpack.c.bf16 %v743, %v741
    %v802 = vpack.c.bf16 %v746, %v744
    %v803 = vpack.c.bf16 %v747, %v745
    %v804 = vpack.c.bf16 %v750, %v748
    %v805 = vpack.c.bf16 %v751, %v749
    %v806 = vpack.c.bf16 %v754, %v752
    %v807 = vpack.c.bf16 %v755, %v753
    %v808 = vpack.c.bf16 %v758, %v756
    %v809 = vpack.c.bf16 %v759, %v757
    %v810 = vpack.c.bf16 %v762, %v760
    %v811 = vpack.c.bf16 %v763, %v761
    %v812 = vpack.c.bf16 %v766, %v764
    %v813 = vpack.c.bf16 %v767, %v765
    %v814 = vpack.c.bf16 %v770, %v768
    %v815 = vpack.c.bf16 %v771, %v769
    %v816 = vpack.c.bf16 %v774, %v772
    %v817 = vpack.c.bf16 %v775, %v773
    %v818 = vpack.c.bf16 %v778, %v776
    %v819 = vpack.c.bf16 %v779, %v777
    %v820 = vpack.c.bf16 %v782, %v780
    %v821 = vpack.c.bf16 %v783, %v781
    %v822 = vpack.c.bf16 %v786, %v784
    %v823 = vpack.c.bf16 %v787, %v785
    %v824 = vpack.c.bf16 %v790, %v788
    %v825 = vpack.c.bf16 %v791, %v789
    %v826 = vpack.c.bf16 %v794, %v792
    %v827 = vpack.c.bf16 %v795, %v793
    %v828 = vld [vmem:[#allocation8] sm:$0xff]
    %v829 = vld [vmem:[#allocation8 + $0x8] sm:$0xff]
    %v830 = vld [vmem:[#allocation8 + $0x10] sm:$0xff]
    %v831 = vld [vmem:[#allocation8 + $0x18] sm:$0xff]
    %v832 = vld [vmem:[#allocation8 + $0x20] sm:$0xff]
    %v833 = vld [vmem:[#allocation8 + $0x28] sm:$0xff]
    %v834 = vld [vmem:[#allocation8 + $0x30] sm:$0xff]
    %v835 = vld [vmem:[#allocation8 + $0x38] sm:$0xff]
    %v836 = vld [vmem:[#allocation8 + $0x40] sm:$0xff]
    %v837 = vld [vmem:[#allocation8 + $0x48] sm:$0xff]
    %v838 = vld [vmem:[#allocation8 + $0x50] sm:$0xff]
    %v839 = vld [vmem:[#allocation8 + $0x58] sm:$0xff]
    %v840 = vld [vmem:[#allocation8 + $0x60] sm:$0xff]
    %v841 = vld [vmem:[#allocation8 + $0x68] sm:$0xff]
    %v842 = vld [vmem:[#allocation8 + $0x70] sm:$0xff]
    %v843 = vld [vmem:[#allocation8 + $0x78] sm:$0xff]
    %v844 = vld [vmem:[#allocation8 + $0x80] sm:$0xff]
    %v845 = vld [vmem:[#allocation8 + $0x88] sm:$0xff]
    %v846 = vld [vmem:[#allocation8 + $0x90] sm:$0xff]
    %v847 = vld [vmem:[#allocation8 + $0x98] sm:$0xff]
    %v848 = vld [vmem:[#allocation8 + $0xa0] sm:$0xff]
    %v849 = vld [vmem:[#allocation8 + $0xa8] sm:$0xff]
    %v850 = vld [vmem:[#allocation8 + $0xb0] sm:$0xff]
    %v851 = vld [vmem:[#allocation8 + $0xb8] sm:$0xff]
    %v852 = vld [vmem:[#allocation8 + $0xc0] sm:$0xff]
    %v853 = vld [vmem:[#allocation8 + $0xc8] sm:$0xff]
    %v854 = vld [vmem:[#allocation8 + $0xd0] sm:$0xff]
    %v855 = vld [vmem:[#allocation8 + $0xd8] sm:$0xff]
    %v856 = vld [vmem:[#allocation8 + $0xe0] sm:$0xff]
    %v857 = vld [vmem:[#allocation8 + $0xe8] sm:$0xff]
    %v858 = vld [vmem:[#allocation8 + $0xf0] sm:$0xff]
    %v859 = vld [vmem:[#allocation8 + $0xf8] sm:$0xff]
    %v860 = vld [vmem:[%s4] sm:$0x3]
    %v862 = vperm.slane %v860, 0
    %v863 = vperm.slane %v860, 1
    %v898 = vunpack.c.l.b16 %v828
    %v899 = vunpack.c.h.b16 %v828
    %v900 = vunpack.c.l.b16 %v829
    %v901 = vunpack.c.h.b16 %v829
    %v902 = vunpack.c.l.b16 %v830
    %v903 = vunpack.c.h.b16 %v830
    %v904 = vunpack.c.l.b16 %v831
    %v905 = vunpack.c.h.b16 %v831
    %v906 = vunpack.c.l.b16 %v832
    %v907 = vunpack.c.h.b16 %v832
    %v908 = vunpack.c.l.b16 %v833
    %v909 = vunpack.c.h.b16 %v833
    %v910 = vunpack.c.l.b16 %v834
    %v911 = vunpack.c.h.b16 %v834
    %v912 = vunpack.c.l.b16 %v835
    %v913 = vunpack.c.h.b16 %v835
    %v914 = vunpack.c.l.b16 %v836
    %v915 = vunpack.c.h.b16 %v836
    %v916 = vunpack.c.l.b16 %v837
    %v917 = vunpack.c.h.b16 %v837
    %v918 = vunpack.c.l.b16 %v838
    %v919 = vunpack.c.h.b16 %v838
    %v920 = vunpack.c.l.b16 %v839
    %v921 = vunpack.c.h.b16 %v839
    %v922 = vunpack.c.l.b16 %v840
    %v923 = vunpack.c.h.b16 %v840
    %v924 = vunpack.c.l.b16 %v841
    %v925 = vunpack.c.h.b16 %v841
    %v926 = vunpack.c.l.b16 %v842
    %v927 = vunpack.c.h.b16 %v842
    %v928 = vunpack.c.l.b16 %v843
    %v929 = vunpack.c.h.b16 %v843
    %v930 = vunpack.c.l.b16 %v844
    %v931 = vunpack.c.h.b16 %v844
    %v932 = vunpack.c.l.b16 %v845
    %v933 = vunpack.c.h.b16 %v845
    %v934 = vunpack.c.l.b16 %v846
    %v935 = vunpack.c.h.b16 %v846
    %v936 = vunpack.c.l.b16 %v847
    %v937 = vunpack.c.h.b16 %v847
    %v938 = vunpack.c.l.b16 %v848
    %v939 = vunpack.c.h.b16 %v848
    %v940 = vunpack.c.l.b16 %v849
    %v941 = vunpack.c.h.b16 %v849
    %v942 = vunpack.c.l.b16 %v850
    %v943 = vunpack.c.h.b16 %v850
    %v944 = vunpack.c.l.b16 %v851
    %v945 = vunpack.c.h.b16 %v851
    %v946 = vunpack.c.l.b16 %v852
    %v947 = vunpack.c.h.b16 %v852
    %v948 = vunpack.c.l.b16 %v853
    %v949 = vunpack.c.h.b16 %v853
    %v950 = vunpack.c.l.b16 %v854
    %v951 = vunpack.c.h.b16 %v854
    %v952 = vunpack.c.l.b16 %v855
    %v953 = vunpack.c.h.b16 %v855
    %v954 = vunpack.c.l.b16 %v856
    %v955 = vunpack.c.h.b16 %v856
    %v956 = vunpack.c.l.b16 %v857
    %v957 = vunpack.c.h.b16 %v857
    %v958 = vunpack.c.l.b16 %v858
    %v959 = vunpack.c.h.b16 %v858
    %v960 = vunpack.c.l.b16 %v859
    %v961 = vunpack.c.h.b16 %v859
    %v962 = vpack.c.b16 %v900, %v898
    %v963 = vpack.c.b16 %v901, %v899
    %v964 = vpack.c.b16 %v904, %v902
    %v965 = vpack.c.b16 %v905, %v903
    %v966 = vpack.c.b16 %v908, %v906
    %v967 = vpack.c.b16 %v909, %v907
    %v968 = vpack.c.b16 %v912, %v910
    %v969 = vpack.c.b16 %v913, %v911
    %v970 = vpack.c.b16 %v916, %v914
    %v971 = vpack.c.b16 %v917, %v915
    %v972 = vpack.c.b16 %v920, %v918
    %v973 = vpack.c.b16 %v921, %v919
    %v974 = vpack.c.b16 %v924, %v922
    %v975 = vpack.c.b16 %v925, %v923
    %v976 = vpack.c.b16 %v928, %v926
    %v977 = vpack.c.b16 %v929, %v927
    %v978 = vpack.c.b16 %v932, %v930
    %v979 = vpack.c.b16 %v933, %v931
    %v980 = vpack.c.b16 %v936, %v934
    %v981 = vpack.c.b16 %v937, %v935
    %v982 = vpack.c.b16 %v940, %v938
    %v983 = vpack.c.b16 %v941, %v939
    %v984 = vpack.c.b16 %v944, %v942
    %v985 = vpack.c.b16 %v945, %v943
    %v986 = vpack.c.b16 %v948, %v946
    %v987 = vpack.c.b16 %v949, %v947
    %v988 = vpack.c.b16 %v952, %v950
    %v989 = vpack.c.b16 %v953, %v951
    %v990 = vpack.c.b16 %v956, %v954
    %v991 = vpack.c.b16 %v957, %v955
    %v992 = vpack.c.b16 %v960, %v958
    %v993 = vpack.c.b16 %v961, %v959
    %1026 = vmatpush.bf16.msra.mxu0 %v976
    %1027 = vmatpush.bf16.msra.mxu0 %v974
    %1028 = vmatpush.bf16.msra.mxu0 %v972
    %1029 = vmatpush.bf16.msra.mxu0 %v970
    %1030 = vmatpush.bf16.msra.mxu0 %v968
    %1031 = vmatpush.bf16.msra.mxu0 %v966
    %1032 = vmatpush.bf16.msra.mxu0 %v964
    %1033 = vmatpush.bf16.msra.mxu0 %v962
    %1034 = vmatmul.bf16.gmra.mxu0 %v796
    %v1035 = vpop.f32.mrf.mxu0
    %v1036 = vadd.f32 %v862, %v1035
    %v1037 = vpop.f32.mrf.mxu0
    %v1038 = vadd.f32 %v862, %v1037
    %1039 = vmatmul.bf16.gmra.mxu0 %v798
    %v1040 = vpop.f32.mrf.mxu0
    %v1041 = vadd.f32 %v862, %v1040
    %v1042 = vpop.f32.mrf.mxu0
    %v1043 = vadd.f32 %v862, %v1042
    %1044 = vmatmul.bf16.gmra.mxu0 %v800
    %v1045 = vpop.f32.mrf.mxu0
    %v1046 = vadd.f32 %v862, %v1045
    %v1047 = vpop.f32.mrf.mxu0
    %v1048 = vadd.f32 %v862, %v1047
    %1049 = vmatmul.bf16.gmra.mxu0 %v802
    %v1050 = vpop.f32.mrf.mxu0
    %v1051 = vadd.f32 %v862, %v1050
    %v1052 = vpop.f32.mrf.mxu0
    %v1053 = vadd.f32 %v862, %v1052
    %1054 = vmatmul.bf16.gmra.mxu0 %v804
    %v1055 = vpop.f32.mrf.mxu0
    %v1056 = vadd.f32 %v862, %v1055
    %v1057 = vpop.f32.mrf.mxu0
    %v1058 = vadd.f32 %v862, %v1057
    %1059 = vmatmul.bf16.gmra.mxu0 %v806
    %v1060 = vpop.f32.mrf.mxu0
    %v1061 = vadd.f32 %v862, %v1060
    %v1062 = vpop.f32.mrf.mxu0
    %v1063 = vadd.f32 %v862, %v1062
    %1064 = vmatmul.bf16.gmra.mxu0 %v808
    %v1065 = vpop.f32.mrf.mxu0
    %v1066 = vadd.f32 %v862, %v1065
    %v1067 = vpop.f32.mrf.mxu0
    %v1068 = vadd.f32 %v862, %v1067
    %1069 = vmatmul.bf16.gmra.mxu0 %v810
    %v1070 = vpop.f32.mrf.mxu0
    %v1071 = vadd.f32 %v862, %v1070
    %v1072 = vpop.f32.mrf.mxu0
    %v1073 = vadd.f32 %v862, %v1072
    %1074 = vmatmul.bf16.gmra.mxu0 %v812
    %v1075 = vpop.f32.mrf.mxu0
    %v1076 = vadd.f32 %v862, %v1075
    %v1077 = vpop.f32.mrf.mxu0
    %v1078 = vadd.f32 %v862, %v1077
    %1079 = vmatmul.bf16.gmra.mxu0 %v814
    %v1080 = vpop.f32.mrf.mxu0
    %v1081 = vadd.f32 %v862, %v1080
    %v1082 = vpop.f32.mrf.mxu0
    %v1083 = vadd.f32 %v862, %v1082
    %1084 = vmatmul.bf16.gmra.mxu0 %v816
    %v1085 = vpop.f32.mrf.mxu0
    %v1086 = vadd.f32 %v862, %v1085
    %v1087 = vpop.f32.mrf.mxu0
    %v1088 = vadd.f32 %v862, %v1087
    %1089 = vmatmul.bf16.gmra.mxu0 %v818
    %v1090 = vpop.f32.mrf.mxu0
    %v1091 = vadd.f32 %v862, %v1090
    %v1092 = vpop.f32.mrf.mxu0
    %v1093 = vadd.f32 %v862, %v1092
    %1094 = vmatmul.bf16.gmra.mxu0 %v820
    %v1095 = vpop.f32.mrf.mxu0
    %v1096 = vadd.f32 %v862, %v1095
    %v1097 = vpop.f32.mrf.mxu0
    %v1098 = vadd.f32 %v862, %v1097
    %1099 = vmatmul.bf16.gmra.mxu0 %v822
    %v1100 = vpop.f32.mrf.mxu0
    %v1101 = vadd.f32 %v862, %v1100
    %v1102 = vpop.f32.mrf.mxu0
    %v1103 = vadd.f32 %v862, %v1102
    %1104 = vmatmul.bf16.gmra.mxu0 %v824
    %v1105 = vpop.f32.mrf.mxu0
    %v1106 = vadd.f32 %v862, %v1105
    %v1107 = vpop.f32.mrf.mxu0
    %v1108 = vadd.f32 %v862, %v1107
    %1109 = vmatmul.bf16.gmra.mxu0 %v826
    %v1110 = vpop.f32.mrf.mxu0
    %v1111 = vadd.f32 %v862, %v1110
    %v1112 = vpop.f32.mrf.mxu0
    %v1113 = vadd.f32 %v862, %v1112
    %1114 = vdwg.mxu0
    %1115 = vmatpush.bf16.msra.mxu0 %v992
    %1116 = vmatpush.bf16.msra.mxu0 %v990
    %1117 = vmatpush.bf16.msra.mxu0 %v988
    %1118 = vmatpush.bf16.msra.mxu0 %v986
    %1119 = vmatpush.bf16.msra.mxu0 %v984
    %1120 = vmatpush.bf16.msra.mxu0 %v982
    %1121 = vmatpush.bf16.msra.mxu0 %v980
    %1122 = vmatpush.bf16.msra.mxu0 %v978
    %1123 = vmatmul.bf16.gmra.mxu0 %v797
    %v1124 = vpop.f32.mrf.mxu0
    %v1125 = vadd.f32 %v1036, %v1124
    %v1126 = vpop.f32.mrf.mxu0
    %v1127 = vadd.f32 %v1038, %v1126
    %1128 = vmatmul.bf16.gmra.mxu0 %v799
    %v1129 = vpop.f32.mrf.mxu0
    %v1130 = vadd.f32 %v1041, %v1129
    %v1131 = vpop.f32.mrf.mxu0
    %v1132 = vadd.f32 %v1043, %v1131
    %1133 = vmatmul.bf16.gmra.mxu0 %v801
    %v1134 = vpop.f32.mrf.mxu0
    %v1135 = vadd.f32 %v1046, %v1134
    %v1136 = vpop.f32.mrf.mxu0
    %v1137 = vadd.f32 %v1048, %v1136
    %1138 = vmatmul.bf16.gmra.mxu0 %v803
    %v1139 = vpop.f32.mrf.mxu0
    %v1140 = vadd.f32 %v1051, %v1139
    %v1141 = vpop.f32.mrf.mxu0
    %v1142 = vadd.f32 %v1053, %v1141
    %1143 = vmatmul.bf16.gmra.mxu0 %v805
    %v1144 = vpop.f32.mrf.mxu0
    %v1145 = vadd.f32 %v1056, %v1144
    %v1146 = vpop.f32.mrf.mxu0
    %v1147 = vadd.f32 %v1058, %v1146
    %1148 = vmatmul.bf16.gmra.mxu0 %v807
    %v1149 = vpop.f32.mrf.mxu0
    %v1150 = vadd.f32 %v1061, %v1149
    %v1151 = vpop.f32.mrf.mxu0
    %v1152 = vadd.f32 %v1063, %v1151
    %1153 = vmatmul.bf16.gmra.mxu0 %v809
    %v1154 = vpop.f32.mrf.mxu0
    %v1155 = vadd.f32 %v1066, %v1154
    %v1156 = vpop.f32.mrf.mxu0
    %v1157 = vadd.f32 %v1068, %v1156
    %1158 = vmatmul.bf16.gmra.mxu0 %v811
    %v1159 = vpop.f32.mrf.mxu0
    %v1160 = vadd.f32 %v1071, %v1159
    %v1161 = vpop.f32.mrf.mxu0
    %v1162 = vadd.f32 %v1073, %v1161
    %1163 = vmatmul.bf16.gmra.mxu0 %v813
    %v1164 = vpop.f32.mrf.mxu0
    %v1165 = vadd.f32 %v1076, %v1164
    %v1166 = vpop.f32.mrf.mxu0
    %v1167 = vadd.f32 %v1078, %v1166
    %1168 = vmatmul.bf16.gmra.mxu0 %v815
    %v1169 = vpop.f32.mrf.mxu0
    %v1170 = vadd.f32 %v1081, %v1169
    %v1171 = vpop.f32.mrf.mxu0
    %v1172 = vadd.f32 %v1083, %v1171
    %1173 = vmatmul.bf16.gmra.mxu0 %v817
    %v1174 = vpop.f32.mrf.mxu0
    %v1175 = vadd.f32 %v1086, %v1174
    %v1176 = vpop.f32.mrf.mxu0
    %v1177 = vadd.f32 %v1088, %v1176
    %1178 = vmatmul.bf16.gmra.mxu0 %v819
    %v1179 = vpop.f32.mrf.mxu0
    %v1180 = vadd.f32 %v1091, %v1179
    %v1181 = vpop.f32.mrf.mxu0
    %v1182 = vadd.f32 %v1093, %v1181
    %1183 = vmatmul.bf16.gmra.mxu0 %v821
    %v1184 = vpop.f32.mrf.mxu0
    %v1185 = vadd.f32 %v1096, %v1184
    %v1186 = vpop.f32.mrf.mxu0
    %v1187 = vadd.f32 %v1098, %v1186
    %1188 = vmatmul.bf16.gmra.mxu0 %v823
    %v1189 = vpop.f32.mrf.mxu0
    %v1190 = vadd.f32 %v1101, %v1189
    %v1191 = vpop.f32.mrf.mxu0
    %v1192 = vadd.f32 %v1103, %v1191
    %1193 = vmatmul.bf16.gmra.mxu0 %v825
    %v1194 = vpop.f32.mrf.mxu0
    %v1195 = vadd.f32 %v1106, %v1194
    %v1196 = vpop.f32.mrf.mxu0
    %v1197 = vadd.f32 %v1108, %v1196
    %1198 = vmatmul.bf16.gmra.mxu0 %v827
    %v1199 = vpop.f32.mrf.mxu0
    %v1200 = vadd.f32 %v1111, %v1199
    %v1201 = vpop.f32.mrf.mxu0
    %v1202 = vadd.f32 %v1113, %v1201
    %1203 = vdwg.mxu0
    %1204 = vmatpush.bf16.msra.mxu0 %v977
    %1205 = vmatpush.bf16.msra.mxu0 %v975
    %1206 = vmatpush.bf16.msra.mxu0 %v973
    %1207 = vmatpush.bf16.msra.mxu0 %v971
    %1208 = vmatpush.bf16.msra.mxu0 %v969
    %1209 = vmatpush.bf16.msra.mxu0 %v967
    %1210 = vmatpush.bf16.msra.mxu0 %v965
    %1211 = vmatpush.bf16.msra.mxu0 %v963
    %1212 = vmatmul.bf16.gmra.mxu0 %v796
    %v1213 = vpop.f32.mrf.mxu0
    %v1214 = vadd.f32 %v863, %v1213
    %v1215 = vpop.f32.mrf.mxu0
    %v1216 = vadd.f32 %v863, %v1215
    %1217 = vmatmul.bf16.gmra.mxu0 %v798
    %v1218 = vpop.f32.mrf.mxu0
    %v1219 = vadd.f32 %v863, %v1218
    %v1220 = vpop.f32.mrf.mxu0
    %v1221 = vadd.f32 %v863, %v1220
    %1222 = vmatmul.bf16.gmra.mxu0 %v800
    %v1223 = vpop.f32.mrf.mxu0
    %v1224 = vadd.f32 %v863, %v1223
    %v1225 = vpop.f32.mrf.mxu0
    %v1226 = vadd.f32 %v863, %v1225
    %1227 = vmatmul.bf16.gmra.mxu0 %v802
    %v1228 = vpop.f32.mrf.mxu0
    %v1229 = vadd.f32 %v863, %v1228
    %v1230 = vpop.f32.mrf.mxu0
    %v1231 = vadd.f32 %v863, %v1230
    %1232 = vmatmul.bf16.gmra.mxu0 %v804
    %v1233 = vpop.f32.mrf.mxu0
    %v1234 = vadd.f32 %v863, %v1233
    %v1235 = vpop.f32.mrf.mxu0
    %v1236 = vadd.f32 %v863, %v1235
    %1237 = vmatmul.bf16.gmra.mxu0 %v806
    %v1238 = vpop.f32.mrf.mxu0
    %v1239 = vadd.f32 %v863, %v1238
    %v1240 = vpop.f32.mrf.mxu0
    %v1241 = vadd.f32 %v863, %v1240
    %1242 = vmatmul.bf16.gmra.mxu0 %v808
    %v1243 = vpop.f32.mrf.mxu0
    %v1244 = vadd.f32 %v863, %v1243
    %v1245 = vpop.f32.mrf.mxu0
    %v1246 = vadd.f32 %v863, %v1245
    %1247 = vmatmul.bf16.gmra.mxu0 %v810
    %v1248 = vpop.f32.mrf.mxu0
    %v1249 = vadd.f32 %v863, %v1248
    %v1250 = vpop.f32.mrf.mxu0
    %v1251 = vadd.f32 %v863, %v1250
    %1252 = vmatmul.bf16.gmra.mxu0 %v812
    %v1253 = vpop.f32.mrf.mxu0
    %v1254 = vadd.f32 %v863, %v1253
    %v1255 = vpop.f32.mrf.mxu0
    %v1256 = vadd.f32 %v863, %v1255
    %1257 = vmatmul.bf16.gmra.mxu0 %v814
    %v1258 = vpop.f32.mrf.mxu0
    %v1259 = vadd.f32 %v863, %v1258
    %v1260 = vpop.f32.mrf.mxu0
    %v1261 = vadd.f32 %v863, %v1260
    %1262 = vmatmul.bf16.gmra.mxu0 %v816
    %v1263 = vpop.f32.mrf.mxu0
    %v1264 = vadd.f32 %v863, %v1263
    %v1265 = vpop.f32.mrf.mxu0
    %v1266 = vadd.f32 %v863, %v1265
    %1267 = vmatmul.bf16.gmra.mxu0 %v818
    %v1268 = vpop.f32.mrf.mxu0
    %v1269 = vadd.f32 %v863, %v1268
    %v1270 = vpop.f32.mrf.mxu0
    %v1271 = vadd.f32 %v863, %v1270
    %1272 = vmatmul.bf16.gmra.mxu0 %v820
    %v1273 = vpop.f32.mrf.mxu0
    %v1274 = vadd.f32 %v863, %v1273
    %v1275 = vpop.f32.mrf.mxu0
    %v1276 = vadd.f32 %v863, %v1275
    %1277 = vmatmul.bf16.gmra.mxu0 %v822
    %v1278 = vpop.f32.mrf.mxu0
    %v1279 = vadd.f32 %v863, %v1278
    %v1280 = vpop.f32.mrf.mxu0
    %v1281 = vadd.f32 %v863, %v1280
    %1282 = vmatmul.bf16.gmra.mxu0 %v824
    %v1283 = vpop.f32.mrf.mxu0
    %v1284 = vadd.f32 %v863, %v1283
    %v1285 = vpop.f32.mrf.mxu0
    %v1286 = vadd.f32 %v863, %v1285
    %1287 = vmatmul.bf16.gmra.mxu0 %v826
    %v1288 = vpop.f32.mrf.mxu0
    %v1289 = vadd.f32 %v863, %v1288
    %v1290 = vpop.f32.mrf.mxu0
    %v1291 = vadd.f32 %v863, %v1290
    %1292 = vdwg.mxu0
    %1293 = vmatpush.bf16.msra.mxu0 %v993
    %1294 = vmatpush.bf16.msra.mxu0 %v991
    %1295 = vmatpush.bf16.msra.mxu0 %v989
    %1296 = vmatpush.bf16.msra.mxu0 %v987
    %1297 = vmatpush.bf16.msra.mxu0 %v985
    %1298 = vmatpush.bf16.msra.mxu0 %v983
    %1299 = vmatpush.bf16.msra.mxu0 %v981
    %1300 = vmatpush.bf16.msra.mxu0 %v979
    %1301 = vmatmul.bf16.gmra.mxu0 %v797
    %v1302 = vpop.f32.mrf.mxu0
    %v1303 = vadd.f32 %v1214, %v1302
    %v1304 = vpop.f32.mrf.mxu0
    %v1305 = vadd.f32 %v1216, %v1304
    %1306 = vmatmul.bf16.gmra.mxu0 %v799
    %v1307 = vpop.f32.mrf.mxu0
    %v1308 = vadd.f32 %v1219, %v1307
    %v1309 = vpop.f32.mrf.mxu0
    %v1310 = vadd.f32 %v1221, %v1309
    %1311 = vmatmul.bf16.gmra.mxu0 %v801
    %v1312 = vpop.f32.mrf.mxu0
    %v1313 = vadd.f32 %v1224, %v1312
    %v1314 = vpop.f32.mrf.mxu0
    %v1315 = vadd.f32 %v1226, %v1314
    %1316 = vmatmul.bf16.gmra.mxu0 %v803
    %v1317 = vpop.f32.mrf.mxu0
    %v1318 = vadd.f32 %v1229, %v1317
    %v1319 = vpop.f32.mrf.mxu0
    %v1320 = vadd.f32 %v1231, %v1319
    %1321 = vmatmul.bf16.gmra.mxu0 %v805
    %v1322 = vpop.f32.mrf.mxu0
    %v1323 = vadd.f32 %v1234, %v1322
    %v1324 = vpop.f32.mrf.mxu0
    %v1325 = vadd.f32 %v1236, %v1324
    %1326 = vmatmul.bf16.gmra.mxu0 %v807
    %v1327 = vpop.f32.mrf.mxu0
    %v1328 = vadd.f32 %v1239, %v1327
    %v1329 = vpop.f32.mrf.mxu0
    %v1330 = vadd.f32 %v1241, %v1329
    %1331 = vmatmul.bf16.gmra.mxu0 %v809
    %v1332 = vpop.f32.mrf.mxu0
    %v1333 = vadd.f32 %v1244, %v1332
    %v1334 = vpop.f32.mrf.mxu0
    %v1335 = vadd.f32 %v1246, %v1334
    %1336 = vmatmul.bf16.gmra.mxu0 %v811
    %v1337 = vpop.f32.mrf.mxu0
    %v1338 = vadd.f32 %v1249, %v1337
    %v1339 = vpop.f32.mrf.mxu0
    %v1340 = vadd.f32 %v1251, %v1339
    %1341 = vmatmul.bf16.gmra.mxu0 %v813
    %v1342 = vpop.f32.mrf.mxu0
    %v1343 = vadd.f32 %v1254, %v1342
    %v1344 = vpop.f32.mrf.mxu0
    %v1345 = vadd.f32 %v1256, %v1344
    %1346 = vmatmul.bf16.gmra.mxu0 %v815
    %v1347 = vpop.f32.mrf.mxu0
    %v1348 = vadd.f32 %v1259, %v1347
    %v1349 = vpop.f32.mrf.mxu0
    %v1350 = vadd.f32 %v1261, %v1349
    %1351 = vmatmul.bf16.gmra.mxu0 %v817
    %v1352 = vpop.f32.mrf.mxu0
    %v1353 = vadd.f32 %v1264, %v1352
    %v1354 = vpop.f32.mrf.mxu0
    %v1355 = vadd.f32 %v1266, %v1354
    %1356 = vmatmul.bf16.gmra.mxu0 %v819
    %v1357 = vpop.f32.mrf.mxu0
    %v1358 = vadd.f32 %v1269, %v1357
    %v1359 = vpop.f32.mrf.mxu0
    %v1360 = vadd.f32 %v1271, %v1359
    %1361 = vmatmul.bf16.gmra.mxu0 %v821
    %v1362 = vpop.f32.mrf.mxu0
    %v1363 = vadd.f32 %v1274, %v1362
    %v1364 = vpop.f32.mrf.mxu0
    %v1365 = vadd.f32 %v1276, %v1364
    %1366 = vmatmul.bf16.gmra.mxu0 %v823
    %v1367 = vpop.f32.mrf.mxu0
    %v1368 = vadd.f32 %v1279, %v1367
    %v1369 = vpop.f32.mrf.mxu0
    %v1370 = vadd.f32 %v1281, %v1369
    %1371 = vmatmul.bf16.gmra.mxu0 %v825
    %v1372 = vpop.f32.mrf.mxu0
    %v1373 = vadd.f32 %v1284, %v1372
    %v1374 = vpop.f32.mrf.mxu0
    %v1375 = vadd.f32 %v1286, %v1374
    %1376 = vmatmul.bf16.gmra.mxu0 %v827
    %v1377 = vpop.f32.mrf.mxu0
    %v1378 = vadd.f32 %v1289, %v1377
    %v1379 = vpop.f32.mrf.mxu0
    %v1380 = vadd.f32 %v1291, %v1379
    %1381 = vdwg.mxu0
    %v1382 = vmax.f32 %v1125, 0.0
    %v1383 = vmax.f32 %v1303, 0.0
    %v1384 = vmax.f32 %v1127, 0.0
    %v1385 = vmax.f32 %v1305, 0.0
    %v1386 = vmax.f32 %v1130, 0.0
    %v1387 = vmax.f32 %v1308, 0.0
    %v1388 = vmax.f32 %v1132, 0.0
    %v1389 = vmax.f32 %v1310, 0.0
    %v1390 = vmax.f32 %v1135, 0.0
    %v1391 = vmax.f32 %v1313, 0.0
    %v1392 = vmax.f32 %v1137, 0.0
    %v1393 = vmax.f32 %v1315, 0.0
    %v1394 = vmax.f32 %v1140, 0.0
    %v1395 = vmax.f32 %v1318, 0.0
    %v1396 = vmax.f32 %v1142, 0.0
    %v1397 = vmax.f32 %v1320, 0.0
    %v1398 = vmax.f32 %v1145, 0.0
    %v1399 = vmax.f32 %v1323, 0.0
    %v1400 = vmax.f32 %v1147, 0.0
    %v1401 = vmax.f32 %v1325, 0.0
    %v1402 = vmax.f32 %v1150, 0.0
    %v1403 = vmax.f32 %v1328, 0.0
    %v1404 = vmax.f32 %v1152, 0.0
    %v1405 = vmax.f32 %v1330, 0.0
    %v1406 = vmax.f32 %v1155, 0.0
    %v1407 = vmax.f32 %v1333, 0.0
    %v1408 = vmax.f32 %v1157, 0.0
    %v1409 = vmax.f32 %v1335, 0.0
    %v1410 = vmax.f32 %v1160, 0.0
    %v1411 = vmax.f32 %v1338, 0.0
    %v1412 = vmax.f32 %v1162, 0.0
    %v1413 = vmax.f32 %v1340, 0.0
    %v1414 = vmax.f32 %v1165, 0.0
    %v1415 = vmax.f32 %v1343, 0.0
    %v1416 = vmax.f32 %v1167, 0.0
    %v1417 = vmax.f32 %v1345, 0.0
    %v1418 = vmax.f32 %v1170, 0.0
    %v1419 = vmax.f32 %v1348, 0.0
    %v1420 = vmax.f32 %v1172, 0.0
    %v1421 = vmax.f32 %v1350, 0.0
    %v1422 = vmax.f32 %v1175, 0.0
    %v1423 = vmax.f32 %v1353, 0.0
    %v1424 = vmax.f32 %v1177, 0.0
    %v1425 = vmax.f32 %v1355, 0.0
    %v1426 = vmax.f32 %v1180, 0.0
    %v1427 = vmax.f32 %v1358, 0.0
    %v1428 = vmax.f32 %v1182, 0.0
    %v1429 = vmax.f32 %v1360, 0.0
    %v1430 = vmax.f32 %v1185, 0.0
    %v1431 = vmax.f32 %v1363, 0.0
    %v1432 = vmax.f32 %v1187, 0.0
    %v1433 = vmax.f32 %v1365, 0.0
    %v1434 = vmax.f32 %v1190, 0.0
    %v1435 = vmax.f32 %v1368, 0.0
    %v1436 = vmax.f32 %v1192, 0.0
    %v1437 = vmax.f32 %v1370, 0.0
    %v1438 = vmax.f32 %v1195, 0.0
    %v1439 = vmax.f32 %v1373, 0.0
    %v1440 = vmax.f32 %v1197, 0.0
    %v1441 = vmax.f32 %v1375, 0.0
    %v1442 = vmax.f32 %v1200, 0.0
    %v1443 = vmax.f32 %v1378, 0.0
    %v1444 = vmax.f32 %v1202, 0.0
    %v1445 = vmax.f32 %v1380, 0.0
    %v1446 = vadd.f32 %v82, %v1382
    %v1447 = vadd.f32 %v83, %v1383
    %v1448 = vadd.f32 %v84, %v1384
    %v1449 = vadd.f32 %v85, %v1385
    %v1450 = vadd.f32 %v86, %v1386
    %v1451 = vadd.f32 %v87, %v1387
    %v1452 = vadd.f32 %v88, %v1388
    %v1453 = vadd.f32 %v89, %v1389
    %v1454 = vadd.f32 %v90, %v1390
    %v1455 = vadd.f32 %v91, %v1391
    %v1456 = vadd.f32 %v92, %v1392
    %v1457 = vadd.f32 %v93, %v1393
    %v1458 = vadd.f32 %v94, %v1394
    %v1459 = vadd.f32 %v95, %v1395
    %v1460 = vadd.f32 %v96, %v1396
    %v1461 = vadd.f32 %v97, %v1397
    %v1462 = vadd.f32 %v98, %v1398
    %v1463 = vadd.f32 %v99, %v1399
    %v1464 = vadd.f32 %v100, %v1400
    %v1465 = vadd.f32 %v101, %v1401
    %v1466 = vadd.f32 %v102, %v1402
    %v1467 = vadd.f32 %v103, %v1403
    %v1468 = vadd.f32 %v104, %v1404
    %v1469 = vadd.f32 %v105, %v1405
    %v1470 = vadd.f32 %v106, %v1406
    %v1471 = vadd.f32 %v107, %v1407
    %v1472 = vadd.f32 %v108, %v1408
    %v1473 = vadd.f32 %v109, %v1409
    %v1474 = vadd.f32 %v110, %v1410
    %v1475 = vadd.f32 %v111, %v1411
    %v1476 = vadd.f32 %v112, %v1412
    %v1477 = vadd.f32 %v113, %v1413
    %v1478 = vadd.f32 %v114, %v1414
    %v1479 = vadd.f32 %v115, %v1415
    %v1480 = vadd.f32 %v116, %v1416
    %v1481 = vadd.f32 %v117, %v1417
    %v1482 = vadd.f32 %v118, %v1418
    %v1483 = vadd.f32 %v119, %v1419
    %v1484 = vadd.f32 %v120, %v1420
    %v1485 = vadd.f32 %v121, %v1421
    %v1486 = vadd.f32 %v122, %v1422
    %v1487 = vadd.f32 %v123, %v1423
    %v1488 = vadd.f32 %v124, %v1424
    %v1489 = vadd.f32 %v125, %v1425
    %v1490 = vadd.f32 %v126, %v1426
    %v1491 = vadd.f32 %v127, %v1427
    %v1492 = vadd.f32 %v128, %v1428
    %v1493 = vadd.f32 %v129, %v1429
    %v1494 = vadd.f32 %v130, %v1430
    %v1495 = vadd.f32 %v131, %v1431
    %v1496 = vadd.f32 %v132, %v1432
    %v1497 = vadd.f32 %v133, %v1433
    %v1498 = vadd.f32 %v134, %v1434
    %v1499 = vadd.f32 %v135, %v1435
    %v1500 = vadd.f32 %v136, %v1436
    %v1501 = vadd.f32 %v137, %v1437
    %v1502 = vadd.f32 %v138, %v1438
    %v1503 = vadd.f32 %v139, %v1439
    %v1504 = vadd.f32 %v140, %v1440
    %v1505 = vadd.f32 %v141, %v1441
    %v1506 = vadd.f32 %v142, %v1442
    %v1507 = vadd.f32 %v143, %v1443
    %v1508 = vadd.f32 %v144, %v1444
    %v1509 = vadd.f32 %v145, %v1445
    %1510 = vst [vmem:[#allocation10] sm:$0xff] %v1446
    %1511 = vst [vmem:[#allocation10 + $0x8] sm:$0xff] %v1447
    %1512 = vst [vmem:[#allocation10 + $0x10] sm:$0xff] %v1448
    %1513 = vst [vmem:[#allocation10 + $0x18] sm:$0xff] %v1449
    %1514 = vst [vmem:[#allocation10 + $0x20] sm:$0xff] %v1450
    %1515 = vst [vmem:[#allocation10 + $0x28] sm:$0xff] %v1451
    %1516 = vst [vmem:[#allocation10 + $0x30] sm:$0xff] %v1452
    %1517 = vst [vmem:[#allocation10 + $0x38] sm:$0xff] %v1453
    %1518 = vst [vmem:[#allocation10 + $0x40] sm:$0xff] %v1454
    %1519 = vst [vmem:[#allocation10 + $0x48] sm:$0xff] %v1455
    %1520 = vst [vmem:[#allocation10 + $0x50] sm:$0xff] %v1456
    %1521 = vst [vmem:[#allocation10 + $0x58] sm:$0xff] %v1457
    %1522 = vst [vmem:[#allocation10 + $0x60] sm:$0xff] %v1458
    %1523 = vst [vmem:[#allocation10 + $0x68] sm:$0xff] %v1459
    %1524 = vst [vmem:[#allocation10 + $0x70] sm:$0xff] %v1460
    %1525 = vst [vmem:[#allocation10 + $0x78] sm:$0xff] %v1461
    %1526 = vst [vmem:[#allocation10 + $0x80] sm:$0xff] %v1462
    %1527 = vst [vmem:[#allocation10 + $0x88] sm:$0xff] %v1463
    %1528 = vst [vmem:[#allocation10 + $0x90] sm:$0xff] %v1464
    %1529 = vst [vmem:[#allocation10 + $0x98] sm:$0xff] %v1465
    %1530 = vst [vmem:[#allocation10 + $0xa0] sm:$0xff] %v1466
    %1531 = vst [vmem:[#allocation10 + $0xa8] sm:$0xff] %v1467
    %1532 = vst [vmem:[#allocation10 + $0xb0] sm:$0xff] %v1468
    %1533 = vst [vmem:[#allocation10 + $0xb8] sm:$0xff] %v1469
    %1534 = vst [vmem:[#allocation10 + $0xc0] sm:$0xff] %v1470
    %1535 = vst [vmem:[#allocation10 + $0xc8] sm:$0xff] %v1471
    %1536 = vst [vmem:[#allocation10 + $0xd0] sm:$0xff] %v1472
    %1537 = vst [vmem:[#allocation10 + $0xd8] sm:$0xff] %v1473
    %1538 = vst [vmem:[#allocation10 + $0xe0] sm:$0xff] %v1474
    %1539 = vst [vmem:[#allocation10 + $0xe8] sm:$0xff] %v1475
    %1540 = vst [vmem:[#allocation10 + $0xf0] sm:$0xff] %v1476
    %1541 = vst [vmem:[#allocation10 + $0xf8] sm:$0xff] %v1477
    %1542 = vst [vmem:[#allocation10 + $0x100] sm:$0xff] %v1478
    %1543 = vst [vmem:[#allocation10 + $0x108] sm:$0xff] %v1479
    %1544 = vst [vmem:[#allocation10 + $0x110] sm:$0xff] %v1480
    %1545 = vst [vmem:[#allocation10 + $0x118] sm:$0xff] %v1481
    %1546 = vst [vmem:[#allocation10 + $0x120] sm:$0xff] %v1482
    %1547 = vst [vmem:[#allocation10 + $0x128] sm:$0xff] %v1483
    %1548 = vst [vmem:[#allocation10 + $0x130] sm:$0xff] %v1484
    %1549 = vst [vmem:[#allocation10 + $0x138] sm:$0xff] %v1485
    %1550 = vst [vmem:[#allocation10 + $0x140] sm:$0xff] %v1486
    %1551 = vst [vmem:[#allocation10 + $0x148] sm:$0xff] %v1487
    %1552 = vst [vmem:[#allocation10 + $0x150] sm:$0xff] %v1488
    %1553 = vst [vmem:[#allocation10 + $0x158] sm:$0xff] %v1489
    %1554 = vst [vmem:[#allocation10 + $0x160] sm:$0xff] %v1490
    %1555 = vst [vmem:[#allocation10 + $0x168] sm:$0xff] %v1491
    %1556 = vst [vmem:[#allocation10 + $0x170] sm:$0xff] %v1492
    %1557 = vst [vmem:[#allocation10 + $0x178] sm:$0xff] %v1493
    %1558 = vst [vmem:[#allocation10 + $0x180] sm:$0xff] %v1494
    %1559 = vst [vmem:[#allocation10 + $0x188] sm:$0xff] %v1495
    %1560 = vst [vmem:[#allocation10 + $0x190] sm:$0xff] %v1496
    %1561 = vst [vmem:[#allocation10 + $0x198] sm:$0xff] %v1497
    %1562 = vst [vmem:[#allocation10 + $0x1a0] sm:$0xff] %v1498
    %1563 = vst [vmem:[#allocation10 + $0x1a8] sm:$0xff] %v1499
    %1564 = vst [vmem:[#allocation10 + $0x1b0] sm:$0xff] %v1500
    %1565 = vst [vmem:[#allocation10 + $0x1b8] sm:$0xff] %v1501
    %1566 = vst [vmem:[#allocation10 + $0x1c0] sm:$0xff] %v1502
    %1567 = vst [vmem:[#allocation10 + $0x1c8] sm:$0xff] %v1503
    %1568 = vst [vmem:[#allocation10 + $0x1d0] sm:$0xff] %v1504
    %1569 = vst [vmem:[#allocation10 + $0x1d8] sm:$0xff] %v1505
    %1570 = vst [vmem:[#allocation10 + $0x1e0] sm:$0xff] %v1506
    %1571 = vst [vmem:[#allocation10 + $0x1e8] sm:$0xff] %v1507
    %1572 = vst [vmem:[#allocation10 + $0x1f0] sm:$0xff] %v1508
    %1573 = vst [vmem:[#allocation10 + $0x1f8] sm:$0xff] %v1509
    // Predicated region
    $region38: #{tpu_custom_call.1} parent=1 // pred_check
      _
    $region39: #{tpu_custom_call.1} parent=1 // pred_check_branch
      %1575 = sbr.rel (0) target = $region41
    $region40: #{tpu_custom_call.1} parent=1 // pred_region
      %1577 = vsyncadd [#allocation4], 0
      %s1578 = sshll.u32 [#allocation10], 4
      %s1579 = int_to_ptr.vmem [resolvable:$true] %s1578
      %s1580 = sshll.u32 %s5, 4
      %s1581 = int_to_ptr.hbm [resolvable:$true] %s1580
      %1586 = dma.vmem_to_hbm [thread:$0]  %s1579, 8192, %s1581, [#allocation4], 256, 256, 16
    $region41: #{tpu_custom_call.1} parent=1 // pred_fallthru
      _
    // Predicated region
    $region42: #{tpu_custom_call.1} parent=1 // pred_check
      _
    $region43: #{tpu_custom_call.1} parent=1 // pred_check_branch
      %1588 = sbr.rel (0) target = $region45
    $region44: #{tpu_custom_call.1} parent=1 // pred_region
      %1590 = dma.done [#allocation4], 8192
    $region45: #{tpu_custom_call.1} parent=1 // pred_fallthru
      _
    %1591 = vsyncpa [#allocation3], 1
    %1592 = vsyncpa [#allocation6], 1
    %1593 = vsyncpa [#allocation9], 1
    %1594 = vsyncpa [#allocation4], 1

// kernel: tpu_custom_call.1
$region0: #{tpu_custom_call.1}
  #allocation0 [shape = 'u32[]', space=smem, size = 0x4, offset = 0x4, fixed_abs, tag = 'smem constant byte address 0x4 - core index']
  #allocation1 [shape = 'u32[72,128]{1,0:T(1,128)}', space=vmem, size = 0x9000, scoped, tag = 'internal scratch']
  %s0 = inlined_call_operand.hbm [shape: f32[256,256], index: 0, kind: input, shape index: {}]
  %s1 = inlined_call_operand.hbm [shape: bf16[256,256], index: 1, kind: input, shape index: {}]
  %s2 = inlined_call_operand.hbm [shape: f32[1,256], index: 2, kind: input, shape index: {}]
  %s3 = inlined_call_operand.hbm [shape: bf16[256,256], index: 3, kind: input, shape index: {}]
  %s4 = inlined_call_operand.vmem [shape: f32[1,256], index: 4, kind: input, shape index: {}]
  %s5 = inlined_call_operand.hbm [shape: f32[256,256], index: 5, kind: output, shape index: {}]
  %s6 = sld [smem:[#allocation0]]
  $region46: #{tpu_custom_call.1} parent=0
    _
  %s8 = ssub.s32 1, %s6
  %s9 = scalar_select 0, %s8, %s6
  $region1: #{tpu_custom_call.1} parent=0
    #allocation2 [shape = 'u8[262144]{0}', space=vmem, size = 0x40000, scoped, tag = 'input window, operand 0, single buffered']
    #allocation3 [shape = 's32[1]{0}', space=sflag, size = 0x4, scoped, tag = 'scoped memory for tpu_custom_call.1']
    #allocation4 [shape = 's32[1]{0}', space=sflag, size = 0x4, scoped, tag = 'scoped memory for tpu_custom_call.1']
    #allocation5 [shape = 'u8[131072]{0}', space=vmem, size = 0x20000, scoped, tag = 'input window, operand 1, single buffered']
    #allocation6 [shape = 's32[1]{0}', space=sflag, size = 0x4, scoped, tag = 'scoped memory for tpu_custom_call.1']
    #allocation7 [shape = 'u8[1024]{0}', space=vmem, size = 0x400, scoped, tag = 'input window, operand 2, single buffered']
    #allocation8 [shape = 'u8[131072]{0}', space=vmem, size = 0x20000, scoped, tag = 'input window, operand 3, single buffered']
    #allocation9 [shape = 's32[1]{0}', space=sflag, size = 0x4, scoped, tag = 'scoped memory for tpu_custom_call.1']
    #allocation10 [shape = 'u8[262144]{0}', space=vmem, size = 0x40000, scoped, tag = 'output window, operand 0, single buffered']
    %10 = vsyncpa [#allocation3], 0
    %11 = vsyncpa [#allocation6], 0
    %12 = vsyncpa [#allocation9], 0
    %13 = vsyncpa [#allocation4], 0
    // Predicated region
    $region2: #{tpu_custom_call.1} parent=1 // pred_check
      _
    $region3: #{tpu_custom_call.1} parent=1 // pred_check_branch
      %15 = sbr.rel (0) target = $region5
    $region4: #{tpu_custom_call.1} parent=1 // pred_region
      %17 = vsyncadd [#allocation3], 0
      %s18 = sshll.u32 %s0, 4
      %s19 = int_to_ptr.hbm [resolvable:$true] %s18
      %s20 = sshll.u32 [#allocation2], 4
      %s21 = int_to_ptr.vmem [resolvable:$true] %s20
      %26 = dma.hbm_to_vmem [thread:$0]  %s19, 8192, %s21, [#allocation3], 256, 256, 16
    $region5: #{tpu_custom_call.1} parent=1 // pred_fallthru
      _
    // Predicated region
    $region6: #{tpu_custom_call.1} parent=1 // pred_check
      _
    $region7: #{tpu_custom_call.1} parent=1 // pred_check_branch
      %28 = sbr.rel (0) target = $region9
    $region8: #{tpu_custom_call.1} parent=1 // pred_region
      %30 = vsyncadd [#allocation6], 0
      %s31 = sshll.u32 %s1, 4
      %s32 = int_to_ptr.hbm [resolvable:$true] %s31
      %s33 = sshll.u32 [#allocation5], 4
      %s34 = int_to_ptr.vmem [resolvable:$true] %s33
      %39 = dma.hbm_to_vmem [thread:$0]  %s32, 4096, %s34, [#allocation6], 128, 128, 8
    $region9: #{tpu_custom_call.1} parent=1 // pred_fallthru
      _
    // Predicated region
    $region10: #{tpu_custom_call.1} parent=1 // pred_check
      _
    $region11: #{tpu_custom_call.1} parent=1 // pred_check_branch
      %41 = sbr.rel (0) target = $region13
    $region12: #{tpu_custom_call.1} parent=1 // pred_region
      %43 = vsyncadd [#allocation6], 0
      %s45 = sshll.u32 %s2, 4
      %s46 = int_to_ptr.hbm [resolvable:$true] %s45
      %s47 = sshll.u32 [#allocation7], 4
      %s48 = int_to_ptr.vmem [resolvable:$true] %s47
      %50 = dma.hbm_to_vmem [thread:$0]  %s46, 32, %s48, [#allocation6]
    $region13: #{tpu_custom_call.1} parent=1 // pred_fallthru
      _
    // Predicated region
    $region14: #{tpu_custom_call.1} parent=1 // pred_check
      _
    $region15: #{tpu_custom_call.1} parent=1 // pred_check_branch
      %52 = sbr.rel (0) target = $region17
    $region16: #{tpu_custom_call.1} parent=1 // pred_region
      %54 = vsyncadd [#allocation9], 0
      %s55 = sshll.u32 %s3, 4
      %s56 = int_to_ptr.hbm [resolvable:$true] %s55
      %s57 = sshll.u32 [#allocation8], 4
      %s58 = int_to_ptr.vmem [resolvable:$true] %s57
      %63 = dma.hbm_to_vmem [thread:$0]  %s56, 4096, %s58, [#allocation9], 128, 128, 8
    $region17: #{tpu_custom_call.1} parent=1 // pred_fallthru
      _
    // Predicated region
    $region18: #{tpu_custom_call.1} parent=1 // pred_check
      _
    $region19: #{tpu_custom_call.1} parent=1 // pred_check_branch
      %65 = sbr.rel (0) target = $region21
    $region20: #{tpu_custom_call.1} parent=1 // pred_region
      _
    $region21: #{tpu_custom_call.1} parent=1 // pred_fallthru
      _
    // Predicated region
    $region22: #{tpu_custom_call.1} parent=1 // pred_check
      _
    $region23: #{tpu_custom_call.1} parent=1 // pred_check_branch
      %67 = sbr.rel (0) target = $region25
    $region24: #{tpu_custom_call.1} parent=1 // pred_region
      %69 = dma.done [#allocation3], 8192
    $region25: #{tpu_custom_call.1} parent=1 // pred_fallthru
      _
    // Predicated region
    $region26: #{tpu_custom_call.1} parent=1 // pred_check
      _
    $region27: #{tpu_custom_call.1} parent=1 // pred_check_branch
      %71 = sbr.rel (0) target = $region29
    $region28: #{tpu_custom_call.1} parent=1 // pred_region
      %73 = dma.done [#allocation6], 4096
    $region29: #{tpu_custom_call.1} parent=1 // pred_fallthru
      _
    // Predicated region
    $region30: #{tpu_custom_call.1} parent=1 // pred_check
      _
    $region31: #{tpu_custom_call.1} parent=1 // pred_check_branch
      %75 = sbr.rel (0) target = $region33
    $region32: #{tpu_custom_call.1} parent=1 // pred_region
      %77 = dma.done [#allocation6], 32
    $region33: #{tpu_custom_call.1} parent=1 // pred_fallthru
      _
    // Predicated region
    $region34: #{tpu_custom_call.1} parent=1 // pred_check
      _
    $region35: #{tpu_custom_call.1} parent=1 // pred_check_branch
      %79 = sbr.rel (0) target = $region37
    $region36: #{tpu_custom_call.1} parent=1 // pred_region
      %81 = dma.done [#allocation9], 4096
    $region37: #{tpu_custom_call.1} parent=1 // pred_fallthru
      _
    %v82 = vld [vmem:[#allocation2] sm:$0xff]
    %v83 = vld [vmem:[#allocation2 + $0x8] sm:$0xff]
    %v84 = vld [vmem:[#allocation2 + $0x10] sm:$0xff]
    %v85 = vld [vmem:[#allocation2 + $0x18] sm:$0xff]
    %v86 = vld [vmem:[#allocation2 + $0x20] sm:$0xff]
    %v87 = vld [vmem:[#allocation2 + $0x28] sm:$0xff]
    %v88 = vld [vmem:[#allocation2 + $0x30] sm:$0xff]
    %v89 = vld [vmem:[#allocation2 + $0x38] sm:$0xff]
    %v90 = vld [vmem:[#allocation2 + $0x40] sm:$0xff]
    %v91 = vld [vmem:[#allocation2 + $0x48] sm:$0xff]
    %v92 = vld [vmem:[#allocation2 + $0x50] sm:$0xff]
    %v93 = vld [vmem:[#allocation2 + $0x58] sm:$0xff]
    %v94 = vld [vmem:[#allocation2 + $0x60] sm:$0xff]
    %v95 = vld [vmem:[#allocation2 + $0x68] sm:$0xff]
    %v96 = vld [vmem:[#allocation2 + $0x70] sm:$0xff]
    %v97 = vld [vmem:[#allocation2 + $0x78] sm:$0xff]
    %v98 = vld [vmem:[#allocation2 + $0x80] sm:$0xff]
    %v99 = vld [vmem:[#allocation2 + $0x88] sm:$0xff]
    %v100 = vld [vmem:[#allocation2 + $0x90] sm:$0xff]
    %v101 = vld [vmem:[#allocation2 + $0x98] sm:$0xff]
    %v102 = vld [vmem:[#allocation2 + $0xa0] sm:$0xff]
    %v103 = vld [vmem:[#allocation2 + $0xa8] sm:$0xff]
    %v104 = vld [vmem:[#allocation2 + $0xb0] sm:$0xff]
    %v105 = vld [vmem:[#allocation2 + $0xb8] sm:$0xff]
    %v106 = vld [vmem:[#allocation2 + $0xc0] sm:$0xff]
    %v107 = vld [vmem:[#allocation2 + $0xc8] sm:$0xff]
    %v108 = vld [vmem:[#allocation2 + $0xd0] sm:$0xff]
    %v109 = vld [vmem:[#allocation2 + $0xd8] sm:$0xff]
    %v110 = vld [vmem:[#allocation2 + $0xe0] sm:$0xff]
    %v111 = vld [vmem:[#allocation2 + $0xe8] sm:$0xff]
    %v112 = vld [vmem:[#allocation2 + $0xf0] sm:$0xff]
    %v113 = vld [vmem:[#allocation2 + $0xf8] sm:$0xff]
    %v114 = vld [vmem:[#allocation2 + $0x100] sm:$0xff]
    %v115 = vld [vmem:[#allocation2 + $0x108] sm:$0xff]
    %v116 = vld [vmem:[#allocation2 + $0x110] sm:$0xff]
    %v117 = vld [vmem:[#allocation2 + $0x118] sm:$0xff]
    %v118 = vld [vmem:[#allocation2 + $0x120] sm:$0xff]
    %v119 = vld [vmem:[#allocation2 + $0x128] sm:$0xff]
    %v120 = vld [vmem:[#allocation2 + $0x130] sm:$0xff]
    %v121 = vld [vmem:[#allocation2 + $0x138] sm:$0xff]
    %v122 = vld [vmem:[#allocation2 + $0x140] sm:$0xff]
    %v123 = vld [vmem:[#allocation2 + $0x148] sm:$0xff]
    %v124 = vld [vmem:[#allocation2 + $0x150] sm:$0xff]
    %v125 = vld [vmem:[#allocation2 + $0x158] sm:$0xff]
    %v126 = vld [vmem:[#allocation2 + $0x160] sm:$0xff]
    %v127 = vld [vmem:[#allocation2 + $0x168] sm:$0xff]
    %v128 = vld [vmem:[#allocation2 + $0x170] sm:$0xff]
    %v129 = vld [vmem:[#allocation2 + $0x178] sm:$0xff]
    %v130 = vld [vmem:[#allocation2 + $0x180] sm:$0xff]
    %v131 = vld [vmem:[#allocation2 + $0x188] sm:$0xff]
    %v132 = vld [vmem:[#allocation2 + $0x190] sm:$0xff]
    %v133 = vld [vmem:[#allocation2 + $0x198] sm:$0xff]
    %v134 = vld [vmem:[#allocation2 + $0x1a0] sm:$0xff]
    %v135 = vld [vmem:[#allocation2 + $0x1a8] sm:$0xff]
    %v136 = vld [vmem:[#allocation2 + $0x1b0] sm:$0xff]
    %v137 = vld [vmem:[#allocation2 + $0x1b8] sm:$0xff]
    %v138 = vld [vmem:[#allocation2 + $0x1c0] sm:$0xff]
    %v139 = vld [vmem:[#allocation2 + $0x1c8] sm:$0xff]
    %v140 = vld [vmem:[#allocation2 + $0x1d0] sm:$0xff]
    %v141 = vld [vmem:[#allocation2 + $0x1d8] sm:$0xff]
    %v142 = vld [vmem:[#allocation2 + $0x1e0] sm:$0xff]
    %v143 = vld [vmem:[#allocation2 + $0x1e8] sm:$0xff]
    %v144 = vld [vmem:[#allocation2 + $0x1f0] sm:$0xff]
    %v145 = vld [vmem:[#allocation2 + $0x1f8] sm:$0xff]
    %v146 = vpack.c.bf16 %v84, %v82
    %v147 = vpack.c.bf16 %v85, %v83
    %v148 = vpack.c.bf16 %v88, %v86
    %v149 = vpack.c.bf16 %v89, %v87
    %v150 = vpack.c.bf16 %v92, %v90
    %v151 = vpack.c.bf16 %v93, %v91
    %v152 = vpack.c.bf16 %v96, %v94
    %v153 = vpack.c.bf16 %v97, %v95
    %v154 = vpack.c.bf16 %v100, %v98
    %v155 = vpack.c.bf16 %v101, %v99
    %v156 = vpack.c.bf16 %v104, %v102
    %v157 = vpack.c.bf16 %v105, %v103
    %v158 = vpack.c.bf16 %v108, %v106
    %v159 = vpack.c.bf16 %v109, %v107
    %v160 = vpack.c.bf16 %v112, %v110
    %v161 = vpack.c.bf16 %v113, %v111
    %v162 = vpack.c.bf16 %v116, %v114
    %v163 = vpack.c.bf16 %v117, %v115
    %v164 = vpack.c.bf16 %v120, %v118
    %v165 = vpack.c.bf16 %v121, %v119
    %v166 = vpack.c.bf16 %v124, %v122
    %v167 = vpack.c.bf16 %v125, %v123
    %v168 = vpack.c.bf16 %v128, %v126
    %v169 = vpack.c.bf16 %v129, %v127
    %v170 = vpack.c.bf16 %v132, %v130
    %v171 = vpack.c.bf16 %v133, %v131
    %v172 = vpack.c.bf16 %v136, %v134
    %v173 = vpack.c.bf16 %v137, %v135
    %v174 = vpack.c.bf16 %v140, %v138
    %v175 = vpack.c.bf16 %v141, %v139
    %v176 = vpack.c.bf16 %v144, %v142
    %v177 = vpack.c.bf16 %v145, %v143
    %v178 = vld [vmem:[#allocation5] sm:$0xff]
    %v179 = vld [vmem:[#allocation5 + $0x8] sm:$0xff]
    %v180 = vld [vmem:[#allocation5 + $0x10] sm:$0xff]
    %v181 = vld [vmem:[#allocation5 + $0x18] sm:$0xff]
    %v182 = vld [vmem:[#allocation5 + $0x20] sm:$0xff]
    %v183 = vld [vmem:[#allocation5 + $0x28] sm:$0xff]
    %v184 = vld [vmem:[#allocation5 + $0x30] sm:$0xff]
    %v185 = vld [vmem:[#allocation5 + $0x38] sm:$0xff]
    %v186 = vld [vmem:[#allocation5 + $0x40] sm:$0xff]
    %v187 = vld [vmem:[#allocation5 + $0x48] sm:$0xff]
    %v188 = vld [vmem:[#allocation5 + $0x50] sm:$0xff]
    %v189 = vld [vmem:[#allocation5 + $0x58] sm:$0xff]
    %v190 = vld [vmem:[#allocation5 + $0x60] sm:$0xff]
    %v191 = vld [vmem:[#allocation5 + $0x68] sm:$0xff]
    %v192 = vld [vmem:[#allocation5 + $0x70] sm:$0xff]
    %v193 = vld [vmem:[#allocation5 + $0x78] sm:$0xff]
    %v194 = vld [vmem:[#allocation5 + $0x80] sm:$0xff]
    %v195 = vld [vmem:[#allocation5 + $0x88] sm:$0xff]
    %v196 = vld [vmem:[#allocation5 + $0x90] sm:$0xff]
    %v197 = vld [vmem:[#allocation5 + $0x98] sm:$0xff]
    %v198 = vld [vmem:[#allocation5 + $0xa0] sm:$0xff]
    %v199 = vld [vmem:[#allocation5 + $0xa8] sm:$0xff]
    %v200 = vld [vmem:[#allocation5 + $0xb0] sm:$0xff]
    %v201 = vld [vmem:[#allocation5 + $0xb8] sm:$0xff]
    %v202 = vld [vmem:[#allocation5 + $0xc0] sm:$0xff]
    %v203 = vld [vmem:[#allocation5 + $0xc8] sm:$0xff]
    %v204 = vld [vmem:[#allocation5 + $0xd0] sm:$0xff]
    %v205 = vld [vmem:[#allocation5 + $0xd8] sm:$0xff]
    %v206 = vld [vmem:[#allocation5 + $0xe0] sm:$0xff]
    %v207 = vld [vmem:[#allocation5 + $0xe8] sm:$0xff]
    %v208 = vld [vmem:[#allocation5 + $0xf0] sm:$0xff]
    %v209 = vld [vmem:[#allocation5 + $0xf8] sm:$0xff]
    %v210 = vld [vmem:[#allocation7] sm:$0x3]
    %v212 = vperm.slane %v210, 0
    %v213 = vperm.slane %v210, 1
    %v248 = vunpack.c.l.b16 %v178
    %v249 = vunpack.c.h.b16 %v178
    %v250 = vunpack.c.l.b16 %v179
    %v251 = vunpack.c.h.b16 %v179
    %v252 = vunpack.c.l.b16 %v180
    %v253 = vunpack.c.h.b16 %v180
    %v254 = vunpack.c.l.b16 %v181
    %v255 = vunpack.c.h.b16 %v181
    %v256 = vunpack.c.l.b16 %v182
    %v257 = vunpack.c.h.b16 %v182
    %v258 = vunpack.c.l.b16 %v183
    %v259 = vunpack.c.h.b16 %v183
    %v260 = vunpack.c.l.b16 %v184
    %v261 = vunpack.c.h.b16 %v184
    %v262 = vunpack.c.l.b16 %v185
    %v263 = vunpack.c.h.b16 %v185
    %v264 = vunpack.c.l.b16 %v186
    %v265 = vunpack.c.h.b16 %v186
    %v266 = vunpack.c.l.b16 %v187
    %v267 = vunpack.c.h.b16 %v187
    %v268 = vunpack.c.l.b16 %v188
    %v269 = vunpack.c.h.b16 %v188
    %v270 = vunpack.c.l.b16 %v189
    %v271 = vunpack.c.h.b16 %v189
    %v272 = vunpack.c.l.b16 %v190
    %v273 = vunpack.c.h.b16 %v190
    %v274 = vunpack.c.l.b16 %v191
    %v275 = vunpack.c.h.b16 %v191
    %v276 = vunpack.c.l.b16 %v192
    %v277 = vunpack.c.h.b16 %v192
    %v278 = vunpack.c.l.b16 %v193
    %v279 = vunpack.c.h.b16 %v193
    %v280 = vunpack.c.l.b16 %v194
    %v281 = vunpack.c.h.b16 %v194
    %v282 = vunpack.c.l.b16 %v195
    %v283 = vunpack.c.h.b16 %v195
    %v284 = vunpack.c.l.b16 %v196
    %v285 = vunpack.c.h.b16 %v196
    %v286 = vunpack.c.l.b16 %v197
    %v287 = vunpack.c.h.b16 %v197
    %v288 = vunpack.c.l.b16 %v198
    %v289 = vunpack.c.h.b16 %v198
    %v290 = vunpack.c.l.b16 %v199
    %v291 = vunpack.c.h.b16 %v199
    %v292 = vunpack.c.l.b16 %v200
    %v293 = vunpack.c.h.b16 %v200
    %v294 = vunpack.c.l.b16 %v201
    %v295 = vunpack.c.h.b16 %v201
    %v296 = vunpack.c.l.b16 %v202
    %v297 = vunpack.c.h.b16 %v202
    %v298 = vunpack.c.l.b16 %v203
    %v299 = vunpack.c.h.b16 %v203
    %v300 = vunpack.c.l.b16 %v204
    %v301 = vunpack.c.h.b16 %v204
    %v302 = vunpack.c.l.b16 %v205
    %v303 = vunpack.c.h.b16 %v205
    %v304 = vunpack.c.l.b16 %v206
    %v305 = vunpack.c.h.b16 %v206
    %v306 = vunpack.c.l.b16 %v207
    %v307 = vunpack.c.h.b16 %v207
    %v308 = vunpack.c.l.b16 %v208
    %v309 = vunpack.c.h.b16 %v208
    %v310 = vunpack.c.l.b16 %v209
    %v311 = vunpack.c.h.b16 %v209
    %v312 = vpack.c.b16 %v250, %v248
    %v313 = vpack.c.b16 %v251, %v249
    %v314 = vpack.c.b16 %v254, %v252
    %v315 = vpack.c.b16 %v255, %v253
    %v316 = vpack.c.b16 %v258, %v256
    %v317 = vpack.c.b16 %v259, %v257
    %v318 = vpack.c.b16 %v262, %v260
    %v319 = vpack.c.b16 %v263, %v261
    %v320 = vpack.c.b16 %v266, %v264
    %v321 = vpack.c.b16 %v267, %v265
    %v322 = vpack.c.b16 %v270, %v268
    %v323 = vpack.c.b16 %v271, %v269
    %v324 = vpack.c.b16 %v274, %v272
    %v325 = vpack.c.b16 %v275, %v273
    %v326 = vpack.c.b16 %v278, %v276
    %v327 = vpack.c.b16 %v279, %v277
    %v328 = vpack.c.b16 %v282, %v280
    %v329 = vpack.c.b16 %v283, %v281
    %v330 = vpack.c.b16 %v286, %v284
    %v331 = vpack.c.b16 %v287, %v285
    %v332 = vpack.c.b16 %v290, %v288
    %v333 = vpack.c.b16 %v291, %v289
    %v334 = vpack.c.b16 %v294, %v292
    %v335 = vpack.c.b16 %v295, %v293
    %v336 = vpack.c.b16 %v298, %v296
    %v337 = vpack.c.b16 %v299, %v297
    %v338 = vpack.c.b16 %v302, %v300
    %v339 = vpack.c.b16 %v303, %v301
    %v340 = vpack.c.b16 %v306, %v304
    %v341 = vpack.c.b16 %v307, %v305
    %v342 = vpack.c.b16 %v310, %v308
    %v343 = vpack.c.b16 %v311, %v309
    %376 = vmatpush.bf16.msra.mxu0 %v326
    %377 = vmatpush.bf16.msra.mxu0 %v324
    %378 = vmatpush.bf16.msra.mxu0 %v322
    %379 = vmatpush.bf16.msra.mxu0 %v320
    %380 = vmatpush.bf16.msra.mxu0 %v318
    %381 = vmatpush.bf16.msra.mxu0 %v316
    %382 = vmatpush.bf16.msra.mxu0 %v314
    %383 = vmatpush.bf16.msra.mxu0 %v312
    %384 = vmatmul.bf16.gmra.mxu0 %v146
    %v385 = vpop.f32.mrf.mxu0
    %v386 = vadd.f32 %v212, %v385
    %v387 = vpop.f32.mrf.mxu0
    %v388 = vadd.f32 %v212, %v387
    %389 = vmatmul.bf16.gmra.mxu0 %v148
    %v390 = vpop.f32.mrf.mxu0
    %v391 = vadd.f32 %v212, %v390
    %v392 = vpop.f32.mrf.mxu0
    %v393 = vadd.f32 %v212, %v392
    %394 = vmatmul.bf16.gmra.mxu0 %v150
    %v395 = vpop.f32.mrf.mxu0
    %v396 = vadd.f32 %v212, %v395
    %v397 = vpop.f32.mrf.mxu0
    %v398 = vadd.f32 %v212, %v397
    %399 = vmatmul.bf16.gmra.mxu0 %v152
    %v400 = vpop.f32.mrf.mxu0
    %v401 = vadd.f32 %v212, %v400
    %v402 = vpop.f32.mrf.mxu0
    %v403 = vadd.f32 %v212, %v402
    %404 = vmatmul.bf16.gmra.mxu0 %v154
    %v405 = vpop.f32.mrf.mxu0
    %v406 = vadd.f32 %v212, %v405
    %v407 = vpop.f32.mrf.mxu0
    %v408 = vadd.f32 %v212, %v407
    %409 = vmatmul.bf16.gmra.mxu0 %v156
    %v410 = vpop.f32.mrf.mxu0
    %v411 = vadd.f32 %v212, %v410
    %v412 = vpop.f32.mrf.mxu0
    %v413 = vadd.f32 %v212, %v412
    %414 = vmatmul.bf16.gmra.mxu0 %v158
    %v415 = vpop.f32.mrf.mxu0
    %v416 = vadd.f32 %v212, %v415
    %v417 = vpop.f32.mrf.mxu0
    %v418 = vadd.f32 %v212, %v417
    %419 = vmatmul.bf16.gmra.mxu0 %v160
    %v420 = vpop.f32.mrf.mxu0
    %v421 = vadd.f32 %v212, %v420
    %v422 = vpop.f32.mrf.mxu0
    %v423 = vadd.f32 %v212, %v422
    %424 = vmatmul.bf16.gmra.mxu0 %v162
    %v425 = vpop.f32.mrf.mxu0
    %v426 = vadd.f32 %v212, %v425
    %v427 = vpop.f32.mrf.mxu0
    %v428 = vadd.f32 %v212, %v427
    %429 = vmatmul.bf16.gmra.mxu0 %v164
    %v430 = vpop.f32.mrf.mxu0
    %v431 = vadd.f32 %v212, %v430
    %v432 = vpop.f32.mrf.mxu0
    %v433 = vadd.f32 %v212, %v432
    %434 = vmatmul.bf16.gmra.mxu0 %v166
    %v435 = vpop.f32.mrf.mxu0
    %v436 = vadd.f32 %v212, %v435
    %v437 = vpop.f32.mrf.mxu0
    %v438 = vadd.f32 %v212, %v437
    %439 = vmatmul.bf16.gmra.mxu0 %v168
    %v440 = vpop.f32.mrf.mxu0
    %v441 = vadd.f32 %v212, %v440
    %v442 = vpop.f32.mrf.mxu0
    %v443 = vadd.f32 %v212, %v442
    %444 = vmatmul.bf16.gmra.mxu0 %v170
    %v445 = vpop.f32.mrf.mxu0
    %v446 = vadd.f32 %v212, %v445
    %v447 = vpop.f32.mrf.mxu0
    %v448 = vadd.f32 %v212, %v447
    %449 = vmatmul.bf16.gmra.mxu0 %v172
    %v450 = vpop.f32.mrf.mxu0
    %v451 = vadd.f32 %v212, %v450
    %v452 = vpop.f32.mrf.mxu0
    %v453 = vadd.f32 %v212, %v452
    %454 = vmatmul.bf16.gmra.mxu0 %v174
    %v455 = vpop.f32.mrf.mxu0
    %v456 = vadd.f32 %v212, %v455
    %v457 = vpop.f32.mrf.mxu0
    %v458 = vadd.f32 %v212, %v457
    %459 = vmatmul.bf16.gmra.mxu0 %v176
    %v460 = vpop.f32.mrf.mxu0
    %v461 = vadd.f32 %v212, %v460
    %v462 = vpop.f32.mrf.mxu0
    %v463 = vadd.f32 %v212, %v462
    %464 = vdwg.mxu0
    %465 = vmatpush.bf16.msra.mxu0 %v342
    %466 = vmatpush.bf16.msra.mxu0 %v340
    %467 = vmatpush.bf16.msra.mxu0 %v338
    %468 = vmatpush.bf16.msra.mxu0 %v336
    %469 = vmatpush.bf16.msra.mxu0 %v334
    %470 = vmatpush.bf16.msra.mxu0 %v332
    %471 = vmatpush.bf16.msra.mxu0 %v330
    %472 = vmatpush.bf16.msra.mxu0 %v328
    %473 = vmatmul.bf16.gmra.mxu0 %v147
    %v474 = vpop.f32.mrf.mxu0
    %v475 = vadd.f32 %v386, %v474
    %v476 = vpop.f32.mrf.mxu0
    %v477 = vadd.f32 %v388, %v476
    %478 = vmatmul.bf16.gmra.mxu0 %v149
    %v479 = vpop.f32.mrf.mxu0
    %v480 = vadd.f32 %v391, %v479
    %v481 = vpop.f32.mrf.mxu0
    %v482 = vadd.f32 %v393, %v481
    %483 = vmatmul.bf16.gmra.mxu0 %v151
    %v484 = vpop.f32.mrf.mxu0
    %v485 = vadd.f32 %v396, %v484
    %v486 = vpop.f32.mrf.mxu0
    %v487 = vadd.f32 %v398, %v486
    %488 = vmatmul.bf16.gmra.mxu0 %v153
    %v489 = vpop.f32.mrf.mxu0
    %v490 = vadd.f32 %v401, %v489
    %v491 = vpop.f32.mrf.mxu0
    %v492 = vadd.f32 %v403, %v491
    %493 = vmatmul.bf16.gmra.mxu0 %v155
    %v494 = vpop.f32.mrf.mxu0
    %v495 = vadd.f32 %v406, %v494
    %v496 = vpop.f32.mrf.mxu0
    %v497 = vadd.f32 %v408, %v496
    %498 = vmatmul.bf16.gmra.mxu0 %v157
    %v499 = vpop.f32.mrf.mxu0
    %v500 = vadd.f32 %v411, %v499
    %v501 = vpop.f32.mrf.mxu0
    %v502 = vadd.f32 %v413, %v501
    %503 = vmatmul.bf16.gmra.mxu0 %v159
    %v504 = vpop.f32.mrf.mxu0
    %v505 = vadd.f32 %v416, %v504
    %v506 = vpop.f32.mrf.mxu0
    %v507 = vadd.f32 %v418, %v506
    %508 = vmatmul.bf16.gmra.mxu0 %v161
    %v509 = vpop.f32.mrf.mxu0
    %v510 = vadd.f32 %v421, %v509
    %v511 = vpop.f32.mrf.mxu0
    %v512 = vadd.f32 %v423, %v511
    %513 = vmatmul.bf16.gmra.mxu0 %v163
    %v514 = vpop.f32.mrf.mxu0
    %v515 = vadd.f32 %v426, %v514
    %v516 = vpop.f32.mrf.mxu0
    %v517 = vadd.f32 %v428, %v516
    %518 = vmatmul.bf16.gmra.mxu0 %v165
    %v519 = vpop.f32.mrf.mxu0
    %v520 = vadd.f32 %v431, %v519
    %v521 = vpop.f32.mrf.mxu0
    %v522 = vadd.f32 %v433, %v521
    %523 = vmatmul.bf16.gmra.mxu0 %v167
    %v524 = vpop.f32.mrf.mxu0
    %v525 = vadd.f32 %v436, %v524
    %v526 = vpop.f32.mrf.mxu0
    %v527 = vadd.f32 %v438, %v526
    %528 = vmatmul.bf16.gmra.mxu0 %v169
    %v529 = vpop.f32.mrf.mxu0
    %v530 = vadd.f32 %v441, %v529
    %v531 = vpop.f32.mrf.mxu0
    %v532 = vadd.f32 %v443, %v531
    %533 = vmatmul.bf16.gmra.mxu0 %v171
    %v534 = vpop.f32.mrf.mxu0
    %v535 = vadd.f32 %v446, %v534
    %v536 = vpop.f32.mrf.mxu0
    %v537 = vadd.f32 %v448, %v536
    %538 = vmatmul.bf16.gmra.mxu0 %v173
    %v539 = vpop.f32.mrf.mxu0
    %v540 = vadd.f32 %v451, %v539
    %v541 = vpop.f32.mrf.mxu0
    %v542 = vadd.f32 %v453, %v541
    %543 = vmatmul.bf16.gmra.mxu0 %v175
    %v544 = vpop.f32.mrf.mxu0
    %v545 = vadd.f32 %v456, %v544
    %v546 = vpop.f32.mrf.mxu0
    %v547 = vadd.f32 %v458, %v546
    %548 = vmatmul.bf16.gmra.mxu0 %v177
    %v549 = vpop.f32.mrf.mxu0
    %v550 = vadd.f32 %v461, %v549
    %v551 = vpop.f32.mrf.mxu0
    %v552 = vadd.f32 %v463, %v551
    %553 = vdwg.mxu0
    %554 = vmatpush.bf16.msra.mxu0 %v327
    %555 = vmatpush.bf16.msra.mxu0 %v325
    %556 = vmatpush.bf16.msra.mxu0 %v323
    %557 = vmatpush.bf16.msra.mxu0 %v321
    %558 = vmatpush.bf16.msra.mxu0 %v319
    %559 = vmatpush.bf16.msra.mxu0 %v317
    %560 = vmatpush.bf16.msra.mxu0 %v315
    %561 = vmatpush.bf16.msra.mxu0 %v313
    %562 = vmatmul.bf16.gmra.mxu0 %v146
    %v563 = vpop.f32.mrf.mxu0
    %v564 = vadd.f32 %v213, %v563
    %v565 = vpop.f32.mrf.mxu0
    %v566 = vadd.f32 %v213, %v565
    %567 = vmatmul.bf16.gmra.mxu0 %v148
    %v568 = vpop.f32.mrf.mxu0
    %v569 = vadd.f32 %v213, %v568
    %v570 = vpop.f32.mrf.mxu0
    %v571 = vadd.f32 %v213, %v570
    %572 = vmatmul.bf16.gmra.mxu0 %v150
    %v573 = vpop.f32.mrf.mxu0
    %v574 = vadd.f32 %v213, %v573
    %v575 = vpop.f32.mrf.mxu0
    %v576 = vadd.f32 %v213, %v575
    %577 = vmatmul.bf16.gmra.mxu0 %v152
    %v578 = vpop.f32.mrf.mxu0
    %v579 = vadd.f32 %v213, %v578
    %v580 = vpop.f32.mrf.mxu0
    %v581 = vadd.f32 %v213, %v580
    %582 = vmatmul.bf16.gmra.mxu0 %v154
    %v583 = vpop.f32.mrf.mxu0
    %v584 = vadd.f32 %v213, %v583
    %v585 = vpop.f32.mrf.mxu0
    %v586 = vadd.f32 %v213, %v585
    %587 = vmatmul.bf16.gmra.mxu0 %v156
    %v588 = vpop.f32.mrf.mxu0
    %v589 = vadd.f32 %v213, %v588
    %v590 = vpop.f32.mrf.mxu0
    %v591 = vadd.f32 %v213, %v590
    %592 = vmatmul.bf16.gmra.mxu0 %v158
    %v593 = vpop.f32.mrf.mxu0
    %v594 = vadd.f32 %v213, %v593
    %v595 = vpop.f32.mrf.mxu0
    %v596 = vadd.f32 %v213, %v595
    %597 = vmatmul.bf16.gmra.mxu0 %v160
    %v598 = vpop.f32.mrf.mxu0
    %v599 = vadd.f32 %v213, %v598
    %v600 = vpop.f32.mrf.mxu0
    %v601 = vadd.f32 %v213, %v600
    %602 = vmatmul.bf16.gmra.mxu0 %v162
    %v603 = vpop.f32.mrf.mxu0
    %v604 = vadd.f32 %v213, %v603
    %v605 = vpop.f32.mrf.mxu0
    %v606 = vadd.f32 %v213, %v605
    %607 = vmatmul.bf16.gmra.mxu0 %v164
    %v608 = vpop.f32.mrf.mxu0
    %v609 = vadd.f32 %v213, %v608
    %v610 = vpop.f32.mrf.mxu0
    %v611 = vadd.f32 %v213, %v610
    %612 = vmatmul.bf16.gmra.mxu0 %v166
    %v613 = vpop.f32.mrf.mxu0
    %v614 = vadd.f32 %v213, %v613
    %v615 = vpop.f32.mrf.mxu0
    %v616 = vadd.f32 %v213, %v615
    %617 = vmatmul.bf16.gmra.mxu0 %v168
    %v618 = vpop.f32.mrf.mxu0
    %v619 = vadd.f32 %v213, %v618
    %v620 = vpop.f32.mrf.mxu0
    %v621 = vadd.f32 %v213, %v620
    %622 = vmatmul.bf16.gmra.mxu0 %v170
    %v623 = vpop.f32.mrf.mxu0
    %v624 = vadd.f32 %v213, %v623
    %v625 = vpop.f32.mrf.mxu0
    %v626 = vadd.f32 %v213, %v625
    %627 = vmatmul.bf16.gmra.mxu0 %v172
    %v628 = vpop.f32.mrf.mxu0
    %v629 = vadd.f32 %v213, %v628
    %v630 = vpop.f32.mrf.mxu0
    %v631 = vadd.f32 %v213, %v630
    %632 = vmatmul.bf16.gmra.mxu0 %v174
    %v633 = vpop.f32.mrf.mxu0
    %v634 = vadd.f32 %v213, %v633
    %v635 = vpop.f32.mrf.mxu0
    %v636 = vadd.f32 %v213, %v635
    %637 = vmatmul.bf16.gmra.mxu0 %v176
    %v638 = vpop.f32.mrf.mxu0
    %v639 = vadd.f32 %v213, %v638
    %v640 = vpop.f32.mrf.mxu0
    %v641 = vadd.f32 %v213, %v640
    %642 = vdwg.mxu0
    %643 = vmatpush.bf16.msra.mxu0 %v343
    %644 = vmatpush.bf16.msra.mxu0 %v341
    %645 = vmatpush.bf16.msra.mxu0 %v339
    %646 = vmatpush.bf16.msra.mxu0 %v337
    %647 = vmatpush.bf16.msra.mxu0 %v335
    %648 = vmatpush.bf16.msra.mxu0 %v333
    %649 = vmatpush.bf16.msra.mxu0 %v331
    %650 = vmatpush.bf16.msra.mxu0 %v329
    %651 = vmatmul.bf16.gmra.mxu0 %v147
    %v652 = vpop.f32.mrf.mxu0
    %v653 = vadd.f32 %v564, %v652
    %v654 = vpop.f32.mrf.mxu0
    %v655 = vadd.f32 %v566, %v654
    %656 = vmatmul.bf16.gmra.mxu0 %v149
    %v657 = vpop.f32.mrf.mxu0
    %v658 = vadd.f32 %v569, %v657
    %v659 = vpop.f32.mrf.mxu0
    %v660 = vadd.f32 %v571, %v659
    %661 = vmatmul.bf16.gmra.mxu0 %v151
    %v662 = vpop.f32.mrf.mxu0
    %v663 = vadd.f32 %v574, %v662
    %v664 = vpop.f32.mrf.mxu0
    %v665 = vadd.f32 %v576, %v664
    %666 = vmatmul.bf16.gmra.mxu0 %v153
    %v667 = vpop.f32.mrf.mxu0
    %v668 = vadd.f32 %v579, %v667
    %v669 = vpop.f32.mrf.mxu0
    %v670 = vadd.f32 %v581, %v669
    %671 = vmatmul.bf16.gmra.mxu0 %v155
    %v672 = vpop.f32.mrf.mxu0
    %v673 = vadd.f32 %v584, %v672
    %v674 = vpop.f32.mrf.mxu0
    %v675 = vadd.f32 %v586, %v674
    %676 = vmatmul.bf16.gmra.mxu0 %v157
    %v677 = vpop.f32.mrf.mxu0
    %v678 = vadd.f32 %v589, %v677
    %v679 = vpop.f32.mrf.mxu0
    %v680 = vadd.f32 %v591, %v679
    %681 = vmatmul.bf16.gmra.mxu0 %v159
    %v682 = vpop.f32.mrf.mxu0
    %v683 = vadd.f32 %v594, %v682
    %v684 = vpop.f32.mrf.mxu0
    %v685 = vadd.f32 %v596, %v684
    %686 = vmatmul.bf16.gmra.mxu0 %v161
    %v687 = vpop.f32.mrf.mxu0
    %v688 = vadd.f32 %v599, %v687
    %v689 = vpop.f32.mrf.mxu0
    %v690 = vadd.f32 %v601, %v689
    %691 = vmatmul.bf16.gmra.mxu0 %v163
    %v692 = vpop.f32.mrf.mxu0
    %v693 = vadd.f32 %v604, %v692
    %v694 = vpop.f32.mrf.mxu0
    %v695 = vadd.f32 %v606, %v694
    %696 = vmatmul.bf16.gmra.mxu0 %v165
    %v697 = vpop.f32.mrf.mxu0
    %v698 = vadd.f32 %v609, %v697
    %v699 = vpop.f32.mrf.mxu0
    %v700 = vadd.f32 %v611, %v699
    %701 = vmatmul.bf16.gmra.mxu0 %v167
    %v702 = vpop.f32.mrf.mxu0
    %v703 = vadd.f32 %v614, %v702
    %v704 = vpop.f32.mrf.mxu0
    %v705 = vadd.f32 %v616, %v704
    %706 = vmatmul.bf16.gmra.mxu0 %v169
    %v707 = vpop.f32.mrf.mxu0
    %v708 = vadd.f32 %v619, %v707
    %v709 = vpop.f32.mrf.mxu0
    %v710 = vadd.f32 %v621, %v709
    %711 = vmatmul.bf16.gmra.mxu0 %v171
    %v712 = vpop.f32.mrf.mxu0
    %v713 = vadd.f32 %v624, %v712
    %v714 = vpop.f32.mrf.mxu0
    %v715 = vadd.f32 %v626, %v714
    %716 = vmatmul.bf16.gmra.mxu0 %v173
    %v717 = vpop.f32.mrf.mxu0
    %v718 = vadd.f32 %v629, %v717
    %v719 = vpop.f32.mrf.mxu0
    %v720 = vadd.f32 %v631, %v719
    %721 = vmatmul.bf16.gmra.mxu0 %v175
    %v722 = vpop.f32.mrf.mxu0
    %v723 = vadd.f32 %v634, %v722
    %v724 = vpop.f32.mrf.mxu0
    %v725 = vadd.f32 %v636, %v724
    %726 = vmatmul.bf16.gmra.mxu0 %v177
    %v727 = vpop.f32.mrf.mxu0
    %v728 = vadd.f32 %v639, %v727
    %v729 = vpop.f32.mrf.mxu0
    %v730 = vadd.f32 %v641, %v729
    %731 = vdwg.mxu0
    %v732 = vmax.f32 %v475, 0.0
    %v733 = vmax.f32 %v653, 0.0
    %v734 = vmax.f32 %v477, 0.0
    %v735 = vmax.f32 %v655, 0.0
    %v736 = vmax.f32 %v480, 0.0
    %v737 = vmax.f32 %v658, 0.0
    %v738 = vmax.f32 %v482, 0.0
    %v739 = vmax.f32 %v660, 0.0
    %v740 = vmax.f32 %v485, 0.0
    %v741 = vmax.f32 %v663, 0.0
    %v742 = vmax.f32 %v487, 0.0
    %v743 = vmax.f32 %v665, 0.0
    %v744 = vmax.f32 %v490, 0.0
    %v745 = vmax.f32 %v668, 0.0
    %v746 = vmax.f32 %v492, 0.0
    %v747 = vmax.f32 %v670, 0.0
    %v748 = vmax.f32 %v495, 0.0
    %v749 = vmax.f32 %v673, 0.0
    %v750 = vmax.f32 %v497, 0.0
    %v751 = vmax.f32 %v675, 0.0
    %v752 = vmax.f32 %v500, 0.0
    %v753 = vmax.f32 %v678, 0.0
    %v754 = vmax.f32 %v502, 0.0
    %v755 = vmax.f32 %v680, 0.0
    %v756 = vmax.f32 %v505, 0.0
    %v757 = vmax.f32 %v683, 0.0
    %v758 = vmax.f32 %v507, 0.0
    %v759 = vmax.f32 %v685, 0.0
    %v760 = vmax.f32 %v510, 0.0
    %v761 = vmax.f32 %v688, 0.0
    %v762 = vmax.f32 %v512, 0.0
    %v763 = vmax.f32 %v690, 0.0
    %v764 = vmax.f32 %v515, 0.0
    %v765 = vmax.f32 %v693, 0.0
    %v766 = vmax.f32 %v517, 0.0
    %v767 = vmax.f32 %v695, 0.0
    %v768 = vmax.f32 %v520, 0.0
    %v769 = vmax.f32 %v698, 0.0
    %v770 = vmax.f32 %v522, 0.0
    %v771 = vmax.f32 %v700, 0.0
    %v772 = vmax.f32 %v525, 0.0
    %v773 = vmax.f32 %v703, 0.0
    %v774 = vmax.f32 %v527, 0.0
    %v775 = vmax.f32 %v705, 0.0
    %v776 = vmax.f32 %v530, 0.0
    %v777 = vmax.f32 %v708, 0.0
    %v778 = vmax.f32 %v532, 0.0
    %v779 = vmax.f32 %v710, 0.0
    %v780 = vmax.f32 %v535, 0.0
    %v781 = vmax.f32 %v713, 0.0
    %v782 = vmax.f32 %v537, 0.0
    %v783 = vmax.f32 %v715, 0.0
    %v784 = vmax.f32 %v540, 0.0
    %v785 = vmax.f32 %v718, 0.0
    %v786 = vmax.f32 %v542, 0.0
    %v787 = vmax.f32 %v720, 0.0
    %v788 = vmax.f32 %v545, 0.0
    %v789 = vmax.f32 %v723, 0.0
    %v790 = vmax.f32 %v547, 0.0
    %v791 = vmax.f32 %v725, 0.0
    %v792 = vmax.f32 %v550, 0.0
    %v793 = vmax.f32 %v728, 0.0
    %v794 = vmax.f32 %v552, 0.0
    %v795 = vmax.f32 %v730, 0.0
    %v796 = vpack.c.bf16 %v734, %v732
    %v797 = vpack.c.bf16 %v735, %v733
    %v798 = vpack.c.bf16 %v738, %v736
    %v799 = vpack.c.bf16 %v739, %v737
    %v800 = vpack.c.bf16 %v742, %v740
    %v801 = vpack.c.bf16 %v743, %v741
    %v802 = vpack.c.bf16 %v746, %v744
    %v803 = vpack.c.bf16 %v747, %v745
    %v804 = vpack.c.bf16 %v750, %v748
    %v805 = vpack.c.bf16 %v751, %v749
    %v806 = vpack.c.bf16 %v754, %v752
    %v807 = vpack.c.bf16 %v755, %v753
    %v808 = vpack.c.bf16 %v758, %v756
    %v809 = vpack.c.bf16 %v759, %v757
    %v810 = vpack.c.bf16 %v762, %v760
    %v811 = vpack.c.bf16 %v763, %v761
    %v812 = vpack.c.bf16 %v766, %v764
    %v813 = vpack.c.bf16 %v767, %v765
    %v814 = vpack.c.bf16 %v770, %v768
    %v815 = vpack.c.bf16 %v771, %v769
    %v816 = vpack.c.bf16 %v774, %v772
    %v817 = vpack.c.bf16 %v775, %v773
    %v818 = vpack.c.bf16 %v778, %v776
    %v819 = vpack.c.bf16 %v779, %v777
    %v820 = vpack.c.bf16 %v782, %v780
    %v821 = vpack.c.bf16 %v783, %v781
    %v822 = vpack.c.bf16 %v786, %v784
    %v823 = vpack.c.bf16 %v787, %v785
    %v824 = vpack.c.bf16 %v790, %v788
    %v825 = vpack.c.bf16 %v791, %v789
    %v826 = vpack.c.bf16 %v794, %v792
    %v827 = vpack.c.bf16 %v795, %v793
    %v828 = vld [vmem:[#allocation8] sm:$0xff]
    %v829 = vld [vmem:[#allocation8 + $0x8] sm:$0xff]
    %v830 = vld [vmem:[#allocation8 + $0x10] sm:$0xff]
    %v831 = vld [vmem:[#allocation8 + $0x18] sm:$0xff]
    %v832 = vld [vmem:[#allocation8 + $0x20] sm:$0xff]
    %v833 = vld [vmem:[#allocation8 + $0x28] sm:$0xff]
    %v834 = vld [vmem:[#allocation8 + $0x30] sm:$0xff]
    %v835 = vld [vmem:[#allocation8 + $0x38] sm:$0xff]
    %v836 = vld [vmem:[#allocation8 + $0x40] sm:$0xff]
    %v837 = vld [vmem:[#allocation8 + $0x48] sm:$0xff]
    %v838 = vld [vmem:[#allocation8 + $0x50] sm:$0xff]
    %v839 = vld [vmem:[#allocation8 + $0x58] sm:$0xff]
    %v840 = vld [vmem:[#allocation8 + $0x60] sm:$0xff]
    %v841 = vld [vmem:[#allocation8 + $0x68] sm:$0xff]
    %v842 = vld [vmem:[#allocation8 + $0x70] sm:$0xff]
    %v843 = vld [vmem:[#allocation8 + $0x78] sm:$0xff]
    %v844 = vld [vmem:[#allocation8 + $0x80] sm:$0xff]
    %v845 = vld [vmem:[#allocation8 + $0x88] sm:$0xff]
    %v846 = vld [vmem:[#allocation8 + $0x90] sm:$0xff]
    %v847 = vld [vmem:[#allocation8 + $0x98] sm:$0xff]
    %v848 = vld [vmem:[#allocation8 + $0xa0] sm:$0xff]
    %v849 = vld [vmem:[#allocation8 + $0xa8] sm:$0xff]
    %v850 = vld [vmem:[#allocation8 + $0xb0] sm:$0xff]
    %v851 = vld [vmem:[#allocation8 + $0xb8] sm:$0xff]
    %v852 = vld [vmem:[#allocation8 + $0xc0] sm:$0xff]
    %v853 = vld [vmem:[#allocation8 + $0xc8] sm:$0xff]
    %v854 = vld [vmem:[#allocation8 + $0xd0] sm:$0xff]
    %v855 = vld [vmem:[#allocation8 + $0xd8] sm:$0xff]
    %v856 = vld [vmem:[#allocation8 + $0xe0] sm:$0xff]
    %v857 = vld [vmem:[#allocation8 + $0xe8] sm:$0xff]
    %v858 = vld [vmem:[#allocation8 + $0xf0] sm:$0xff]
    %v859 = vld [vmem:[#allocation8 + $0xf8] sm:$0xff]
    %v860 = vld [vmem:[%s4] sm:$0x3]
    %v862 = vperm.slane %v860, 0
    %v863 = vperm.slane %v860, 1
    %v898 = vunpack.c.l.b16 %v828
    %v899 = vunpack.c.h.b16 %v828
    %v900 = vunpack.c.l.b16 %v829
    %v901 = vunpack.c.h.b16 %v829
    %v902 = vunpack.c.l.b16 %v830
    %v903 = vunpack.c.h.b16 %v830
    %v904 = vunpack.c.l.b16 %v831
    %v905 = vunpack.c.h.b16 %v831
    %v906 = vunpack.c.l.b16 %v832
    %v907 = vunpack.c.h.b16 %v832
    %v908 = vunpack.c.l.b16 %v833
    %v909 = vunpack.c.h.b16 %v833
    %v910 = vunpack.c.l.b16 %v834
    %v911 = vunpack.c.h.b16 %v834
    %v912 = vunpack.c.l.b16 %v835
    %v913 = vunpack.c.h.b16 %v835
    %v914 = vunpack.c.l.b16 %v836
    %v915 = vunpack.c.h.b16 %v836
    %v916 = vunpack.c.l.b16 %v837
    %v917 = vunpack.c.h.b16 %v837
    %v918 = vunpack.c.l.b16 %v838
    %v919 = vunpack.c.h.b16 %v838
    %v920 = vunpack.c.l.b16 %v839
    %v921 = vunpack.c.h.b16 %v839
    %v922 = vunpack.c.l.b16 %v840
    %v923 = vunpack.c.h.b16 %v840
    %v924 = vunpack.c.l.b16 %v841
    %v925 = vunpack.c.h.b16 %v841
    %v926 = vunpack.c.l.b16 %v842
    %v927 = vunpack.c.h.b16 %v842
    %v928 = vunpack.c.l.b16 %v843
    %v929 = vunpack.c.h.b16 %v843
    %v930 = vunpack.c.l.b16 %v844
    %v931 = vunpack.c.h.b16 %v844
    %v932 = vunpack.c.l.b16 %v845
    %v933 = vunpack.c.h.b16 %v845
    %v934 = vunpack.c.l.b16 %v846
    %v935 = vunpack.c.h.b16 %v846
    %v936 = vunpack.c.l.b16 %v847
    %v937 = vunpack.c.h.b16 %v847
    %v938 = vunpack.c.l.b16 %v848
    %v939 = vunpack.c.h.b16 %v848
    %v940 = vunpack.c.l.b16 %v849
    %v941 = vunpack.c.h.b16 %v849
    %v942 = vunpack.c.l.b16 %v850
    %v943 = vunpack.c.h.b16 %v850
    %v944 = vunpack.c.l.b16 %v851
    %v945 = vunpack.c.h.b16 %v851
    %v946 = vunpack.c.l.b16 %v852
    %v947 = vunpack.c.h.b16 %v852
    %v948 = vunpack.c.l.b16 %v853
    %v949 = vunpack.c.h.b16 %v853
    %v950 = vunpack.c.l.b16 %v854
    %v951 = vunpack.c.h.b16 %v854
    %v952 = vunpack.c.l.b16 %v855
    %v953 = vunpack.c.h.b16 %v855
    %v954 = vunpack.c.l.b16 %v856
    %v955 = vunpack.c.h.b16 %v856
    %v956 = vunpack.c.l.b16 %v857
    %v957 = vunpack.c.h.b16 %v857
    %v958 = vunpack.c.l.b16 %v858
    %v959 = vunpack.c.h.b16 %v858
    %v960 = vunpack.c.l.b16 %v859
    %v961 = vunpack.c.h.b16 %v859
    %v962 = vpack.c.b16 %v900, %v898
    %v963 = vpack.c.b16 %v901, %v899
    %v964 = vpack.c.b16 %v904, %v902
    %v965 = vpack.c.b16 %v905, %v903
    %v966 = vpack.c.b16 %v908, %v906
    %v967 = vpack.c.b16 %v909, %v907
    %v968 = vpack.c.b16 %v912, %v910
    %v969 = vpack.c.b16 %v913, %v911
    %v970 = vpack.c.b16 %v916, %v914
    %v971 = vpack.c.b16 %v917, %v915
    %v972 = vpack.c.b16 %v920, %v918
    %v973 = vpack.c.b16 %v921, %v919
    %v974 = vpack.c.b16 %v924, %v922
    %v975 = vpack.c.b16 %v925, %v923
    %v976 = vpack.c.b16 %v928, %v926
    %v977 = vpack.c.b16 %v929, %v927
    %v978 = vpack.c.b16 %v932, %v930
    %v979 = vpack.c.b16 %v933, %v931
    %v980 = vpack.c.b16 %v936, %v934
    %v981 = vpack.c.b16 %v937, %v935
    %v982 = vpack.c.b16 %v940, %v938
    %v983 = vpack.c.b16 %v941, %v939
    %v984 = vpack.c.b16 %v944, %v942
    %v985 = vpack.c.b16 %v945, %v943
    %v986 = vpack.c.b16 %v948, %v946
    %v987 = vpack.c.b16 %v949, %v947
    %v988 = vpack.c.b16 %v952, %v950
    %v989 = vpack.c.b16 %v953, %v951
    %v990 = vpack.c.b16 %v956, %v954
    %v991 = vpack.c.b16 %v957, %v955
    %v992 = vpack.c.b16 %v960, %v958
    %v993 = vpack.c.b16 %v961, %v959
    %1026 = vmatpush.bf16.msra.mxu0 %v976
    %1027 = vmatpush.bf16.msra.mxu0 %v974
    %1028 = vmatpush.bf16.msra.mxu0 %v972
    %1029 = vmatpush.bf16.msra.mxu0 %v970
    %1030 = vmatpush.bf16.msra.mxu0 %v968
    %1031 = vmatpush.bf16.msra.mxu0 %v966
    %1032 = vmatpush.bf16.msra.mxu0 %v964
    %1033 = vmatpush.bf16.msra.mxu0 %v962
    %1034 = vmatmul.bf16.gmra.mxu0 %v796
    %v1035 = vpop.f32.mrf.mxu0
    %v1036 = vadd.f32 %v862, %v1035
    %v1037 = vpop.f32.mrf.mxu0
    %v1038 = vadd.f32 %v862, %v1037
    %1039 = vmatmul.bf16.gmra.mxu0 %v798
    %v1040 = vpop.f32.mrf.mxu0
    %v1041 = vadd.f32 %v862, %v1040
    %v1042 = vpop.f32.mrf.mxu0
    %v1043 = vadd.f32 %v862, %v1042
    %1044 = vmatmul.bf16.gmra.mxu0 %v800
    %v1045 = vpop.f32.mrf.mxu0
    %v1046 = vadd.f32 %v862, %v1045
    %v1047 = vpop.f32.mrf.mxu0
    %v1048 = vadd.f32 %v862, %v1047
    %1049 = vmatmul.bf16.gmra.mxu0 %v802
    %v1050 = vpop.f32.mrf.mxu0
    %v1051 = vadd.f32 %v862, %v1050
    %v1052 = vpop.f32.mrf.mxu0
    %v1053 = vadd.f32 %v862, %v1052
    %1054 = vmatmul.bf16.gmra.mxu0 %v804
    %v1055 = vpop.f32.mrf.mxu0
    %v1056 = vadd.f32 %v862, %v1055
    %v1057 = vpop.f32.mrf.mxu0
    %v1058 = vadd.f32 %v862, %v1057
    %1059 = vmatmul.bf16.gmra.mxu0 %v806
    %v1060 = vpop.f32.mrf.mxu0
    %v1061 = vadd.f32 %v862, %v1060
    %v1062 = vpop.f32.mrf.mxu0
    %v1063 = vadd.f32 %v862, %v1062
    %1064 = vmatmul.bf16.gmra.mxu0 %v808
    %v1065 = vpop.f32.mrf.mxu0
    %v1066 = vadd.f32 %v862, %v1065
    %v1067 = vpop.f32.mrf.mxu0
    %v1068 = vadd.f32 %v862, %v1067
    %1069 = vmatmul.bf16.gmra.mxu0 %v810
    %v1070 = vpop.f32.mrf.mxu0
    %v1071 = vadd.f32 %v862, %v1070
    %v1072 = vpop.f32.mrf.mxu0
    %v1073 = vadd.f32 %v862, %v1072
    %1074 = vmatmul.bf16.gmra.mxu0 %v812
    %v1075 = vpop.f32.mrf.mxu0
    %v1076 = vadd.f32 %v862, %v1075
    %v1077 = vpop.f32.mrf.mxu0
    %v1078 = vadd.f32 %v862, %v1077
    %1079 = vmatmul.bf16.gmra.mxu0 %v814
    %v1080 = vpop.f32.mrf.mxu0
    %v1081 = vadd.f32 %v862, %v1080
    %v1082 = vpop.f32.mrf.mxu0
    %v1083 = vadd.f32 %v862, %v1082
    %1084 = vmatmul.bf16.gmra.mxu0 %v816
    %v1085 = vpop.f32.mrf.mxu0
    %v1086 = vadd.f32 %v862, %v1085
    %v1087 = vpop.f32.mrf.mxu0
    %v1088 = vadd.f32 %v862, %v1087
    %1089 = vmatmul.bf16.gmra.mxu0 %v818
    %v1090 = vpop.f32.mrf.mxu0
    %v1091 = vadd.f32 %v862, %v1090
    %v1092 = vpop.f32.mrf.mxu0
    %v1093 = vadd.f32 %v862, %v1092
    %1094 = vmatmul.bf16.gmra.mxu0 %v820
    %v1095 = vpop.f32.mrf.mxu0
    %v1096 = vadd.f32 %v862, %v1095
    %v1097 = vpop.f32.mrf.mxu0
    %v1098 = vadd.f32 %v862, %v1097
    %1099 = vmatmul.bf16.gmra.mxu0 %v822
    %v1100 = vpop.f32.mrf.mxu0
    %v1101 = vadd.f32 %v862, %v1100
    %v1102 = vpop.f32.mrf.mxu0
    %v1103 = vadd.f32 %v862, %v1102
    %1104 = vmatmul.bf16.gmra.mxu0 %v824
    %v1105 = vpop.f32.mrf.mxu0
    %v1106 = vadd.f32 %v862, %v1105
    %v1107 = vpop.f32.mrf.mxu0
    %v1108 = vadd.f32 %v862, %v1107
    %1109 = vmatmul.bf16.gmra.mxu0 %v826
    %v1110 = vpop.f32.mrf.mxu0
    %v1111 = vadd.f32 %v862, %v1110
    %v1112 = vpop.f32.mrf.mxu0
    %v1113 = vadd.f32 %v862, %v1112
    %1114 = vdwg.mxu0
    %1115 = vmatpush.bf16.msra.mxu0 %v992
    %1116 = vmatpush.bf16.msra.mxu0 %v990
    %1117 = vmatpush.bf16.msra.mxu0 %v988
    %1118 = vmatpush.bf16.msra.mxu0 %v986
    %1119 = vmatpush.bf16.msra.mxu0 %v984
    %1120 = vmatpush.bf16.msra.mxu0 %v982
    %1121 = vmatpush.bf16.msra.mxu0 %v980
    %1122 = vmatpush.bf16.msra.mxu0 %v978
    %1123 = vmatmul.bf16.gmra.mxu0 %v797
    %v1124 = vpop.f32.mrf.mxu0
    %v1125 = vadd.f32 %v1036, %v1124
    %v1126 = vpop.f32.mrf.mxu0
    %v1127 = vadd.f32 %v1038, %v1126
    %1128 = vmatmul.bf16.gmra.mxu0 %v799
    %v1129 = vpop.f32.mrf.mxu0
    %v1130 = vadd.f32 %v1041, %v1129
    %v1131 = vpop.f32.mrf.mxu0
    %v1132 = vadd.f32 %v1043, %v1131
    %1133 = vmatmul.bf16.gmra.mxu0 %v801
    %v1134 = vpop.f32.mrf.mxu0
    %v1135 = vadd.f32 %v1046, %v1134
    %v1136 = vpop.f32.mrf.mxu0
    %v1137 = vadd.f32 %v1048, %v1136
    %1138 = vmatmul.bf16.gmra.mxu0 %v803
    %v1139 = vpop.f32.mrf.mxu0
    %v1140 = vadd.f32 %v1051, %v1139
    %v1141 = vpop.f32.mrf.mxu0
    %v1142 = vadd.f32 %v1053, %v1141
    %1143 = vmatmul.bf16.gmra.mxu0 %v805
    %v1144 = vpop.f32.mrf.mxu0
    %v1145 = vadd.f32 %v1056, %v1144
    %v1146 = vpop.f32.mrf.mxu0
    %v1147 = vadd.f32 %v1058, %v1146
    %1148 = vmatmul.bf16.gmra.mxu0 %v807
    %v1149 = vpop.f32.mrf.mxu0
    %v1150 = vadd.f32 %v1061, %v1149
    %v1151 = vpop.f32.mrf.mxu0
    %v1152 = vadd.f32 %v1063, %v1151
    %1153 = vmatmul.bf16.gmra.mxu0 %v809
    %v1154 = vpop.f32.mrf.mxu0
    %v1155 = vadd.f32 %v1066, %v1154
    %v1156 = vpop.f32.mrf.mxu0
    %v1157 = vadd.f32 %v1068, %v1156
    %1158 = vmatmul.bf16.gmra.mxu0 %v811
    %v1159 = vpop.f32.mrf.mxu0
    %v1160 = vadd.f32 %v1071, %v1159
    %v1161 = vpop.f32.mrf.mxu0
    %v1162 = vadd.f32 %v1073, %v1161
    %1163 = vmatmul.bf16.gmra.mxu0 %v813
    %v1164 = vpop.f32.mrf.mxu0
    %v1165 = vadd.f32 %v1076, %v1164
    %v1166 = vpop.f32.mrf.mxu0
    %v1167 = vadd.f32 %v1078, %v1166
    %1168 = vmatmul.bf16.gmra.mxu0 %v815
    %v1169 = vpop.f32.mrf.mxu0
    %v1170 = vadd.f32 %v1081, %v1169
    %v1171 = vpop.f32.mrf.mxu0
    %v1172 = vadd.f32 %v1083, %v1171
    %1173 = vmatmul.bf16.gmra.mxu0 %v817
    %v1174 = vpop.f32.mrf.mxu0
    %v1175 = vadd.f32 %v1086, %v1174
    %v1176 = vpop.f32.mrf.mxu0
    %v1177 = vadd.f32 %v1088, %v1176
    %1178 = vmatmul.bf16.gmra.mxu0 %v819
    %v1179 = vpop.f32.mrf.mxu0
    %v1180 = vadd.f32 %v1091, %v1179
    %v1181 = vpop.f32.mrf.mxu0
    %v1182 = vadd.f32 %v1093, %v1181
    %1183 = vmatmul.bf16.gmra.mxu0 %v821
    %v1184 = vpop.f32.mrf.mxu0
    %v1185 = vadd.f32 %v1096, %v1184
    %v1186 = vpop.f32.mrf.mxu0
    %v1187 = vadd.f32 %v1098, %v1186
    %1188 = vmatmul.bf16.gmra.mxu0 %v823
    %v1189 = vpop.f32.mrf.mxu0
    %v1190 = vadd.f32 %v1101, %v1189
    %v1191 = vpop.f32.mrf.mxu0
    %v1192 = vadd.f32 %v1103, %v1191
    %1193 = vmatmul.bf16.gmra.mxu0 %v825
    %v1194 = vpop.f32.mrf.mxu0
    %v1195 = vadd.f32 %v1106, %v1194
    %v1196 = vpop.f32.mrf.mxu0
    %v1197 = vadd.f32 %v1108, %v1196
    %1198 = vmatmul.bf16.gmra.mxu0 %v827
    %v1199 = vpop.f32.mrf.mxu0
    %v1200 = vadd.f32 %v1111, %v1199
    %v1201 = vpop.f32.mrf.mxu0
    %v1202 = vadd.f32 %v1113, %v1201
    %1203 = vdwg.mxu0
    %1204 = vmatpush.bf16.msra.mxu0 %v977
    %1205 = vmatpush.bf16.msra.mxu0 %v975
    %1206 = vmatpush.bf16.msra.mxu0 %v973
    %1207 = vmatpush.bf16.msra.mxu0 %v971
    %1208 = vmatpush.bf16.msra.mxu0 %v969
    %1209 = vmatpush.bf16.msra.mxu0 %v967
    %1210 = vmatpush.bf16.msra.mxu0 %v965
    %1211 = vmatpush.bf16.msra.mxu0 %v963
    %1212 = vmatmul.bf16.gmra.mxu0 %v796
    %v1213 = vpop.f32.mrf.mxu0
    %v1214 = vadd.f32 %v863, %v1213
    %v1215 = vpop.f32.mrf.mxu0
    %v1216 = vadd.f32 %v863, %v1215
    %1217 = vmatmul.bf16.gmra.mxu0 %v798
    %v1218 = vpop.f32.mrf.mxu0
    %v1219 = vadd.f32 %v863, %v1218
    %v1220 = vpop.f32.mrf.mxu0
    %v1221 = vadd.f32 %v863, %v1220
    %1222 = vmatmul.bf16.gmra.mxu0 %v800
    %v1223 = vpop.f32.mrf.mxu0
    %v1224 = vadd.f32 %v863, %v1223
    %v1225 = vpop.f32.mrf.mxu0
    %v1226 = vadd.f32 %v863, %v1225
    %1227 = vmatmul.bf16.gmra.mxu0 %v802
    %v1228 = vpop.f32.mrf.mxu0
    %v1229 = vadd.f32 %v863, %v1228
    %v1230 = vpop.f32.mrf.mxu0
    %v1231 = vadd.f32 %v863, %v1230
    %1232 = vmatmul.bf16.gmra.mxu0 %v804
    %v1233 = vpop.f32.mrf.mxu0
    %v1234 = vadd.f32 %v863, %v1233
    %v1235 = vpop.f32.mrf.mxu0
    %v1236 = vadd.f32 %v863, %v1235
    %1237 = vmatmul.bf16.gmra.mxu0 %v806
    %v1238 = vpop.f32.mrf.mxu0
    %v1239 = vadd.f32 %v863, %v1238
    %v1240 = vpop.f32.mrf.mxu0
    %v1241 = vadd.f32 %v863, %v1240
    %1242 = vmatmul.bf16.gmra.mxu0 %v808
    %v1243 = vpop.f32.mrf.mxu0
    %v1244 = vadd.f32 %v863, %v1243
    %v1245 = vpop.f32.mrf.mxu0
    %v1246 = vadd.f32 %v863, %v1245
    %1247 = vmatmul.bf16.gmra.mxu0 %v810
    %v1248 = vpop.f32.mrf.mxu0
    %v1249 = vadd.f32 %v863, %v1248
    %v1250 = vpop.f32.mrf.mxu0
    %v1251 = vadd.f32 %v863, %v1250
    %1252 = vmatmul.bf16.gmra.mxu0 %v812
    %v1253 = vpop.f32.mrf.mxu0
    %v1254 = vadd.f32 %v863, %v1253
    %v1255 = vpop.f32.mrf.mxu0
    %v1256 = vadd.f32 %v863, %v1255
    %1257 = vmatmul.bf16.gmra.mxu0 %v814
    %v1258 = vpop.f32.mrf.mxu0
    %v1259 = vadd.f32 %v863, %v1258
    %v1260 = vpop.f32.mrf.mxu0
    %v1261 = vadd.f32 %v863, %v1260
    %1262 = vmatmul.bf16.gmra.mxu0 %v816
    %v1263 = vpop.f32.mrf.mxu0
    %v1264 = vadd.f32 %v863, %v1263
    %v1265 = vpop.f32.mrf.mxu0
    %v1266 = vadd.f32 %v863, %v1265
    %1267 = vmatmul.bf16.gmra.mxu0 %v818
    %v1268 = vpop.f32.mrf.mxu0
    %v1269 = vadd.f32 %v863, %v1268
    %v1270 = vpop.f32.mrf.mxu0
    %v1271 = vadd.f32 %v863, %v1270
    %1272 = vmatmul.bf16.gmra.mxu0 %v820
    %v1273 = vpop.f32.mrf.mxu0
    %v1274 = vadd.f32 %v863, %v1273
    %v1275 = vpop.f32.mrf.mxu0
    %v1276 = vadd.f32 %v863, %v1275
    %1277 = vmatmul.bf16.gmra.mxu0 %v822
    %v1278 = vpop.f32.mrf.mxu0
    %v1279 = vadd.f32 %v863, %v1278
    %v1280 = vpop.f32.mrf.mxu0
    %v1281 = vadd.f32 %v863, %v1280
    %1282 = vmatmul.bf16.gmra.mxu0 %v824
    %v1283 = vpop.f32.mrf.mxu0
    %v1284 = vadd.f32 %v863, %v1283
    %v1285 = vpop.f32.mrf.mxu0
    %v1286 = vadd.f32 %v863, %v1285
    %1287 = vmatmul.bf16.gmra.mxu0 %v826
    %v1288 = vpop.f32.mrf.mxu0
    %v1289 = vadd.f32 %v863, %v1288
    %v1290 = vpop.f32.mrf.mxu0
    %v1291 = vadd.f32 %v863, %v1290
    %1292 = vdwg.mxu0
    %1293 = vmatpush.bf16.msra.mxu0 %v993
    %1294 = vmatpush.bf16.msra.mxu0 %v991
    %1295 = vmatpush.bf16.msra.mxu0 %v989
    %1296 = vmatpush.bf16.msra.mxu0 %v987
    %1297 = vmatpush.bf16.msra.mxu0 %v985
    %1298 = vmatpush.bf16.msra.mxu0 %v983
    %1299 = vmatpush.bf16.msra.mxu0 %v981
    %1300 = vmatpush.bf16.msra.mxu0 %v979
    %1301 = vmatmul.bf16.gmra.mxu0 %v797
    %v1302 = vpop.f32.mrf.mxu0
    %v1303 = vadd.f32 %v1214, %v1302
    %v1304 = vpop.f32.mrf.mxu0
    %v1305 = vadd.f32 %v1216, %v1304
    %1306 = vmatmul.bf16.gmra.mxu0 %v799
    %v1307 = vpop.f32.mrf.mxu0
    %v1308 = vadd.f32 %v1219, %v1307
    %v1309 = vpop.f32.mrf.mxu0
    %v1310 = vadd.f32 %v1221, %v1309
    %1311 = vmatmul.bf16.gmra.mxu0 %v801
    %v1312 = vpop.f32.mrf.mxu0
    %v1313 = vadd.f32 %v1224, %v1312
    %v1314 = vpop.f32.mrf.mxu0
    %v1315 = vadd.f32 %v1226, %v1314
    %1316 = vmatmul.bf16.gmra.mxu0 %v803
    %v1317 = vpop.f32.mrf.mxu0
    %v1318 = vadd.f32 %v1229, %v1317
    %v1319 = vpop.f32.mrf.mxu0
    %v1320 = vadd.f32 %v1231, %v1319
    %1321 = vmatmul.bf16.gmra.mxu0 %v805
    %v1322 = vpop.f32.mrf.mxu0
    %v1323 = vadd.f32 %v1234, %v1322
    %v1324 = vpop.f32.mrf.mxu0
    %v1325 = vadd.f32 %v1236, %v1324
    %1326 = vmatmul.bf16.gmra.mxu0 %v807
    %v1327 = vpop.f32.mrf.mxu0
    %v1328 = vadd.f32 %v1239, %v1327
    %v1329 = vpop.f32.mrf.mxu0
    %v1330 = vadd.f32 %v1241, %v1329
    %1331 = vmatmul.bf16.gmra.mxu0 %v809
    %v1332 = vpop.f32.mrf.mxu0
    %v1333 = vadd.f32 %v1244, %v1332
    %v1334 = vpop.f32.mrf.mxu0
    %v1335 = vadd.f32 %v1246, %v1334
    %1336 = vmatmul.bf16.gmra.mxu0 %v811
    %v1337 = vpop.f32.mrf.mxu0
    %v1338 = vadd.f32 %v1249, %v1337
    %v1339 = vpop.f32.mrf.mxu0
    %v1340 = vadd.f32 %v1251, %v1339
    %1341 = vmatmul.bf16.gmra.mxu0 %v813
    %v1342 = vpop.f32.mrf.mxu0
    %v1343 = vadd.f32 %v1254, %v1342
    %v1344 = vpop.f32.mrf.mxu0
    %v1345 = vadd.f32 %v1256, %v1344
    %1346 = vmatmul.bf16.gmra.mxu0 %v815
    %v1347 = vpop.f32.mrf.mxu0
    %v1348 = vadd.f32 %v1259, %v1347
    %v1349 = vpop.f32.mrf.mxu0
    %v1350 = vadd.f32 %v1261, %v1349
    %1351 = vmatmul.bf16.gmra.mxu0 %v817
    %v1352 = vpop.f32.mrf.mxu0
    %v1353 = vadd.f32 %v1264, %v1352
    %v1354 = vpop.f32.mrf.mxu0
    %v1355 = vadd.f32 %v1266, %v1354
    %1356 = vmatmul.bf16.gmra.mxu0 %v819
    %v1357 = vpop.f32.mrf.mxu0
    %v1358 = vadd.f32 %v1269, %v1357
    %v1359 = vpop.f32.mrf.mxu0
    %v1360 = vadd.f32 %v1271, %v1359
    %1361 = vmatmul.bf16.gmra.mxu0 %v821
    %v1362 = vpop.f32.mrf.mxu0
    %v1363 = vadd.f32 %v1274, %v1362
    %v1364 = vpop.f32.mrf.mxu0
    %v1365 = vadd.f32 %v1276, %v1364
    %1366 = vmatmul.bf16.gmra.mxu0 %v823
    %v1367 = vpop.f32.mrf.mxu0
    %v1368 = vadd.f32 %v1279, %v1367
    %v1369 = vpop.f32.mrf.mxu0
    %v1370 = vadd.f32 %v1281, %v1369
    %1371 = vmatmul.bf16.gmra.mxu0 %v825
    %v1372 = vpop.f32.mrf.mxu0
    %v1373 = vadd.f32 %v1284, %v1372
    %v1374 = vpop.f32.mrf.mxu0
    %v1375 = vadd.f32 %v1286, %v1374
    %1376 = vmatmul.bf16.gmra.mxu0 %v827
    %v1377 = vpop.f32.mrf.mxu0
    %v1378 = vadd.f32 %v1289, %v1377
    %v1379 = vpop.f32.mrf.mxu0
    %v1380 = vadd.f32 %v1291, %v1379
    %1381 = vdwg.mxu0
    %v1382 = vmax.f32 %v1125, 0.0
    %v1383 = vmax.f32 %v1303, 0.0
    %v1384 = vmax.f32 %v1127, 0.0
    %v1385 = vmax.f32 %v1305, 0.0
    %v1386 = vmax.f32 %v1130, 0.0
    %v1387 = vmax.f32 %v1308, 0.0
    %v1388 = vmax.f32 %v1132, 0.0
    %v1389 = vmax.f32 %v1310, 0.0
    %v1390 = vmax.f32 %v1135, 0.0
    %v1391 = vmax.f32 %v1313, 0.0
    %v1392 = vmax.f32 %v1137, 0.0
    %v1393 = vmax.f32 %v1315, 0.0
    %v1394 = vmax.f32 %v1140, 0.0
    %v1395 = vmax.f32 %v1318, 0.0
    %v1396 = vmax.f32 %v1142, 0.0
    %v1397 = vmax.f32 %v1320, 0.0
    %v1398 = vmax.f32 %v1145, 0.0
    %v1399 = vmax.f32 %v1323, 0.0
    %v1400 = vmax.f32 %v1147, 0.0
    %v1401 = vmax.f32 %v1325, 0.0
    %v1402 = vmax.f32 %v1150, 0.0
    %v1403 = vmax.f32 %v1328, 0.0
    %v1404 = vmax.f32 %v1152, 0.0
    %v1405 = vmax.f32 %v1330, 0.0
    %v1406 = vmax.f32 %v1155, 0.0
    %v1407 = vmax.f32 %v1333, 0.0
    %v1408 = vmax.f32 %v1157, 0.0
    %v1409 = vmax.f32 %v1335, 0.0
    %v1410 = vmax.f32 %v1160, 0.0
    %v1411 = vmax.f32 %v1338, 0.0
    %v1412 = vmax.f32 %v1162, 0.0
    %v1413 = vmax.f32 %v1340, 0.0
    %v1414 = vmax.f32 %v1165, 0.0
    %v1415 = vmax.f32 %v1343, 0.0
    %v1416 = vmax.f32 %v1167, 0.0
    %v1417 = vmax.f32 %v1345, 0.0
    %v1418 = vmax.f32 %v1170, 0.0
    %v1419 = vmax.f32 %v1348, 0.0
    %v1420 = vmax.f32 %v1172, 0.0
    %v1421 = vmax.f32 %v1350, 0.0
    %v1422 = vmax.f32 %v1175, 0.0
    %v1423 = vmax.f32 %v1353, 0.0
    %v1424 = vmax.f32 %v1177, 0.0
    %v1425 = vmax.f32 %v1355, 0.0
    %v1426 = vmax.f32 %v1180, 0.0
    %v1427 = vmax.f32 %v1358, 0.0
    %v1428 = vmax.f32 %v1182, 0.0
    %v1429 = vmax.f32 %v1360, 0.0
    %v1430 = vmax.f32 %v1185, 0.0
    %v1431 = vmax.f32 %v1363, 0.0
    %v1432 = vmax.f32 %v1187, 0.0
    %v1433 = vmax.f32 %v1365, 0.0
    %v1434 = vmax.f32 %v1190, 0.0
    %v1435 = vmax.f32 %v1368, 0.0
    %v1436 = vmax.f32 %v1192, 0.0
    %v1437 = vmax.f32 %v1370, 0.0
    %v1438 = vmax.f32 %v1195, 0.0
    %v1439 = vmax.f32 %v1373, 0.0
    %v1440 = vmax.f32 %v1197, 0.0
    %v1441 = vmax.f32 %v1375, 0.0
    %v1442 = vmax.f32 %v1200, 0.0
    %v1443 = vmax.f32 %v1378, 0.0
    %v1444 = vmax.f32 %v1202, 0.0
    %v1445 = vmax.f32 %v1380, 0.0
    %v1446 = vadd.f32 %v82, %v1382
    %v1447 = vadd.f32 %v83, %v1383
    %v1448 = vadd.f32 %v84, %v1384
    %v1449 = vadd.f32 %v85, %v1385
    %v1450 = vadd.f32 %v86, %v1386
    %v1451 = vadd.f32 %v87, %v1387
    %v1452 = vadd.f32 %v88, %v1388
    %v1453 = vadd.f32 %v89, %v1389
    %v1454 = vadd.f32 %v90, %v1390
    %v1455 = vadd.f32 %v91, %v1391
    %v1456 = vadd.f32 %v92, %v1392
    %v1457 = vadd.f32 %v93, %v1393
    %v1458 = vadd.f32 %v94, %v1394
    %v1459 = vadd.f32 %v95, %v1395
    %v1460 = vadd.f32 %v96, %v1396
    %v1461 = vadd.f32 %v97, %v1397
    %v1462 = vadd.f32 %v98, %v1398
    %v1463 = vadd.f32 %v99, %v1399
    %v1464 = vadd.f32 %v100, %v1400
    %v1465 = vadd.f32 %v101, %v1401
    %v1466 = vadd.f32 %v102, %v1402
    %v1467 = vadd.f32 %v103, %v1403
    %v1468 = vadd.f32 %v104, %v1404
    %v1469 = vadd.f32 %v105, %v1405
    %v1470 = vadd.f32 %v106, %v1406
    %v1471 = vadd.f32 %v107, %v1407
    %v1472 = vadd.f32 %v108, %v1408
    %v1473 = vadd.f32 %v109, %v1409
    %v1474 = vadd.f32 %v110, %v1410
    %v1475 = vadd.f32 %v111, %v1411
    %v1476 = vadd.f32 %v112, %v1412
    %v1477 = vadd.f32 %v113, %v1413
    %v1478 = vadd.f32 %v114, %v1414
    %v1479 = vadd.f32 %v115, %v1415
    %v1480 = vadd.f32 %v116, %v1416
    %v1481 = vadd.f32 %v117, %v1417
    %v1482 = vadd.f32 %v118, %v1418
    %v1483 = vadd.f32 %v119, %v1419
    %v1484 = vadd.f32 %v120, %v1420
    %v1485 = vadd.f32 %v121, %v1421
    %v1486 = vadd.f32 %v122, %v1422
    %v1487 = vadd.f32 %v123, %v1423
    %v1488 = vadd.f32 %v124, %v1424
    %v1489 = vadd.f32 %v125, %v1425
    %v1490 = vadd.f32 %v126, %v1426
    %v1491 = vadd.f32 %v127, %v1427
    %v1492 = vadd.f32 %v128, %v1428
    %v1493 = vadd.f32 %v129, %v1429
    %v1494 = vadd.f32 %v130, %v1430
    %v1495 = vadd.f32 %v131, %v1431
    %v1496 = vadd.f32 %v132, %v1432
    %v1497 = vadd.f32 %v133, %v1433
    %v1498 = vadd.f32 %v134, %v1434
    %v1499 = vadd.f32 %v135, %v1435
    %v1500 = vadd.f32 %v136, %v1436
    %v1501 = vadd.f32 %v137, %v1437
    %v1502 = vadd.f32 %v138, %v1438
    %v1503 = vadd.f32 %v139, %v1439
    %v1504 = vadd.f32 %v140, %v1440
    %v1505 = vadd.f32 %v141, %v1441
    %v1506 = vadd.f32 %v142, %v1442
    %v1507 = vadd.f32 %v143, %v1443
    %v1508 = vadd.f32 %v144, %v1444
    %v1509 = vadd.f32 %v145, %v1445
    %1510 = vst [vmem:[#allocation10] sm:$0xff] %v1446
    %1511 = vst [vmem:[#allocation10 + $0x8] sm:$0xff] %v1447
    %1512 = vst [vmem:[#allocation10 + $0x10] sm:$0xff] %v1448
    %1513 = vst [vmem:[#allocation10 + $0x18] sm:$0xff] %v1449
    %1514 = vst [vmem:[#allocation10 + $0x20] sm:$0xff] %v1450
    %1515 = vst [vmem:[#allocation10 + $0x28] sm:$0xff] %v1451
    %1516 = vst [vmem:[#allocation10 + $0x30] sm:$0xff] %v1452
    %1517 = vst [vmem:[#allocation10 + $0x38] sm:$0xff] %v1453
    %1518 = vst [vmem:[#allocation10 + $0x40] sm:$0xff] %v1454
    %1519 = vst [vmem:[#allocation10 + $0x48] sm:$0xff] %v1455
    %1520 = vst [vmem:[#allocation10 + $0x50] sm:$0xff] %v1456
    %1521 = vst [vmem:[#allocation10 + $0x58] sm:$0xff] %v1457
    %1522 = vst [vmem:[#allocation10 + $0x60] sm:$0xff] %v1458
    %1523 = vst [vmem:[#allocation10 + $0x68] sm:$0xff] %v1459
    %1524 = vst [vmem:[#allocation10 + $0x70] sm:$0xff] %v1460
    %1525 = vst [vmem:[#allocation10 + $0x78] sm:$0xff] %v1461
    %1526 = vst [vmem:[#allocation10 + $0x80] sm:$0xff] %v1462
    %1527 = vst [vmem:[#allocation10 + $0x88] sm:$0xff] %v1463
    %1528 = vst [vmem:[#allocation10 + $0x90] sm:$0xff] %v1464
    %1529 = vst [vmem:[#allocation10 + $0x98] sm:$0xff] %v1465
    %1530 = vst [vmem:[#allocation10 + $0xa0] sm:$0xff] %v1466
    %1531 = vst [vmem:[#allocation10 + $0xa8] sm:$0xff] %v1467
    %1532 = vst [vmem:[#allocation10 + $0xb0] sm:$0xff] %v1468
    %1533 = vst [vmem:[#allocation10 + $0xb8] sm:$0xff] %v1469
    %1534 = vst [vmem:[#allocation10 + $0xc0] sm:$0xff] %v1470
    %1535 = vst [vmem:[#allocation10 + $0xc8] sm:$0xff] %v1471
    %1536 = vst [vmem:[#allocation10 + $0xd0] sm:$0xff] %v1472
    %1537 = vst [vmem:[#allocation10 + $0xd8] sm:$0xff] %v1473
    %1538 = vst [vmem:[#allocation10 + $0xe0] sm:$0xff] %v1474
    %1539 = vst [vmem:[#allocation10 + $0xe8] sm:$0xff] %v1475
    %1540 = vst [vmem:[#allocation10 + $0xf0] sm:$0xff] %v1476
    %1541 = vst [vmem:[#allocation10 + $0xf8] sm:$0xff] %v1477
    %1542 = vst [vmem:[#allocation10 + $0x100] sm:$0xff] %v1478
    %1543 = vst [vmem:[#allocation10 + $0x108] sm:$0xff] %v1479
    %1544 = vst [vmem:[#allocation10 + $0x110] sm:$0xff] %v1480
    %1545 = vst [vmem:[#allocation10 + $0x118] sm:$0xff] %v1481
    %1546 = vst [vmem:[#allocation10 + $0x120] sm:$0xff] %v1482
    %1547 = vst [vmem:[#allocation10 + $0x128] sm:$0xff] %v1483
    %1548 = vst [vmem:[#allocation10 + $0x130] sm:$0xff] %v1484
    %1549 = vst [vmem:[#allocation10 + $0x138] sm:$0xff] %v1485
    %1550 = vst [vmem:[#allocation10 + $0x140] sm:$0xff] %v1486
    %1551 = vst [vmem:[#allocation10 + $0x148] sm:$0xff] %v1487
    %1552 = vst [vmem:[#allocation10 + $0x150] sm:$0xff] %v1488
    %1553 = vst [vmem:[#allocation10 + $0x158] sm:$0xff] %v1489
    %1554 = vst [vmem:[#allocation10 + $0x160] sm:$0xff] %v1490
    %1555 = vst [vmem:[#allocation10 + $0x168] sm:$0xff] %v1491
    %1556 = vst [vmem:[#allocation10 + $0x170] sm:$0xff] %v1492
    %1557 = vst [vmem:[#allocation10 + $0x178] sm:$0xff] %v1493
    %1558 = vst [vmem:[#allocation10 + $0x180] sm:$0xff] %v1494
    %1559 = vst [vmem:[#allocation10 + $0x188] sm:$0xff] %v1495
    %1560 = vst [vmem:[#allocation10 + $0x190] sm:$0xff] %v1496
    %1561 = vst [vmem:[#allocation10 + $0x198] sm:$0xff] %v1497
    %1562 = vst [vmem:[#allocation10 + $0x1a0] sm:$0xff] %v1498
    %1563 = vst [vmem:[#allocation10 + $0x1a8] sm:$0xff] %v1499
    %1564 = vst [vmem:[#allocation10 + $0x1b0] sm:$0xff] %v1500
    %1565 = vst [vmem:[#allocation10 + $0x1b8] sm:$0xff] %v1501
    %1566 = vst [vmem:[#allocation10 + $0x1c0] sm:$0xff] %v1502
    %1567 = vst [vmem:[#allocation10 + $0x1c8] sm:$0xff] %v1503
    %1568 = vst [vmem:[#allocation10 + $0x1d0] sm:$0xff] %v1504
    %1569 = vst [vmem:[#allocation10 + $0x1d8] sm:$0xff] %v1505
    %1570 = vst [vmem:[#allocation10 + $0x1e0] sm:$0xff] %v1506
    %1571 = vst [vmem:[#allocation10 + $0x1e8] sm:$0xff] %v1507
    %1572 = vst [vmem:[#allocation10 + $0x1f0] sm:$0xff] %v1508
    %1573 = vst [vmem:[#allocation10 + $0x1f8] sm:$0xff] %v1509
    // Predicated region
    $region38: #{tpu_custom_call.1} parent=1 // pred_check
      _
    $region39: #{tpu_custom_call.1} parent=1 // pred_check_branch
      %1575 = sbr.rel (0) target = $region41
    $region40: #{tpu_custom_call.1} parent=1 // pred_region
      %1577 = vsyncadd [#allocation4], 0
      %s1578 = sshll.u32 [#allocation10], 4
      %s1579 = int_to_ptr.vmem [resolvable:$true] %s1578
      %s1580 = sshll.u32 %s5, 4
      %s1581 = int_to_ptr.hbm [resolvable:$true] %s1580
      %1586 = dma.vmem_to_hbm [thread:$0]  %s1579, 8192, %s1581, [#allocation4], 256, 256, 16
    $region41: #{tpu_custom_call.1} parent=1 // pred_fallthru
      _
    // Predicated region
    $region42: #{tpu_custom_call.1} parent=1 // pred_check
      _
    $region43: #{tpu_custom_call.1} parent=1 // pred_check_branch
      %1588 = sbr.rel (0) target = $region45
    $region44: #{tpu_custom_call.1} parent=1 // pred_region
      %1590 = dma.done [#allocation4], 8192
    $region45: #{tpu_custom_call.1} parent=1 // pred_fallthru
      _
    %1591 = vsyncpa [#allocation3], 1
    %1592 = vsyncpa [#allocation6], 1
    %1593 = vsyncpa [#allocation9], 1
    %1594 = vsyncpa [#allocation4], 1

</llo_original>
